<compile_context>
chip_gen: v6e
topology: v6e:2x2x1
jax: 0.10.0
libtpu: 0.0.40
codegen_flags: <defaults>
</compile_context>

<pallas_src>
import jax
import jax.numpy as jnp
from jax.experimental import pallas as pl
from jax.experimental.pallas import tpu as pltpu

H = 64           # d in the einops rearrange (hard-coded in the module)
W = 64           # e
HW = H * W       # 4096 — lane-dense flattened spatial axis
KH = KW = 3      # 3x3 convs in the Head


# ----------------------------------------------------------------------------- kernel


def _head_kernel(masks_ref, x_ref, w1_ref, b1_ref, w2_ref, b2_ref, o_ref):
    """One (Bt, Cp, 4096) batch tile: conv3x3(SAME) -> ReLU -> conv3x3(SAME)."""
    bt, cp, _ = x_ref.shape

    masks = masks_ref[...]                        # (4, HW) f32 {0,1} halo masks
    col_m1, col_p1 = masks[0:1], masks[1:2]       # dw = -1 / +1 column validity
    row_m1, row_p1 = masks[2:3], masks[3:4]       # dh = -1 / +1 row validity

    w1 = w1_ref[...]                              # (3*cp, 3*cp) bf16 fused-tap lhs
    w2 = w2_ref[...]
    b1 = b1_ref[...]                              # (cp, 1) f32
    b2 = b2_ref[...]

    def conv3x3(xf, w, b):
        # xf: (cp, HW) f32.  Build the dw-shifted, column-masked tap stack once,
        # run ONE fused (3cp,3cp)@(3cp,HW) MXU matmul, then apply the dh (row)
        # shift + mask on the (cp, HW) outputs — the roll along HW commutes with
        # the channel contraction, and the column mask is invariant under shifts
        # by whole rows (HW is a multiple of W), so this matches SAME padding.
        t_m1 = pltpu.roll(xf, shift=1, axis=1) * col_m1        # tap reads p - 1
        t_p1 = pltpu.roll(xf, shift=HW - 1, axis=1) * col_p1   # tap reads p + 1
        rhs = jnp.concatenate([t_m1, xf, t_p1], axis=0).astype(jnp.bfloat16)
        p = jnp.dot(w, rhs, preferred_element_type=jnp.float32)   # (3cp, HW) f32
        top = pltpu.roll(p[0:cp], shift=W, axis=1) * row_m1            # dh = -1
        bot = pltpu.roll(p[2 * cp:3 * cp], shift=HW - W, axis=1) * row_p1  # dh = +1
        return (p[cp:2 * cp] + b) + (top + bot)

    for i in range(bt):                           # static, unrolled batch-tile loop
        xf = x_ref[i].astype(jnp.float32)         # (cp, HW), lane-dense
        hid = jnp.maximum(conv3x3(xf, w1, b1), 0.0)   # ReLU kept in f32 values
        o_ref[i] = conv3x3(hid, w2, b2).astype(o_ref.dtype)


# ----------------------------------------------------------------------------- wrapper


def _grid_invariant_spec(shape):
    """Grid-invariant input: constant index_map; single VMEM buffer if supported."""
    index_map = lambda b: (0,) * len(shape)
    try:
        return pl.BlockSpec(shape, index_map, pipeline_mode=pl.Buffered(1))
    except TypeError:
        # Older Pallas without per-spec pipeline_mode: plain (double-buffered) spec.
        return pl.BlockSpec(shape, index_map)


def _pick_batch_tile(batch, per_elem_bytes, target_bytes=1 << 21):
    """Largest divisor of `batch` that keeps blocks ~MiB-sized and >=2 grid steps."""
    cap = max(1, target_bytes // per_elem_bytes)
    if batch >= 2:
        cap = min(cap, batch // 2)     # keep >= 2 grid steps (v7x has 2 TCs/chip)
    cap = max(1, min(cap, batch))
    bt = 1
    for d in range(1, cap + 1):
        if batch % d == 0:
            bt = d
    return bt


def head_pallas(video_p, masks, w1, b1, w2, b2):
    """video_p: (B, Cp, 4096) f32 with Cp % 8 == 0; w*: (3Cp,3Cp) bf16; b*: (Cp,1) f32."""
    B, Cp, DE = video_p.shape
    assert DE == HW and Cp % 8 == 0
    nt = KH * Cp                                   # fused-tap lhs side (3*Cp)

    bt = _pick_batch_tile(B, Cp * HW * 4)
    grid = (B // bt,)

    # Explicit VMEM budget (double-buffered act blocks + weights + live values),
    # capped at 64 MiB so it also fits v7x's physical VMEM; floor at 32 MiB.
    act_blk = bt * Cp * HW * 4
    w_bytes = 2 * nt * nt * 2 + 2 * Cp * 4 + 4 * HW * 4
    live = 18 * Cp * HW * 4
    est = 4 * act_blk + w_bytes + live + (1 << 20)
    vmem_limit = int(min(64 << 20, max(32 << 20, 2 * est)))

    return pl.pallas_call(
        _head_kernel,
        out_shape=jax.ShapeDtypeStruct((B, Cp, DE), jnp.float32),
        grid_spec=pltpu.PrefetchScalarGridSpec(
            num_scalar_prefetch=0,
            grid=grid,
            in_specs=[
                _grid_invariant_spec((4, HW)),                    # halo masks
                pl.BlockSpec((bt, Cp, HW), lambda b: (b, 0, 0)),  # lane-dense acts
                _grid_invariant_spec((nt, nt)),                   # conv1 fused weights
                _grid_invariant_spec((Cp, 1)),                    # conv1 bias
                _grid_invariant_spec((nt, nt)),                   # conv2 fused weights
                _grid_invariant_spec((Cp, 1)),                    # conv2 bias
            ],
            out_specs=pl.BlockSpec((bt, Cp, HW), lambda b: (b, 0, 0)),
        ),
        compiler_params=pltpu.CompilerParams(
            dimension_semantics=("parallel",),     # megacore over batch tiles
            vmem_limit_bytes=vmem_limit,
        ),
    )(masks, video_p, w1, b1, w2, b2)


def _halo_masks():
    """(4, HW) f32 {0,1} masks: [col>=1, col<=W-2, row>=1, row<=H-2]."""
    pos = jnp.arange(HW, dtype=jnp.int32)
    row = pos // W
    col = pos % W
    return jnp.stack([col >= 1, col <= W - 2, row >= 1, row <= H - 2]).astype(jnp.float32)


def _prep_params(w1, b1, w2, b2, c, cp):
    """HWIO conv weights -> fused-tap (3Cp, 3Cp) bf16 lhs; biases -> (Cp, 1) f32.

    lhs[kh*Cp + co, kw*Cp + ci] = w[kh, kw, ci, co]; the kh row-blocks are the
    dh = -1/0/+1 partial-result groups produced by the single in-kernel matmul.
    """
    pad_c = cp - c

    def prep_w(w):
        w = jnp.pad(w, ((0, 0), (0, 0), (0, pad_c), (0, pad_c)))
        w = jnp.transpose(w, (0, 3, 1, 2))         # (KH, Cout, KW, Cin)
        return w.reshape(KH * cp, KW * cp).astype(jnp.bfloat16)

    def prep_b(b):
        b = jnp.pad(b.reshape(-1), (0, pad_c))
        return b.reshape(cp, 1).astype(jnp.float32)

    return prep_w(w1), prep_b(b1), prep_w(w2), prep_b(b2)


def fbilm_head_forward(video, params):
    """video: (B, C, 64*64) float32 — the module's 'b c (d e)' tensor.

    Returns the processed video in the same layout, i.e. exactly what FBiLM_HEAD
    passes on to lm_model.
    """
    w1, b1, w2, b2 = params
    B, C, DE = video.shape
    assert DE == HW
    # Pad channels to a multiple of 8 for (8,128) tile alignment.  For large C,
    # padding to 128 (v5e MXU) / 256 (v6e,v7x MXU) fills the systolic array better.
    cp = ((C + 7) // 8) * 8
    w1t, b1t, w2t, b2t = _prep_params(w1, b1, w2, b2, C, cp)
    masks = _halo_masks()
    video_p = video.astype(jnp.float32)
    if cp != C:
        video_p = jnp.pad(video_p, ((0, 0), (0, cp - C), (0, 0)))
    out = head_pallas(video_p, masks, w1t, b1t, w2t, b2t)
    return out if cp == C else out[:, :C, :]


# ----------------------------------------------------------------------------- reference


def _reference_forward(video, params):
    """Pure-JAX (f32) reference of the same head, for a correctness check."""
    w1, b1, w2, b2 = params
    B, C, DE = video.shape
    x = jnp.transpose(video.reshape(B, C, H, W), (0, 2, 3, 1))
    dn = ("NHWC", "HWIO", "NHWC")
    h = jax.lax.conv_general_dilated(x, w1, (1, 1), "SAME", dimension_numbers=dn)
    h = jnp.maximum(h + b1.reshape(1, 1, 1, -1), 0.0)
    y = jax.lax.conv_general_dilated(h, w2, (1, 1), "SAME", dimension_numbers=dn)
    y = y + b2.reshape(1, 1, 1, -1)
    return jnp.transpose(y, (0, 3, 1, 2)).reshape(B, C, DE)


if __name__ == "__main__":
    key = jax.random.PRNGKey(0)
    B, C = 2, 4                                    # small channel count for the demo
    k_v, k_w1, k_b1, k_w2, k_b2 = jax.random.split(key, 5)

    video = jax.random.normal(k_v, (B, C, H * W), dtype=jnp.float32)

    # Deterministic synthetic Head parameters (Conv2d weights in HWIO layout).
    fan_in = C * KH * KW
    scale = 1.0 / jnp.sqrt(jnp.float32(fan_in))
    w1 = jax.random.uniform(k_w1, (KH, KW, C, C), jnp.float32, -scale, scale)
    b1 = jax.random.uniform(k_b1, (1, C), jnp.float32, -scale, scale)
    w2 = jax.random.uniform(k_w2, (KH, KW, C, C), jnp.float32, -scale, scale)
    b2 = jax.random.uniform(k_b2, (1, C), jnp.float32, -scale, scale)
    params = (w1, b1, w2, b2)

    out = jax.block_until_ready(fbilm_head_forward(video, params))
    ref = jax.block_until_ready(_reference_forward(video, params))

    assert out.shape == (B, C, H * W)
    # bf16 MXU operands vs f32 XLA reference: keep the tolerance loose-ish.
    assert jnp.allclose(out, ref, atol=2e-2, rtol=2e-2), "mismatch vs reference"

    print("KERNEL_OK")
</pallas_src>

<mosaic_0001>
module attributes {stable_mosaic.version = 11 : i64} {
  func.func @_head_kernel(%arg0: i32, %arg1: memref<4x4096xf32, #tpu.memory_space<vmem>>, %arg2: memref<1x8x4096xf32, #tpu.memory_space<vmem>>, %arg3: memref<24x24xbf16, #tpu.memory_space<vmem>>, %arg4: memref<8x1xf32, #tpu.memory_space<vmem>>, %arg5: memref<24x24xbf16, #tpu.memory_space<vmem>>, %arg6: memref<8x1xf32, #tpu.memory_space<vmem>>, %arg7: memref<1x8x4096xf32, #tpu.memory_space<vmem>>) attributes {dimension_semantics = [#tpu.dimension_semantics<parallel>], iteration_bounds = array<i64: 2>, scalar_prefetch = 0 : i64, scratch_operands = 0 : i64, tpu.core_type = #tpu.core_type<tc>, window_params = [{pipeline_mode = #tpu.pipeline_mode<synchronous>, transform_indices = @transform_0, window_bounds = array<i64: 4, 4096>}, {transform_indices = @transform_1, window_bounds = array<i64: 1, 8, 4096>}, {pipeline_mode = #tpu.pipeline_mode<synchronous>, transform_indices = @transform_2, window_bounds = array<i64: 24, 24>}, {pipeline_mode = #tpu.pipeline_mode<synchronous>, transform_indices = @transform_3, window_bounds = array<i64: 8, 1>}, {pipeline_mode = #tpu.pipeline_mode<synchronous>, transform_indices = @transform_4, window_bounds = array<i64: 24, 24>}, {pipeline_mode = #tpu.pipeline_mode<synchronous>, transform_indices = @transform_5, window_bounds = array<i64: 8, 1>}, {transform_indices = @transform_6, window_bounds = array<i64: 1, 8, 4096>}]} {
    %c0 = arith.constant 0 : index
    %c0_0 = arith.constant 0 : index
    %0 = vector.load %arg1[%c0, %c0_0] : memref<4x4096xf32, #tpu.memory_space<vmem>>, vector<4x4096xf32>
    %1 = vector.extract_strided_slice %0 {offsets = [0, 0], sizes = [1, 4096], strides = [1, 1]} : vector<4x4096xf32> to vector<1x4096xf32>
    %2 = vector.extract_strided_slice %0 {offsets = [1, 0], sizes = [1, 4096], strides = [1, 1]} : vector<4x4096xf32> to vector<1x4096xf32>
    %3 = vector.extract_strided_slice %0 {offsets = [2, 0], sizes = [1, 4096], strides = [1, 1]} : vector<4x4096xf32> to vector<1x4096xf32>
    %4 = vector.extract_strided_slice %0 {offsets = [3, 0], sizes = [1, 4096], strides = [1, 1]} : vector<4x4096xf32> to vector<1x4096xf32>
    %c0_1 = arith.constant 0 : index
    %c0_2 = arith.constant 0 : index
    %5 = vector.load %arg3[%c0_1, %c0_2] : memref<24x24xbf16, #tpu.memory_space<vmem>>, vector<24x24xbf16>
    %c0_3 = arith.constant 0 : index
    %c0_4 = arith.constant 0 : index
    %6 = vector.load %arg5[%c0_3, %c0_4] : memref<24x24xbf16, #tpu.memory_space<vmem>>, vector<24x24xbf16>
    %c0_5 = arith.constant 0 : index
    %c0_6 = arith.constant 0 : index
    %7 = vector.load %arg4[%c0_5, %c0_6] : memref<8x1xf32, #tpu.memory_space<vmem>>, vector<8x1xf32>
    %c0_7 = arith.constant 0 : index
    %c0_8 = arith.constant 0 : index
    %8 = vector.load %arg6[%c0_7, %c0_8] : memref<8x1xf32, #tpu.memory_space<vmem>>, vector<8x1xf32>
    %c0_9 = arith.constant 0 : index
    %c0_10 = arith.constant 0 : index
    %c0_11 = arith.constant 0 : index
    %9 = vector.load %arg2[%c0_9, %c0_10, %c0_11] : memref<1x8x4096xf32, #tpu.memory_space<vmem>>, vector<1x8x4096xf32>
    %10 = vector.shape_cast %9 : vector<1x8x4096xf32> to vector<8x4096xf32>
    %c1_i32 = arith.constant 1 : i32
    %11 = tpu.dynamic_rotate %10 by %c1_i32 dim 1 : vector<8x4096xf32>, i32 -> vector<8x4096xf32>
    %12 = vector.broadcast %1 : vector<1x4096xf32> to vector<8x4096xf32>
    %13 = arith.mulf %11, %12 : vector<8x4096xf32>
    %c4095_i32 = arith.constant 4095 : i32
    %14 = tpu.dynamic_rotate %10 by %c4095_i32 dim 1 : vector<8x4096xf32>, i32 -> vector<8x4096xf32>
    %15 = vector.broadcast %2 : vector<1x4096xf32> to vector<8x4096xf32>
    %16 = arith.mulf %14, %15 : vector<8x4096xf32>
    %17 = tpu.concatenate %13, %10, %16 in 0 : vector<8x4096xf32>, vector<8x4096xf32>, vector<8x4096xf32> -> vector<24x4096xf32>
    %18 = arith.truncf %17 : vector<24x4096xf32> to vector<24x4096xbf16>
    %cst = arith.constant dense<0.000000e+00> : vector<24x4096xf32>
    %19 = tpu.matmul %5, %18, %cst {dimension_numbers = #tpu.dot_dimension_numbers<[1], [0], [0], [1], [0, 0, 1, 1], [], []>} : vector<24x24xbf16>, vector<24x4096xbf16>, vector<24x4096xf32> -> vector<24x4096xf32>
    %20 = vector.extract_strided_slice %19 {offsets = [0, 0], sizes = [8, 4096], strides = [1, 1]} : vector<24x4096xf32> to vector<8x4096xf32>
    %c64_i32 = arith.constant 64 : i32
    %21 = tpu.dynamic_rotate %20 by %c64_i32 dim 1 : vector<8x4096xf32>, i32 -> vector<8x4096xf32>
    %22 = vector.broadcast %3 : vector<1x4096xf32> to vector<8x4096xf32>
    %23 = arith.mulf %21, %22 : vector<8x4096xf32>
    %24 = vector.extract_strided_slice %19 {offsets = [16, 0], sizes = [8, 4096], strides = [1, 1]} : vector<24x4096xf32> to vector<8x4096xf32>
    %c4032_i32 = arith.constant 4032 : i32
    %25 = tpu.dynamic_rotate %24 by %c4032_i32 dim 1 : vector<8x4096xf32>, i32 -> vector<8x4096xf32>
    %26 = vector.broadcast %4 : vector<1x4096xf32> to vector<8x4096xf32>
    %27 = arith.mulf %25, %26 : vector<8x4096xf32>
    %28 = vector.extract_strided_slice %19 {offsets = [8, 0], sizes = [8, 4096], strides = [1, 1]} : vector<24x4096xf32> to vector<8x4096xf32>
    %29 = vector.broadcast %7 : vector<8x1xf32> to vector<8x4096xf32>
    %30 = arith.addf %28, %29 : vector<8x4096xf32>
    %31 = arith.addf %23, %27 : vector<8x4096xf32>
    %32 = arith.addf %30, %31 : vector<8x4096xf32>
    %cst_12 = arith.constant 0.000000e+00 : f32
    %33 = vector.broadcast %cst_12 : f32 to vector<8x4096xf32>
    %34 = arith.maximumf %32, %33 : vector<8x4096xf32>
    %c1_i32_13 = arith.constant 1 : i32
    %35 = tpu.dynamic_rotate %34 by %c1_i32_13 dim 1 : vector<8x4096xf32>, i32 -> vector<8x4096xf32>
    %36 = vector.broadcast %1 : vector<1x4096xf32> to vector<8x4096xf32>
    %37 = arith.mulf %35, %36 : vector<8x4096xf32>
    %c4095_i32_14 = arith.constant 4095 : i32
    %38 = tpu.dynamic_rotate %34 by %c4095_i32_14 dim 1 : vector<8x4096xf32>, i32 -> vector<8x4096xf32>
    %39 = vector.broadcast %2 : vector<1x4096xf32> to vector<8x4096xf32>
    %40 = arith.mulf %38, %39 : vector<8x4096xf32>
    %41 = tpu.concatenate %37, %34, %40 in 0 : vector<8x4096xf32>, vector<8x4096xf32>, vector<8x4096xf32> -> vector<24x4096xf32>
    %42 = arith.truncf %41 : vector<24x4096xf32> to vector<24x4096xbf16>
    %cst_15 = arith.constant dense<0.000000e+00> : vector<24x4096xf32>
    %43 = tpu.matmul %6, %42, %cst_15 {dimension_numbers = #tpu.dot_dimension_numbers<[1], [0], [0], [1], [0, 0, 1, 1], [], []>} : vector<24x24xbf16>, vector<24x4096xbf16>, vector<24x4096xf32> -> vector<24x4096xf32>
    %44 = vector.extract_strided_slice %43 {offsets = [0, 0], sizes = [8, 4096], strides = [1, 1]} : vector<24x4096xf32> to vector<8x4096xf32>
    %c64_i32_16 = arith.constant 64 : i32
    %45 = tpu.dynamic_rotate %44 by %c64_i32_16 dim 1 : vector<8x4096xf32>, i32 -> vector<8x4096xf32>
    %46 = vector.broadcast %3 : vector<1x4096xf32> to vector<8x4096xf32>
    %47 = arith.mulf %45, %46 : vector<8x4096xf32>
    %48 = vector.extract_strided_slice %43 {offsets = [16, 0], sizes = [8, 4096], strides = [1, 1]} : vector<24x4096xf32> to vector<8x4096xf32>
    %c4032_i32_17 = arith.constant 4032 : i32
    %49 = tpu.dynamic_rotate %48 by %c4032_i32_17 dim 1 : vector<8x4096xf32>, i32 -> vector<8x4096xf32>
    %50 = vector.broadcast %4 : vector<1x4096xf32> to vector<8x4096xf32>
    %51 = arith.mulf %49, %50 : vector<8x4096xf32>
    %52 = vector.extract_strided_slice %43 {offsets = [8, 0], sizes = [8, 4096], strides = [1, 1]} : vector<24x4096xf32> to vector<8x4096xf32>
    %53 = vector.broadcast %8 : vector<8x1xf32> to vector<8x4096xf32>
    %54 = arith.addf %52, %53 : vector<8x4096xf32>
    %55 = arith.addf %47, %51 : vector<8x4096xf32>
    %56 = arith.addf %54, %55 : vector<8x4096xf32>
    %c0_18 = arith.constant 0 : index
    %c0_19 = arith.constant 0 : index
    %c0_20 = arith.constant 0 : index
    %57 = vector.load %arg7[%c0_18, %c0_19, %c0_20] : memref<1x8x4096xf32, #tpu.memory_space<vmem>>, vector<1x8x4096xf32>
    %58 = vector.shape_cast %57 : vector<1x8x4096xf32> to vector<8x4096xf32>
    %59 = vector.shape_cast %56 : vector<8x4096xf32> to vector<1x8x4096xf32>
    tpu.vector_store %arg7[%c0_18, %c0_19, %c0_20], %59 {strides = array<i32>} : memref<1x8x4096xf32, #tpu.memory_space<vmem>>, vector<1x8x4096xf32>,
    return
  }
  func.func @transform_0(%arg0: i32) -> (i32, i32) {
    %c0_i32 = arith.constant 0 : i32
    %c0_i32_0 = arith.constant 0 : i32
    %c0_i32_1 = arith.constant 0 : i32
    return %c0_i32, %c0_i32_0 : i32, i32
  }
  func.func @transform_1(%arg0: i32) -> (i32, i32, i32) {
    %c0_i32 = arith.constant 0 : i32
    %c0_i32_0 = arith.constant 0 : i32
    %c0_i32_1 = arith.constant 0 : i32
    return %arg0, %c0_i32, %c0_i32_0 : i32, i32, i32
  }
  func.func @transform_2(%arg0: i32) -> (i32, i32) {
    %c0_i32 = arith.constant 0 : i32
    %c0_i32_0 = arith.constant 0 : i32
    %c0_i32_1 = arith.constant 0 : i32
    return %c0_i32, %c0_i32_0 : i32, i32
  }
  func.func @transform_3(%arg0: i32) -> (i32, i32) {
    %c0_i32 = arith.constant 0 : i32
    %c0_i32_0 = arith.constant 0 : i32
    %c0_i32_1 = arith.constant 0 : i32
    return %c0_i32, %c0_i32_0 : i32, i32
  }
  func.func @transform_4(%arg0: i32) -> (i32, i32) {
    %c0_i32 = arith.constant 0 : i32
    %c0_i32_0 = arith.constant 0 : i32
    %c0_i32_1 = arith.constant 0 : i32
    return %c0_i32, %c0_i32_0 : i32, i32
  }
  func.func @transform_5(%arg0: i32) -> (i32, i32) {
    %c0_i32 = arith.constant 0 : i32
    %c0_i32_0 = arith.constant 0 : i32
    %c0_i32_1 = arith.constant 0 : i32
    return %c0_i32, %c0_i32_0 : i32, i32
  }
  func.func @transform_6(%arg0: i32) -> (i32, i32, i32) {
    %c0_i32 = arith.constant 0 : i32
    %c0_i32_0 = arith.constant 0 : i32
    %c0_i32_1 = arith.constant 0 : i32
    return %arg0, %c0_i32, %c0_i32_0 : i32, i32, i32
  }
}

</mosaic_0001>

<llo_original>
// kernel: tpu_custom_call.1
$region0: #{tpu_custom_call.1}
  #allocation0 [shape = 'u32[]', space=smem, size = 0x4, offset = 0x4, fixed_abs, tag = 'smem constant byte address 0x4 - core index']
  #allocation1 [shape = 'u32[144,128]{1,0:T(1,128)}', space=vmem, size = 0x12000, scoped, tag = 'internal scratch']
  %s0 = inlined_call_operand.hbm [shape: f32[4,4096], index: 0, kind: input, shape index: {}]
  %s1 = inlined_call_operand.hbm [shape: f32[2,8,4096], index: 1, kind: input, shape index: {}]
  %s2 = inlined_call_operand.vmem [shape: bf16[24,24], index: 2, kind: input, shape index: {}]
  %s3 = inlined_call_operand.vmem [shape: f32[8,1], index: 3, kind: input, shape index: {}]
  %s4 = inlined_call_operand.vmem [shape: bf16[24,24], index: 4, kind: input, shape index: {}]
  %s5 = inlined_call_operand.vmem [shape: f32[8,1], index: 5, kind: input, shape index: {}]
  %s6 = inlined_call_operand.hbm [shape: f32[2,8,4096], index: 6, kind: output, shape index: {}]
  %s7 = sld [smem:[#allocation0]]
  $region65: #{tpu_custom_call.1} parent=0
    _
  %s9 = ssub.s32 1, %s7
  %s10 = scalar_select 0, %s9, %s7
  $region1: #{tpu_custom_call.1} parent=0
    #allocation2 [shape = 'u8[65536]{0}', space=vmem, size = 0x10000, scoped, tag = 'input window, operand 0, single buffered']
    #allocation3 [shape = 's32[2]{0}', space=sflag, size = 0x8, scoped, tag = 'scoped memory for tpu_custom_call.1']
    #allocation4 [shape = 's32[2]{0}', space=sflag, size = 0x8, scoped, tag = 'scoped memory for tpu_custom_call.1']
    #allocation5 [shape = 'u8[262144]{0}', space=vmem, size = 0x40000, scoped, tag = 'input window, operand 1']
    #allocation6 [shape = 's32[2]{0}', space=sflag, size = 0x8, scoped, tag = 'scoped memory for tpu_custom_call.1']
    #allocation7 [shape = 'u8[262144]{0}', space=vmem, size = 0x40000, scoped, tag = 'output window, operand 0']
    %11 = vsyncpa [#allocation3], 0
    %12 = vsyncpa [#allocation6], 0
    %s13 = scalar_lea.sflag [#allocation6], 1
    %14 = vsyncpa %s13, 0
    %15 = vsyncpa [#allocation4], 0
    %s16 = scalar_lea.sflag [#allocation4], 1
    %17 = vsyncpa %s16, 0
    loop: start=0, step=1, limit=4
    $region2: #{tpu_custom_call.1} parent=1 // loop_pre_header
      _
    $region3: #{tpu_custom_call.1} parent=1 // loop_header
      %s19 = sphi 0, %s23
      %p20 = scmp.ge.s32.totalorder %s19, 4
      %s27 = sphi 0, %s27
      %s29 = sphi 0, %s27
      %s30 = sphi 0, %s29
      %s44 = sphi 0, %s30
      %s50 = sphi 0, %s52
      %s53 = sphi 0, %s50
      %s54 = sphi 0, %s53
      %s70 = sphi 0, %s54
      %s74 = sphi 0, %s74
      %s76 = sphi 0, %s74
      %s77 = sphi 0, %s76
      %s91 = sphi 0, %s77
      %s95 = sphi 0, %s95
      %s97 = sphi 0, %s95
      %s98 = sphi 0, %s97
      %s112 = sphi 0, %s98
      %s116 = sphi 0, %s116
      %s118 = sphi 0, %s116
      %s119 = sphi 0, %s118
      %s133 = sphi 0, %s119
      %s137 = sphi 0, %s137
      %s139 = sphi 0, %s137
      %s140 = sphi 0, %s139
      %s154 = sphi 0, %s140
      %s160 = sphi 0, %s162
      %s163 = sphi 0, %s160
      %s164 = sphi 0, %s163
      %s180 = sphi 0, %s164
    $region4: #{tpu_custom_call.1} parent=1 // loop_header_branch
      %22 = sbr.rel (%p20) target = $region8
    $region5: #{tpu_custom_call.1} parent=1 // loop_body
      %s24 = ssub.s32 %s19, 1
      %s25 = ssub.s32 %s19, 2
      %s26 = sadd.s32 %s19, 1
      %s28 = sadd.s32 %s27, 1
      %p31 = scmp.eq.s32.totalorder %s19, 1
      %p32 = scmp.ne.s32.totalorder %s27, %s29
      %p33 = scmp.eq.s32.totalorder %s19, 0
      %p34 = por %p32, %p33
      %p35 = scmp.ne.s32.totalorder %s27, %s29
      %p36 = scmp.eq.s32.totalorder %s24, 1
      %p37 = por %p35, %p36
      %p38 = scmp.ne.s32.totalorder %s29, %s30
      %p39 = scmp.eq.s32.totalorder %s24, 0
      %p40 = por %p38, %p39
      %p41 = scmp.ne.s32.totalorder %s29, %s30
      %p42 = scmp.eq.s32.totalorder %s25, 1
      %p43 = por %p41, %p42
      %p45 = scmp.ne.s32.totalorder %s30, %s44
      %p46 = scmp.eq.s32.totalorder %s25, 0
      %p47 = por %p45, %p46
      %s48 = ssub.s32 %s19, %s26
      %p49 = scmp.eq.s32.totalorder %s48, 0
      %s51 = sadd.s32 %s50, 1
      %s52 = scalar_select %p49, %s50, %s51
      %p55 = pneg %p49
      %p56 = scmp.eq.s32.totalorder %s19, 1
      %p57 = por %p55, %p56
      %p58 = scmp.ne.s32.totalorder %s50, %s53
      %p59 = scmp.eq.s32.totalorder %s19, 0
      %p60 = por %p58, %p59
      %p61 = scmp.ne.s32.totalorder %s50, %s53
      %p62 = scmp.eq.s32.totalorder %s24, 1
      %p63 = por %p61, %p62
      %p64 = scmp.ne.s32.totalorder %s53, %s54
      %p65 = scmp.eq.s32.totalorder %s24, 0
      %p66 = por %p64, %p65
      %p67 = scmp.ne.s32.totalorder %s53, %s54
      %p68 = scmp.eq.s32.totalorder %s25, 1
      %p69 = por %p67, %p68
      %p71 = scmp.ne.s32.totalorder %s54, %s70
      %p72 = scmp.eq.s32.totalorder %s25, 0
      %p73 = por %p71, %p72
      %s75 = sadd.s32 %s74, 1
      %p78 = scmp.eq.s32.totalorder %s19, 1
      %p79 = scmp.ne.s32.totalorder %s74, %s76
      %p80 = scmp.eq.s32.totalorder %s19, 0
      %p81 = por %p79, %p80
      %p82 = scmp.ne.s32.totalorder %s74, %s76
      %p83 = scmp.eq.s32.totalorder %s24, 1
      %p84 = por %p82, %p83
      %p85 = scmp.ne.s32.totalorder %s76, %s77
      %p86 = scmp.eq.s32.totalorder %s24, 0
      %p87 = por %p85, %p86
      %p88 = scmp.ne.s32.totalorder %s76, %s77
      %p89 = scmp.eq.s32.totalorder %s25, 1
      %p90 = por %p88, %p89
      %p92 = scmp.ne.s32.totalorder %s77, %s91
      %p93 = scmp.eq.s32.totalorder %s25, 0
      %p94 = por %p92, %p93
      %s96 = sadd.s32 %s95, 1
      %p99 = scmp.eq.s32.totalorder %s19, 1
      %p100 = scmp.ne.s32.totalorder %s95, %s97
      %p101 = scmp.eq.s32.totalorder %s19, 0
      %p102 = por %p100, %p101
      %p103 = scmp.ne.s32.totalorder %s95, %s97
      %p104 = scmp.eq.s32.totalorder %s24, 1
      %p105 = por %p103, %p104
      %p106 = scmp.ne.s32.totalorder %s97, %s98
      %p107 = scmp.eq.s32.totalorder %s24, 0
      %p108 = por %p106, %p107
      %p109 = scmp.ne.s32.totalorder %s97, %s98
      %p110 = scmp.eq.s32.totalorder %s25, 1
      %p111 = por %p109, %p110
      %p113 = scmp.ne.s32.totalorder %s98, %s112
      %p114 = scmp.eq.s32.totalorder %s25, 0
      %p115 = por %p113, %p114
      %s117 = sadd.s32 %s116, 1
      %p120 = scmp.eq.s32.totalorder %s19, 1
      %p121 = scmp.ne.s32.totalorder %s116, %s118
      %p122 = scmp.eq.s32.totalorder %s19, 0
      %p123 = por %p121, %p122
      %p124 = scmp.ne.s32.totalorder %s116, %s118
      %p125 = scmp.eq.s32.totalorder %s24, 1
      %p126 = por %p124, %p125
      %p127 = scmp.ne.s32.totalorder %s118, %s119
      %p128 = scmp.eq.s32.totalorder %s24, 0
      %p129 = por %p127, %p128
      %p130 = scmp.ne.s32.totalorder %s118, %s119
      %p131 = scmp.eq.s32.totalorder %s25, 1
      %p132 = por %p130, %p131
      %p134 = scmp.ne.s32.totalorder %s119, %s133
      %p135 = scmp.eq.s32.totalorder %s25, 0
      %p136 = por %p134, %p135
      %s138 = sadd.s32 %s137, 1
      %p141 = scmp.eq.s32.totalorder %s19, 1
      %p142 = scmp.ne.s32.totalorder %s137, %s139
      %p143 = scmp.eq.s32.totalorder %s19, 0
      %p144 = por %p142, %p143
      %p145 = scmp.ne.s32.totalorder %s137, %s139
      %p146 = scmp.eq.s32.totalorder %s24, 1
      %p147 = por %p145, %p146
      %p148 = scmp.ne.s32.totalorder %s139, %s140
      %p149 = scmp.eq.s32.totalorder %s24, 0
      %p150 = por %p148, %p149
      %p151 = scmp.ne.s32.totalorder %s139, %s140
      %p152 = scmp.eq.s32.totalorder %s25, 1
      %p153 = por %p151, %p152
      %p155 = scmp.ne.s32.totalorder %s140, %s154
      %p156 = scmp.eq.s32.totalorder %s25, 0
      %p157 = por %p155, %p156
      %s158 = ssub.s32 %s19, %s26
      %p159 = scmp.eq.s32.totalorder %s158, 0
      %s161 = sadd.s32 %s160, 1
      %s162 = scalar_select %p159, %s160, %s161
      %p165 = pneg %p159
      %p166 = scmp.eq.s32.totalorder %s19, 1
      %p167 = por %p165, %p166
      %p168 = scmp.ne.s32.totalorder %s160, %s163
      %p169 = scmp.eq.s32.totalorder %s19, 0
      %p170 = por %p168, %p169
      %p171 = scmp.ne.s32.totalorder %s160, %s163
      %p172 = scmp.eq.s32.totalorder %s24, 1
      %p173 = por %p171, %p172
      %p174 = scmp.ne.s32.totalorder %s163, %s164
      %p175 = scmp.eq.s32.totalorder %s24, 0
      %p176 = por %p174, %p175
      %p177 = scmp.ne.s32.totalorder %s163, %s164
      %p178 = scmp.eq.s32.totalorder %s25, 1
      %p179 = por %p177, %p178
      %p181 = scmp.ne.s32.totalorder %s164, %s180
      %p182 = scmp.eq.s32.totalorder %s25, 0
      %p183 = por %p181, %p182
      %p184 = scmp.le.s32.totalorder 1, %s19
      %p185 = scmp.lt.s32.totalorder %s19, 3
      %p186 = pnand %p184, %p185
      %p187 = pneg %p186
      // Predicated region
      $region9: #{tpu_custom_call.1} parent=5 // pred_check
        _
      $region10: #{tpu_custom_call.1} parent=5 // pred_check_branch
        %189 = sbr.rel (%p186) target = $region12
      $region11: #{tpu_custom_call.1} parent=5 // pred_region
        %s190 = ssub.s32 %s19, 1
        // Predicated region
        $region13: #{tpu_custom_call.1} parent=11 // pred_check
          %p191 = pneg %p40
        $region14: #{tpu_custom_call.1} parent=11 // pred_check_branch
          %193 = sbr.rel (%p191) target = $region16
        $region15: #{tpu_custom_call.1} parent=11 // pred_region
          %s195 = ssub.s32 2048, 2048
          %196 = vsyncadd [#allocation3], %s195
          %s198 = sshll.u32 [#allocation2], 4
          %s199 = int_to_ptr.vmem [resolvable:$true] %s198
          %201 = dma.hbm_to_vmem [thread:$0]  %s0, 2048, %s199, [#allocation3]
        $region16: #{tpu_custom_call.1} parent=11 // pred_fallthru
          _
        // Predicated region
        $region17: #{tpu_custom_call.1} parent=11 // pred_check
          %p202 = pneg %p87
        $region18: #{tpu_custom_call.1} parent=11 // pred_check_branch
          %204 = sbr.rel (%p202) target = $region20
        $region19: #{tpu_custom_call.1} parent=11 // pred_region
          _
        $region20: #{tpu_custom_call.1} parent=11 // pred_fallthru
          _
        // Predicated region
        $region21: #{tpu_custom_call.1} parent=11 // pred_check
          %p205 = pneg %p108
        $region22: #{tpu_custom_call.1} parent=11 // pred_check_branch
          %207 = sbr.rel (%p205) target = $region24
        $region23: #{tpu_custom_call.1} parent=11 // pred_region
          _
        $region24: #{tpu_custom_call.1} parent=11 // pred_fallthru
          _
        // Predicated region
        $region25: #{tpu_custom_call.1} parent=11 // pred_check
          %p208 = pneg %p129
        $region26: #{tpu_custom_call.1} parent=11 // pred_check_branch
          %210 = sbr.rel (%p208) target = $region28
        $region27: #{tpu_custom_call.1} parent=11 // pred_region
          _
        $region28: #{tpu_custom_call.1} parent=11 // pred_fallthru
          _
        // Predicated region
        $region29: #{tpu_custom_call.1} parent=11 // pred_check
          %p211 = pneg %p150
        $region30: #{tpu_custom_call.1} parent=11 // pred_check_branch
          %213 = sbr.rel (%p211) target = $region32
        $region31: #{tpu_custom_call.1} parent=11 // pred_region
          _
        $region32: #{tpu_custom_call.1} parent=11 // pred_fallthru
          _
      $region12: #{tpu_custom_call.1} parent=5 // pred_fallthru
        _
      %p214 = scmp.lt.s32.totalorder %s19, 2
      // Predicated region
      $region33: #{tpu_custom_call.1} parent=5 // pred_check
        %p215 = pneg %p214
      $region34: #{tpu_custom_call.1} parent=5 // pred_check_branch
        %217 = sbr.rel (%p215) target = $region36
      $region35: #{tpu_custom_call.1} parent=5 // pred_region
        // Predicated region
        $region37: #{tpu_custom_call.1} parent=35 // pred_check
          %p218 = pneg %p60
        $region38: #{tpu_custom_call.1} parent=35 // pred_check_branch
          %220 = sbr.rel (%p218) target = $region40
        $region39: #{tpu_custom_call.1} parent=35 // pred_region
          %s221 = sand.u32 %s50, 1
          %s222 = scalar_lea.sflag [#allocation6], %s221
          %s223 = sand.u32 %s50, 1
          %s224 = smul.addr %s223, 256
          %s225 = scalar_lea.vmem [#allocation5], %s224
          %s227 = ssub.s32 4096, 4096
          %228 = vsyncadd %s222, %s227
          %s229 = smul.addr %s19, 32
          %s230 = smul.addr %s229, 128
          %s231 = scalar_lea.hbm %s1, %s230
          %s233 = sshll.u32 %s225, 4
          %s234 = int_to_ptr.vmem [resolvable:$true] %s233
          %236 = dma.hbm_to_vmem [thread:$0]  %s231, 4096, %s234, %s222
        $region40: #{tpu_custom_call.1} parent=35 // pred_fallthru
          _
      $region36: #{tpu_custom_call.1} parent=5 // pred_fallthru
        _
      %p237 = scmp.le.s32.totalorder 1, %s19
      %p238 = scmp.lt.s32.totalorder %s19, 3
      %p239 = pnand %p237, %p238
      %p240 = pneg %p239
      // Predicated region
      $region41: #{tpu_custom_call.1} parent=5 // pred_check
        _
      $region42: #{tpu_custom_call.1} parent=5 // pred_check_branch
        %242 = sbr.rel (%p239) target = $region44
      $region43: #{tpu_custom_call.1} parent=5 // pred_region
        %s243 = ssub.s32 %s19, 1
        // Predicated region
        $region45: #{tpu_custom_call.1} parent=43 // pred_check
          %p244 = pneg %p40
        $region46: #{tpu_custom_call.1} parent=43 // pred_check_branch
          %246 = sbr.rel (%p244) target = $region48
        $region47: #{tpu_custom_call.1} parent=43 // pred_region
          %247 = dma.done [#allocation3], 2048
        $region48: #{tpu_custom_call.1} parent=43 // pred_fallthru
          _
        %s248 = sand.u32 %s53, 1
        %s249 = scalar_lea.sflag [#allocation6], %s248
        %s250 = sand.u32 %s53, 1
        %s251 = smul.addr %s250, 256
        %s252 = scalar_lea.vmem [#allocation5], %s251
        // Predicated region
        $region49: #{tpu_custom_call.1} parent=43 // pred_check
          %p253 = pneg %p66
        $region50: #{tpu_custom_call.1} parent=43 // pred_check_branch
          %255 = sbr.rel (%p253) target = $region52
        $region51: #{tpu_custom_call.1} parent=43 // pred_region
          %256 = dma.done %s249, 4096
        $region52: #{tpu_custom_call.1} parent=43 // pred_fallthru
          _
        %p257 = pneg %p40
        %p258 = pneg %p37
        %s259 = sand.u32 %s53, 1
        %s260 = scalar_lea.sflag [#allocation6], %s259
        %s261 = sand.u32 %s53, 1
        %s262 = smul.addr %s261, 256
        %s263 = scalar_lea.vmem [#allocation5], %s262
        %p264 = pneg %p66
        %p265 = pneg %p63
        %p266 = pneg %p87
        %p267 = pneg %p84
        %p268 = pneg %p108
        %p269 = pneg %p105
        %p270 = pneg %p129
        %p271 = pneg %p126
        %p272 = pneg %p150
        %p273 = pneg %p147
        %p274 = pneg %p176
        %p275 = pneg %p173
        %s276 = sand.u32 %s163, 1
        %s277 = scalar_lea.sflag [#allocation4], %s276
        %s278 = sand.u32 %s163, 1
        %s279 = smul.addr %s278, 256
        %s280 = scalar_lea.vmem [#allocation7], %s279
        %v282 = vld [vmem:[#allocation2] sm:$0xff]
        %v283 = vld [vmem:[#allocation2 + $0x8] sm:$0xff]
        %v284 = vld [vmem:[#allocation2 + $0x10] sm:$0xff]
        %v285 = vld [vmem:[#allocation2 + $0x18] sm:$0xff]
        %v286 = vld [vmem:[#allocation2 + $0x20] sm:$0xff]
        %v287 = vld [vmem:[#allocation2 + $0x28] sm:$0xff]
        %v288 = vld [vmem:[#allocation2 + $0x30] sm:$0xff]
        %v289 = vld [vmem:[#allocation2 + $0x38] sm:$0xff]
        %v290 = vld [vmem:[#allocation2 + $0x40] sm:$0xff]
        %v291 = vld [vmem:[#allocation2 + $0x48] sm:$0xff]
        %v292 = vld [vmem:[#allocation2 + $0x50] sm:$0xff]
        %v293 = vld [vmem:[#allocation2 + $0x58] sm:$0xff]
        %v294 = vld [vmem:[#allocation2 + $0x60] sm:$0xff]
        %v295 = vld [vmem:[#allocation2 + $0x68] sm:$0xff]
        %v296 = vld [vmem:[#allocation2 + $0x70] sm:$0xff]
        %v297 = vld [vmem:[#allocation2 + $0x78] sm:$0xff]
        %v298 = vld [vmem:[%s2] sm:$0xf]
        %v299 = vld [vmem:[%s2 + $0x4] sm:$0xf]
        %v300 = vld [vmem:[%s2 + $0x8] sm:$0xf]
        %v301 = vld [vmem:[%s4] sm:$0xf]
        %v302 = vld [vmem:[%s4 + $0x4] sm:$0xf]
        %v303 = vld [vmem:[%s4 + $0x8] sm:$0xf]
        %v304 = vld [vmem:[%s3] sm:$0xff]
        %v305 = vld [vmem:[%s5] sm:$0xff]
        %v306 = vld [vmem:[%s252] sm:$0xff]
        %v307 = vld [vmem:[%s252 + $0x8] sm:$0xff]
        %v308 = vld [vmem:[%s252 + $0x10] sm:$0xff]
        %v309 = vld [vmem:[%s252 + $0x18] sm:$0xff]
        %v310 = vld [vmem:[%s252 + $0x20] sm:$0xff]
        %v311 = vld [vmem:[%s252 + $0x28] sm:$0xff]
        %v312 = vld [vmem:[%s252 + $0x30] sm:$0xff]
        %v313 = vld [vmem:[%s252 + $0x38] sm:$0xff]
        %v314 = vld [vmem:[%s252 + $0x40] sm:$0xff]
        %v315 = vld [vmem:[%s252 + $0x48] sm:$0xff]
        %v316 = vld [vmem:[%s252 + $0x50] sm:$0xff]
        %v317 = vld [vmem:[%s252 + $0x58] sm:$0xff]
        %v318 = vld [vmem:[%s252 + $0x60] sm:$0xff]
        %v319 = vld [vmem:[%s252 + $0x68] sm:$0xff]
        %v320 = vld [vmem:[%s252 + $0x70] sm:$0xff]
        %v321 = vld [vmem:[%s252 + $0x78] sm:$0xff]
        %v322 = vld [vmem:[%s252 + $0x80] sm:$0xff]
        %v323 = vld [vmem:[%s252 + $0x88] sm:$0xff]
        %v324 = vld [vmem:[%s252 + $0x90] sm:$0xff]
        %v325 = vld [vmem:[%s252 + $0x98] sm:$0xff]
        %v326 = vld [vmem:[%s252 + $0xa0] sm:$0xff]
        %v327 = vld [vmem:[%s252 + $0xa8] sm:$0xff]
        %v328 = vld [vmem:[%s252 + $0xb0] sm:$0xff]
        %v329 = vld [vmem:[%s252 + $0xb8] sm:$0xff]
        %v330 = vld [vmem:[%s252 + $0xc0] sm:$0xff]
        %v331 = vld [vmem:[%s252 + $0xc8] sm:$0xff]
        %v332 = vld [vmem:[%s252 + $0xd0] sm:$0xff]
        %v333 = vld [vmem:[%s252 + $0xd8] sm:$0xff]
        %v334 = vld [vmem:[%s252 + $0xe0] sm:$0xff]
        %v335 = vld [vmem:[%s252 + $0xe8] sm:$0xff]
        %v336 = vld [vmem:[%s252 + $0xf0] sm:$0xff]
        %v337 = vld [vmem:[%s252 + $0xf8] sm:$0xff]
        %338 = vrot.lane.b32.xlu0 %v306, 1
        %v339 = vpop.permute.xlu0 %338
        %340 = vrot.lane.b32.xlu0 %v307, 1
        %v341 = vpop.permute.xlu0 %340
        %342 = vrot.lane.b32.xlu0 %v308, 1
        %v343 = vpop.permute.xlu0 %342
        %344 = vrot.lane.b32.xlu0 %v309, 1
        %v345 = vpop.permute.xlu0 %344
        %346 = vrot.lane.b32.xlu0 %v310, 1
        %v347 = vpop.permute.xlu0 %346
        %348 = vrot.lane.b32.xlu0 %v311, 1
        %v349 = vpop.permute.xlu0 %348
        %350 = vrot.lane.b32.xlu0 %v312, 1
        %v351 = vpop.permute.xlu0 %350
        %352 = vrot.lane.b32.xlu0 %v313, 1
        %v353 = vpop.permute.xlu0 %352
        %354 = vrot.lane.b32.xlu0 %v314, 1
        %v355 = vpop.permute.xlu0 %354
        %356 = vrot.lane.b32.xlu0 %v315, 1
        %v357 = vpop.permute.xlu0 %356
        %358 = vrot.lane.b32.xlu0 %v316, 1
        %v359 = vpop.permute.xlu0 %358
        %360 = vrot.lane.b32.xlu0 %v317, 1
        %v361 = vpop.permute.xlu0 %360
        %362 = vrot.lane.b32.xlu0 %v318, 1
        %v363 = vpop.permute.xlu0 %362
        %364 = vrot.lane.b32.xlu0 %v319, 1
        %v365 = vpop.permute.xlu0 %364
        %366 = vrot.lane.b32.xlu0 %v320, 1
        %v367 = vpop.permute.xlu0 %366
        %368 = vrot.lane.b32.xlu0 %v321, 1
        %v369 = vpop.permute.xlu0 %368
        %370 = vrot.lane.b32.xlu0 %v322, 1
        %v371 = vpop.permute.xlu0 %370
        %372 = vrot.lane.b32.xlu0 %v323, 1
        %v373 = vpop.permute.xlu0 %372
        %374 = vrot.lane.b32.xlu0 %v324, 1
        %v375 = vpop.permute.xlu0 %374
        %376 = vrot.lane.b32.xlu0 %v325, 1
        %v377 = vpop.permute.xlu0 %376
        %378 = vrot.lane.b32.xlu0 %v326, 1
        %v379 = vpop.permute.xlu0 %378
        %380 = vrot.lane.b32.xlu0 %v327, 1
        %v381 = vpop.permute.xlu0 %380
        %382 = vrot.lane.b32.xlu0 %v328, 1
        %v383 = vpop.permute.xlu0 %382
        %384 = vrot.lane.b32.xlu0 %v329, 1
        %v385 = vpop.permute.xlu0 %384
        %386 = vrot.lane.b32.xlu0 %v330, 1
        %v387 = vpop.permute.xlu0 %386
        %388 = vrot.lane.b32.xlu0 %v331, 1
        %v389 = vpop.permute.xlu0 %388
        %390 = vrot.lane.b32.xlu0 %v332, 1
        %v391 = vpop.permute.xlu0 %390
        %392 = vrot.lane.b32.xlu0 %v333, 1
        %v393 = vpop.permute.xlu0 %392
        %394 = vrot.lane.b32.xlu0 %v334, 1
        %v395 = vpop.permute.xlu0 %394
        %396 = vrot.lane.b32.xlu0 %v335, 1
        %v397 = vpop.permute.xlu0 %396
        %398 = vrot.lane.b32.xlu0 %v336, 1
        %v399 = vpop.permute.xlu0 %398
        %400 = vrot.lane.b32.xlu0 %v337, 1
        %v401 = vpop.permute.xlu0 %400
        %v402 = vlaneseq
        %v403 = vand.u32 %v402, 127
        %vm404 = vcmp.lt.s32.totalorder %v403, 1
        %v405 = vsel %vm404, %v399, %v401
        %v406 = vsel %vm404, %v397, %v399
        %v407 = vsel %vm404, %v395, %v397
        %v408 = vsel %vm404, %v393, %v395
        %v409 = vsel %vm404, %v391, %v393
        %v410 = vsel %vm404, %v389, %v391
        %v411 = vsel %vm404, %v387, %v389
        %v412 = vsel %vm404, %v385, %v387
        %v413 = vsel %vm404, %v383, %v385
        %v414 = vsel %vm404, %v381, %v383
        %v415 = vsel %vm404, %v379, %v381
        %v416 = vsel %vm404, %v377, %v379
        %v417 = vsel %vm404, %v375, %v377
        %v418 = vsel %vm404, %v373, %v375
        %v419 = vsel %vm404, %v371, %v373
        %v420 = vsel %vm404, %v369, %v371
        %v421 = vsel %vm404, %v367, %v369
        %v422 = vsel %vm404, %v365, %v367
        %v423 = vsel %vm404, %v363, %v365
        %v424 = vsel %vm404, %v361, %v363
        %v425 = vsel %vm404, %v359, %v361
        %v426 = vsel %vm404, %v357, %v359
        %v427 = vsel %vm404, %v355, %v357
        %v428 = vsel %vm404, %v353, %v355
        %v429 = vsel %vm404, %v351, %v353
        %v430 = vsel %vm404, %v349, %v351
        %v431 = vsel %vm404, %v347, %v349
        %v432 = vsel %vm404, %v345, %v347
        %v433 = vsel %vm404, %v343, %v345
        %v434 = vsel %vm404, %v341, %v343
        %v435 = vsel %vm404, %v339, %v341
        %v436 = vsel %vm404, %v401, %v339
        %v453 = vlaneseq
        %v454 = vshrl.u32 %v453, 7
        %v455 = vsub.s32 0, %v454
        %v456 = vrot.slane %v282, %v455
        %v457 = vlaneseq
        %v458 = vshrl.u32 %v457, 7
        %v459 = vsub.s32 4, %v458
        %v460 = vrot.slane %v282, %v459
        %v461 = vlaneseq
        %v462 = vshrl.u32 %v461, 7
        %v463 = vsub.s32 0, %v462
        %v464 = vrot.slane %v283, %v463
        %v465 = vlaneseq
        %v466 = vshrl.u32 %v465, 7
        %v467 = vsub.s32 4, %v466
        %v468 = vrot.slane %v283, %v467
        %v469 = vlaneseq
        %v470 = vshrl.u32 %v469, 7
        %v471 = vsub.s32 0, %v470
        %v472 = vrot.slane %v284, %v471
        %v473 = vlaneseq
        %v474 = vshrl.u32 %v473, 7
        %v475 = vsub.s32 4, %v474
        %v476 = vrot.slane %v284, %v475
        %v477 = vlaneseq
        %v478 = vshrl.u32 %v477, 7
        %v479 = vsub.s32 0, %v478
        %v480 = vrot.slane %v285, %v479
        %v481 = vlaneseq
        %v482 = vshrl.u32 %v481, 7
        %v483 = vsub.s32 4, %v482
        %v484 = vrot.slane %v285, %v483
        %v485 = vlaneseq
        %v486 = vshrl.u32 %v485, 7
        %v487 = vsub.s32 0, %v486
        %v488 = vrot.slane %v286, %v487
        %v489 = vlaneseq
        %v490 = vshrl.u32 %v489, 7
        %v491 = vsub.s32 4, %v490
        %v492 = vrot.slane %v286, %v491
        %v493 = vlaneseq
        %v494 = vshrl.u32 %v493, 7
        %v495 = vsub.s32 0, %v494
        %v496 = vrot.slane %v287, %v495
        %v497 = vlaneseq
        %v498 = vshrl.u32 %v497, 7
        %v499 = vsub.s32 4, %v498
        %v500 = vrot.slane %v287, %v499
        %v501 = vlaneseq
        %v502 = vshrl.u32 %v501, 7
        %v503 = vsub.s32 0, %v502
        %v504 = vrot.slane %v288, %v503
        %v505 = vlaneseq
        %v506 = vshrl.u32 %v505, 7
        %v507 = vsub.s32 4, %v506
        %v508 = vrot.slane %v288, %v507
        %v509 = vlaneseq
        %v510 = vshrl.u32 %v509, 7
        %v511 = vsub.s32 0, %v510
        %v512 = vrot.slane %v289, %v511
        %v513 = vlaneseq
        %v514 = vshrl.u32 %v513, 7
        %v515 = vsub.s32 4, %v514
        %v516 = vrot.slane %v289, %v515
        %v517 = vlaneseq
        %v518 = vshrl.u32 %v517, 7
        %v519 = vsub.s32 0, %v518
        %v520 = vrot.slane %v290, %v519
        %v521 = vlaneseq
        %v522 = vshrl.u32 %v521, 7
        %v523 = vsub.s32 4, %v522
        %v524 = vrot.slane %v290, %v523
        %v525 = vlaneseq
        %v526 = vshrl.u32 %v525, 7
        %v527 = vsub.s32 0, %v526
        %v528 = vrot.slane %v291, %v527
        %v529 = vlaneseq
        %v530 = vshrl.u32 %v529, 7
        %v531 = vsub.s32 4, %v530
        %v532 = vrot.slane %v291, %v531
        %v533 = vlaneseq
        %v534 = vshrl.u32 %v533, 7
        %v535 = vsub.s32 0, %v534
        %v536 = vrot.slane %v292, %v535
        %v537 = vlaneseq
        %v538 = vshrl.u32 %v537, 7
        %v539 = vsub.s32 4, %v538
        %v540 = vrot.slane %v292, %v539
        %v541 = vlaneseq
        %v542 = vshrl.u32 %v541, 7
        %v543 = vsub.s32 0, %v542
        %v544 = vrot.slane %v293, %v543
        %v545 = vlaneseq
        %v546 = vshrl.u32 %v545, 7
        %v547 = vsub.s32 4, %v546
        %v548 = vrot.slane %v293, %v547
        %v549 = vlaneseq
        %v550 = vshrl.u32 %v549, 7
        %v551 = vsub.s32 0, %v550
        %v552 = vrot.slane %v294, %v551
        %v553 = vlaneseq
        %v554 = vshrl.u32 %v553, 7
        %v555 = vsub.s32 4, %v554
        %v556 = vrot.slane %v294, %v555
        %v557 = vlaneseq
        %v558 = vshrl.u32 %v557, 7
        %v559 = vsub.s32 0, %v558
        %v560 = vrot.slane %v295, %v559
        %v561 = vlaneseq
        %v562 = vshrl.u32 %v561, 7
        %v563 = vsub.s32 4, %v562
        %v564 = vrot.slane %v295, %v563
        %v565 = vlaneseq
        %v566 = vshrl.u32 %v565, 7
        %v567 = vsub.s32 0, %v566
        %v568 = vrot.slane %v296, %v567
        %v569 = vlaneseq
        %v570 = vshrl.u32 %v569, 7
        %v571 = vsub.s32 4, %v570
        %v572 = vrot.slane %v296, %v571
        %v573 = vlaneseq
        %v574 = vshrl.u32 %v573, 7
        %v575 = vsub.s32 0, %v574
        %v576 = vrot.slane %v297, %v575
        %v577 = vlaneseq
        %v578 = vshrl.u32 %v577, 7
        %v579 = vsub.s32 4, %v578
        %v580 = vrot.slane %v297, %v579
        %v613 = vlaneseq
        %v614 = vshrl.u32 %v613, 7
        %v615 = vsub.s32 0, %v614
        %v616 = vrot.slane %v456, %v615
        %v617 = vlaneseq
        %v618 = vshrl.u32 %v617, 7
        %v619 = vsub.s32 0, %v618
        %v620 = vrot.slane %v460, %v619
        %v621 = vlaneseq
        %v622 = vshrl.u32 %v621, 7
        %v623 = vsub.s32 0, %v622
        %v624 = vrot.slane %v464, %v623
        %v625 = vlaneseq
        %v626 = vshrl.u32 %v625, 7
        %v627 = vsub.s32 0, %v626
        %v628 = vrot.slane %v468, %v627
        %v629 = vlaneseq
        %v630 = vshrl.u32 %v629, 7
        %v631 = vsub.s32 0, %v630
        %v632 = vrot.slane %v472, %v631
        %v633 = vlaneseq
        %v634 = vshrl.u32 %v633, 7
        %v635 = vsub.s32 0, %v634
        %v636 = vrot.slane %v476, %v635
        %v637 = vlaneseq
        %v638 = vshrl.u32 %v637, 7
        %v639 = vsub.s32 0, %v638
        %v640 = vrot.slane %v480, %v639
        %v641 = vlaneseq
        %v642 = vshrl.u32 %v641, 7
        %v643 = vsub.s32 0, %v642
        %v644 = vrot.slane %v484, %v643
        %v645 = vlaneseq
        %v646 = vshrl.u32 %v645, 7
        %v647 = vsub.s32 0, %v646
        %v648 = vrot.slane %v488, %v647
        %v649 = vlaneseq
        %v650 = vshrl.u32 %v649, 7
        %v651 = vsub.s32 0, %v650
        %v652 = vrot.slane %v492, %v651
        %v653 = vlaneseq
        %v654 = vshrl.u32 %v653, 7
        %v655 = vsub.s32 0, %v654
        %v656 = vrot.slane %v496, %v655
        %v657 = vlaneseq
        %v658 = vshrl.u32 %v657, 7
        %v659 = vsub.s32 0, %v658
        %v660 = vrot.slane %v500, %v659
        %v661 = vlaneseq
        %v662 = vshrl.u32 %v661, 7
        %v663 = vsub.s32 0, %v662
        %v664 = vrot.slane %v504, %v663
        %v665 = vlaneseq
        %v666 = vshrl.u32 %v665, 7
        %v667 = vsub.s32 0, %v666
        %v668 = vrot.slane %v508, %v667
        %v669 = vlaneseq
        %v670 = vshrl.u32 %v669, 7
        %v671 = vsub.s32 0, %v670
        %v672 = vrot.slane %v512, %v671
        %v673 = vlaneseq
        %v674 = vshrl.u32 %v673, 7
        %v675 = vsub.s32 0, %v674
        %v676 = vrot.slane %v516, %v675
        %v677 = vlaneseq
        %v678 = vshrl.u32 %v677, 7
        %v679 = vsub.s32 0, %v678
        %v680 = vrot.slane %v520, %v679
        %v681 = vlaneseq
        %v682 = vshrl.u32 %v681, 7
        %v683 = vsub.s32 0, %v682
        %v684 = vrot.slane %v524, %v683
        %v685 = vlaneseq
        %v686 = vshrl.u32 %v685, 7
        %v687 = vsub.s32 0, %v686
        %v688 = vrot.slane %v528, %v687
        %v689 = vlaneseq
        %v690 = vshrl.u32 %v689, 7
        %v691 = vsub.s32 0, %v690
        %v692 = vrot.slane %v532, %v691
        %v693 = vlaneseq
        %v694 = vshrl.u32 %v693, 7
        %v695 = vsub.s32 0, %v694
        %v696 = vrot.slane %v536, %v695
        %v697 = vlaneseq
        %v698 = vshrl.u32 %v697, 7
        %v699 = vsub.s32 0, %v698
        %v700 = vrot.slane %v540, %v699
        %v701 = vlaneseq
        %v702 = vshrl.u32 %v701, 7
        %v703 = vsub.s32 0, %v702
        %v704 = vrot.slane %v544, %v703
        %v705 = vlaneseq
        %v706 = vshrl.u32 %v705, 7
        %v707 = vsub.s32 0, %v706
        %v708 = vrot.slane %v548, %v707
        %v709 = vlaneseq
        %v710 = vshrl.u32 %v709, 7
        %v711 = vsub.s32 0, %v710
        %v712 = vrot.slane %v552, %v711
        %v713 = vlaneseq
        %v714 = vshrl.u32 %v713, 7
        %v715 = vsub.s32 0, %v714
        %v716 = vrot.slane %v556, %v715
        %v717 = vlaneseq
        %v718 = vshrl.u32 %v717, 7
        %v719 = vsub.s32 0, %v718
        %v720 = vrot.slane %v560, %v719
        %v721 = vlaneseq
        %v722 = vshrl.u32 %v721, 7
        %v723 = vsub.s32 0, %v722
        %v724 = vrot.slane %v564, %v723
        %v725 = vlaneseq
        %v726 = vshrl.u32 %v725, 7
        %v727 = vsub.s32 0, %v726
        %v728 = vrot.slane %v568, %v727
        %v729 = vlaneseq
        %v730 = vshrl.u32 %v729, 7
        %v731 = vsub.s32 0, %v730
        %v732 = vrot.slane %v572, %v731
        %v733 = vlaneseq
        %v734 = vshrl.u32 %v733, 7
        %v735 = vsub.s32 0, %v734
        %v736 = vrot.slane %v576, %v735
        %v737 = vlaneseq
        %v738 = vshrl.u32 %v737, 7
        %v739 = vsub.s32 0, %v738
        %v740 = vrot.slane %v580, %v739
        %v741 = vmul.f32 %v436, %v616
        %v742 = vmul.f32 %v435, %v620
        %v743 = vmul.f32 %v434, %v624
        %v744 = vmul.f32 %v433, %v628
        %v745 = vmul.f32 %v432, %v632
        %v746 = vmul.f32 %v431, %v636
        %v747 = vmul.f32 %v430, %v640
        %v748 = vmul.f32 %v429, %v644
        %v749 = vmul.f32 %v428, %v648
        %v750 = vmul.f32 %v427, %v652
        %v751 = vmul.f32 %v426, %v656
        %v752 = vmul.f32 %v425, %v660
        %v753 = vmul.f32 %v424, %v664
        %v754 = vmul.f32 %v423, %v668
        %v755 = vmul.f32 %v422, %v672
        %v756 = vmul.f32 %v421, %v676
        %v757 = vmul.f32 %v420, %v680
        %v758 = vmul.f32 %v419, %v684
        %v759 = vmul.f32 %v418, %v688
        %v760 = vmul.f32 %v417, %v692
        %v761 = vmul.f32 %v416, %v696
        %v762 = vmul.f32 %v415, %v700
        %v763 = vmul.f32 %v414, %v704
        %v764 = vmul.f32 %v413, %v708
        %v765 = vmul.f32 %v412, %v712
        %v766 = vmul.f32 %v411, %v716
        %v767 = vmul.f32 %v410, %v720
        %v768 = vmul.f32 %v409, %v724
        %v769 = vmul.f32 %v408, %v728
        %v770 = vmul.f32 %v407, %v732
        %v771 = vmul.f32 %v406, %v736
        %v772 = vmul.f32 %v405, %v740
        %773 = vrot.lane.b32.xlu0 %v306, 127
        %v774 = vpop.permute.xlu0 %773
        %775 = vrot.lane.b32.xlu0 %v307, 127
        %v776 = vpop.permute.xlu0 %775
        %777 = vrot.lane.b32.xlu0 %v308, 127
        %v778 = vpop.permute.xlu0 %777
        %779 = vrot.lane.b32.xlu0 %v309, 127
        %v780 = vpop.permute.xlu0 %779
        %781 = vrot.lane.b32.xlu0 %v310, 127
        %v782 = vpop.permute.xlu0 %781
        %783 = vrot.lane.b32.xlu0 %v311, 127
        %v784 = vpop.permute.xlu0 %783
        %785 = vrot.lane.b32.xlu0 %v312, 127
        %v786 = vpop.permute.xlu0 %785
        %787 = vrot.lane.b32.xlu0 %v313, 127
        %v788 = vpop.permute.xlu0 %787
        %789 = vrot.lane.b32.xlu0 %v314, 127
        %v790 = vpop.permute.xlu0 %789
        %791 = vrot.lane.b32.xlu0 %v315, 127
        %v792 = vpop.permute.xlu0 %791
        %793 = vrot.lane.b32.xlu0 %v316, 127
        %v794 = vpop.permute.xlu0 %793
        %795 = vrot.lane.b32.xlu0 %v317, 127
        %v796 = vpop.permute.xlu0 %795
        %797 = vrot.lane.b32.xlu0 %v318, 127
        %v798 = vpop.permute.xlu0 %797
        %799 = vrot.lane.b32.xlu0 %v319, 127
        %v800 = vpop.permute.xlu0 %799
        %801 = vrot.lane.b32.xlu0 %v320, 127
        %v802 = vpop.permute.xlu0 %801
        %803 = vrot.lane.b32.xlu0 %v321, 127
        %v804 = vpop.permute.xlu0 %803
        %805 = vrot.lane.b32.xlu0 %v322, 127
        %v806 = vpop.permute.xlu0 %805
        %807 = vrot.lane.b32.xlu0 %v323, 127
        %v808 = vpop.permute.xlu0 %807
        %809 = vrot.lane.b32.xlu0 %v324, 127
        %v810 = vpop.permute.xlu0 %809
        %811 = vrot.lane.b32.xlu0 %v325, 127
        %v812 = vpop.permute.xlu0 %811
        %813 = vrot.lane.b32.xlu0 %v326, 127
        %v814 = vpop.permute.xlu0 %813
        %815 = vrot.lane.b32.xlu0 %v327, 127
        %v816 = vpop.permute.xlu0 %815
        %817 = vrot.lane.b32.xlu0 %v328, 127
        %v818 = vpop.permute.xlu0 %817
        %819 = vrot.lane.b32.xlu0 %v329, 127
        %v820 = vpop.permute.xlu0 %819
        %821 = vrot.lane.b32.xlu0 %v330, 127
        %v822 = vpop.permute.xlu0 %821
        %823 = vrot.lane.b32.xlu0 %v331, 127
        %v824 = vpop.permute.xlu0 %823
        %825 = vrot.lane.b32.xlu0 %v332, 127
        %v826 = vpop.permute.xlu0 %825
        %827 = vrot.lane.b32.xlu0 %v333, 127
        %v828 = vpop.permute.xlu0 %827
        %829 = vrot.lane.b32.xlu0 %v334, 127
        %v830 = vpop.permute.xlu0 %829
        %831 = vrot.lane.b32.xlu0 %v335, 127
        %v832 = vpop.permute.xlu0 %831
        %833 = vrot.lane.b32.xlu0 %v336, 127
        %v834 = vpop.permute.xlu0 %833
        %835 = vrot.lane.b32.xlu0 %v337, 127
        %v836 = vpop.permute.xlu0 %835
        %vm837 = vcmp.lt.s32.totalorder %v403, 127
        %v838 = vsel %vm837, %v834, %v836
        %v839 = vsel %vm837, %v832, %v834
        %v840 = vsel %vm837, %v830, %v832
        %v841 = vsel %vm837, %v828, %v830
        %v842 = vsel %vm837, %v826, %v828
        %v843 = vsel %vm837, %v824, %v826
        %v844 = vsel %vm837, %v822, %v824
        %v845 = vsel %vm837, %v820, %v822
        %v846 = vsel %vm837, %v818, %v820
        %v847 = vsel %vm837, %v816, %v818
        %v848 = vsel %vm837, %v814, %v816
        %v849 = vsel %vm837, %v812, %v814
        %v850 = vsel %vm837, %v810, %v812
        %v851 = vsel %vm837, %v808, %v810
        %v852 = vsel %vm837, %v806, %v808
        %v853 = vsel %vm837, %v804, %v806
        %v854 = vsel %vm837, %v802, %v804
        %v855 = vsel %vm837, %v800, %v802
        %v856 = vsel %vm837, %v798, %v800
        %v857 = vsel %vm837, %v796, %v798
        %v858 = vsel %vm837, %v794, %v796
        %v859 = vsel %vm837, %v792, %v794
        %v860 = vsel %vm837, %v790, %v792
        %v861 = vsel %vm837, %v788, %v790
        %v862 = vsel %vm837, %v786, %v788
        %v863 = vsel %vm837, %v784, %v786
        %v864 = vsel %vm837, %v782, %v784
        %v865 = vsel %vm837, %v780, %v782
        %v866 = vsel %vm837, %v778, %v780
        %v867 = vsel %vm837, %v776, %v778
        %v868 = vsel %vm837, %v774, %v776
        %v869 = vsel %vm837, %v836, %v774
        %v870 = vlaneseq
        %v871 = vshrl.u32 %v870, 7
        %v872 = vsub.s32 1, %v871
        %v873 = vrot.slane %v282, %v872
        %v874 = vlaneseq
        %v875 = vshrl.u32 %v874, 7
        %v876 = vsub.s32 5, %v875
        %v877 = vrot.slane %v282, %v876
        %v878 = vlaneseq
        %v879 = vshrl.u32 %v878, 7
        %v880 = vsub.s32 1, %v879
        %v881 = vrot.slane %v283, %v880
        %v882 = vlaneseq
        %v883 = vshrl.u32 %v882, 7
        %v884 = vsub.s32 5, %v883
        %v885 = vrot.slane %v283, %v884
        %v886 = vlaneseq
        %v887 = vshrl.u32 %v886, 7
        %v888 = vsub.s32 1, %v887
        %v889 = vrot.slane %v284, %v888
        %v890 = vlaneseq
        %v891 = vshrl.u32 %v890, 7
        %v892 = vsub.s32 5, %v891
        %v893 = vrot.slane %v284, %v892
        %v894 = vlaneseq
        %v895 = vshrl.u32 %v894, 7
        %v896 = vsub.s32 1, %v895
        %v897 = vrot.slane %v285, %v896
        %v898 = vlaneseq
        %v899 = vshrl.u32 %v898, 7
        %v900 = vsub.s32 5, %v899
        %v901 = vrot.slane %v285, %v900
        %v902 = vlaneseq
        %v903 = vshrl.u32 %v902, 7
        %v904 = vsub.s32 1, %v903
        %v905 = vrot.slane %v286, %v904
        %v906 = vlaneseq
        %v907 = vshrl.u32 %v906, 7
        %v908 = vsub.s32 5, %v907
        %v909 = vrot.slane %v286, %v908
        %v910 = vlaneseq
        %v911 = vshrl.u32 %v910, 7
        %v912 = vsub.s32 1, %v911
        %v913 = vrot.slane %v287, %v912
        %v914 = vlaneseq
        %v915 = vshrl.u32 %v914, 7
        %v916 = vsub.s32 5, %v915
        %v917 = vrot.slane %v287, %v916
        %v918 = vlaneseq
        %v919 = vshrl.u32 %v918, 7
        %v920 = vsub.s32 1, %v919
        %v921 = vrot.slane %v288, %v920
        %v922 = vlaneseq
        %v923 = vshrl.u32 %v922, 7
        %v924 = vsub.s32 5, %v923
        %v925 = vrot.slane %v288, %v924
        %v926 = vlaneseq
        %v927 = vshrl.u32 %v926, 7
        %v928 = vsub.s32 1, %v927
        %v929 = vrot.slane %v289, %v928
        %v930 = vlaneseq
        %v931 = vshrl.u32 %v930, 7
        %v932 = vsub.s32 5, %v931
        %v933 = vrot.slane %v289, %v932
        %v934 = vlaneseq
        %v935 = vshrl.u32 %v934, 7
        %v936 = vsub.s32 1, %v935
        %v937 = vrot.slane %v290, %v936
        %v938 = vlaneseq
        %v939 = vshrl.u32 %v938, 7
        %v940 = vsub.s32 5, %v939
        %v941 = vrot.slane %v290, %v940
        %v942 = vlaneseq
        %v943 = vshrl.u32 %v942, 7
        %v944 = vsub.s32 1, %v943
        %v945 = vrot.slane %v291, %v944
        %v946 = vlaneseq
        %v947 = vshrl.u32 %v946, 7
        %v948 = vsub.s32 5, %v947
        %v949 = vrot.slane %v291, %v948
        %v950 = vlaneseq
        %v951 = vshrl.u32 %v950, 7
        %v952 = vsub.s32 1, %v951
        %v953 = vrot.slane %v292, %v952
        %v954 = vlaneseq
        %v955 = vshrl.u32 %v954, 7
        %v956 = vsub.s32 5, %v955
        %v957 = vrot.slane %v292, %v956
        %v958 = vlaneseq
        %v959 = vshrl.u32 %v958, 7
        %v960 = vsub.s32 1, %v959
        %v961 = vrot.slane %v293, %v960
        %v962 = vlaneseq
        %v963 = vshrl.u32 %v962, 7
        %v964 = vsub.s32 5, %v963
        %v965 = vrot.slane %v293, %v964
        %v966 = vlaneseq
        %v967 = vshrl.u32 %v966, 7
        %v968 = vsub.s32 1, %v967
        %v969 = vrot.slane %v294, %v968
        %v970 = vlaneseq
        %v971 = vshrl.u32 %v970, 7
        %v972 = vsub.s32 5, %v971
        %v973 = vrot.slane %v294, %v972
        %v974 = vlaneseq
        %v975 = vshrl.u32 %v974, 7
        %v976 = vsub.s32 1, %v975
        %v977 = vrot.slane %v295, %v976
        %v978 = vlaneseq
        %v979 = vshrl.u32 %v978, 7
        %v980 = vsub.s32 5, %v979
        %v981 = vrot.slane %v295, %v980
        %v982 = vlaneseq
        %v983 = vshrl.u32 %v982, 7
        %v984 = vsub.s32 1, %v983
        %v985 = vrot.slane %v296, %v984
        %v986 = vlaneseq
        %v987 = vshrl.u32 %v986, 7
        %v988 = vsub.s32 5, %v987
        %v989 = vrot.slane %v296, %v988
        %v990 = vlaneseq
        %v991 = vshrl.u32 %v990, 7
        %v992 = vsub.s32 1, %v991
        %v993 = vrot.slane %v297, %v992
        %v994 = vlaneseq
        %v995 = vshrl.u32 %v994, 7
        %v996 = vsub.s32 5, %v995
        %v997 = vrot.slane %v297, %v996
        %v1030 = vlaneseq
        %v1031 = vshrl.u32 %v1030, 7
        %v1032 = vsub.s32 1, %v1031
        %v1033 = vrot.slane %v873, %v1032
        %v1034 = vlaneseq
        %v1035 = vshrl.u32 %v1034, 7
        %v1036 = vsub.s32 1, %v1035
        %v1037 = vrot.slane %v877, %v1036
        %v1038 = vlaneseq
        %v1039 = vshrl.u32 %v1038, 7
        %v1040 = vsub.s32 1, %v1039
        %v1041 = vrot.slane %v881, %v1040
        %v1042 = vlaneseq
        %v1043 = vshrl.u32 %v1042, 7
        %v1044 = vsub.s32 1, %v1043
        %v1045 = vrot.slane %v885, %v1044
        %v1046 = vlaneseq
        %v1047 = vshrl.u32 %v1046, 7
        %v1048 = vsub.s32 1, %v1047
        %v1049 = vrot.slane %v889, %v1048
        %v1050 = vlaneseq
        %v1051 = vshrl.u32 %v1050, 7
        %v1052 = vsub.s32 1, %v1051
        %v1053 = vrot.slane %v893, %v1052
        %v1054 = vlaneseq
        %v1055 = vshrl.u32 %v1054, 7
        %v1056 = vsub.s32 1, %v1055
        %v1057 = vrot.slane %v897, %v1056
        %v1058 = vlaneseq
        %v1059 = vshrl.u32 %v1058, 7
        %v1060 = vsub.s32 1, %v1059
        %v1061 = vrot.slane %v901, %v1060
        %v1062 = vlaneseq
        %v1063 = vshrl.u32 %v1062, 7
        %v1064 = vsub.s32 1, %v1063
        %v1065 = vrot.slane %v905, %v1064
        %v1066 = vlaneseq
        %v1067 = vshrl.u32 %v1066, 7
        %v1068 = vsub.s32 1, %v1067
        %v1069 = vrot.slane %v909, %v1068
        %v1070 = vlaneseq
        %v1071 = vshrl.u32 %v1070, 7
        %v1072 = vsub.s32 1, %v1071
        %v1073 = vrot.slane %v913, %v1072
        %v1074 = vlaneseq
        %v1075 = vshrl.u32 %v1074, 7
        %v1076 = vsub.s32 1, %v1075
        %v1077 = vrot.slane %v917, %v1076
        %v1078 = vlaneseq
        %v1079 = vshrl.u32 %v1078, 7
        %v1080 = vsub.s32 1, %v1079
        %v1081 = vrot.slane %v921, %v1080
        %v1082 = vlaneseq
        %v1083 = vshrl.u32 %v1082, 7
        %v1084 = vsub.s32 1, %v1083
        %v1085 = vrot.slane %v925, %v1084
        %v1086 = vlaneseq
        %v1087 = vshrl.u32 %v1086, 7
        %v1088 = vsub.s32 1, %v1087
        %v1089 = vrot.slane %v929, %v1088
        %v1090 = vlaneseq
        %v1091 = vshrl.u32 %v1090, 7
        %v1092 = vsub.s32 1, %v1091
        %v1093 = vrot.slane %v933, %v1092
        %v1094 = vlaneseq
        %v1095 = vshrl.u32 %v1094, 7
        %v1096 = vsub.s32 1, %v1095
        %v1097 = vrot.slane %v937, %v1096
        %v1098 = vlaneseq
        %v1099 = vshrl.u32 %v1098, 7
        %v1100 = vsub.s32 1, %v1099
        %v1101 = vrot.slane %v941, %v1100
        %v1102 = vlaneseq
        %v1103 = vshrl.u32 %v1102, 7
        %v1104 = vsub.s32 1, %v1103
        %v1105 = vrot.slane %v945, %v1104
        %v1106 = vlaneseq
        %v1107 = vshrl.u32 %v1106, 7
        %v1108 = vsub.s32 1, %v1107
        %v1109 = vrot.slane %v949, %v1108
        %v1110 = vlaneseq
        %v1111 = vshrl.u32 %v1110, 7
        %v1112 = vsub.s32 1, %v1111
        %v1113 = vrot.slane %v953, %v1112
        %v1114 = vlaneseq
        %v1115 = vshrl.u32 %v1114, 7
        %v1116 = vsub.s32 1, %v1115
        %v1117 = vrot.slane %v957, %v1116
        %v1118 = vlaneseq
        %v1119 = vshrl.u32 %v1118, 7
        %v1120 = vsub.s32 1, %v1119
        %v1121 = vrot.slane %v961, %v1120
        %v1122 = vlaneseq
        %v1123 = vshrl.u32 %v1122, 7
        %v1124 = vsub.s32 1, %v1123
        %v1125 = vrot.slane %v965, %v1124
        %v1126 = vlaneseq
        %v1127 = vshrl.u32 %v1126, 7
        %v1128 = vsub.s32 1, %v1127
        %v1129 = vrot.slane %v969, %v1128
        %v1130 = vlaneseq
        %v1131 = vshrl.u32 %v1130, 7
        %v1132 = vsub.s32 1, %v1131
        %v1133 = vrot.slane %v973, %v1132
        %v1134 = vlaneseq
        %v1135 = vshrl.u32 %v1134, 7
        %v1136 = vsub.s32 1, %v1135
        %v1137 = vrot.slane %v977, %v1136
        %v1138 = vlaneseq
        %v1139 = vshrl.u32 %v1138, 7
        %v1140 = vsub.s32 1, %v1139
        %v1141 = vrot.slane %v981, %v1140
        %v1142 = vlaneseq
        %v1143 = vshrl.u32 %v1142, 7
        %v1144 = vsub.s32 1, %v1143
        %v1145 = vrot.slane %v985, %v1144
        %v1146 = vlaneseq
        %v1147 = vshrl.u32 %v1146, 7
        %v1148 = vsub.s32 1, %v1147
        %v1149 = vrot.slane %v989, %v1148
        %v1150 = vlaneseq
        %v1151 = vshrl.u32 %v1150, 7
        %v1152 = vsub.s32 1, %v1151
        %v1153 = vrot.slane %v993, %v1152
        %v1154 = vlaneseq
        %v1155 = vshrl.u32 %v1154, 7
        %v1156 = vsub.s32 1, %v1155
        %v1157 = vrot.slane %v997, %v1156
        %v1158 = vmul.f32 %v868, %v1033
        %v1159 = vmul.f32 %v867, %v1037
        %v1160 = vmul.f32 %v866, %v1041
        %v1161 = vmul.f32 %v865, %v1045
        %v1162 = vmul.f32 %v864, %v1049
        %v1163 = vmul.f32 %v863, %v1053
        %v1164 = vmul.f32 %v862, %v1057
        %v1165 = vmul.f32 %v861, %v1061
        %v1166 = vmul.f32 %v860, %v1065
        %v1167 = vmul.f32 %v859, %v1069
        %v1168 = vmul.f32 %v858, %v1073
        %v1169 = vmul.f32 %v857, %v1077
        %v1170 = vmul.f32 %v856, %v1081
        %v1171 = vmul.f32 %v855, %v1085
        %v1172 = vmul.f32 %v854, %v1089
        %v1173 = vmul.f32 %v853, %v1093
        %v1174 = vmul.f32 %v852, %v1097
        %v1175 = vmul.f32 %v851, %v1101
        %v1176 = vmul.f32 %v850, %v1105
        %v1177 = vmul.f32 %v849, %v1109
        %v1178 = vmul.f32 %v848, %v1113
        %v1179 = vmul.f32 %v847, %v1117
        %v1180 = vmul.f32 %v846, %v1121
        %v1181 = vmul.f32 %v845, %v1125
        %v1182 = vmul.f32 %v844, %v1129
        %v1183 = vmul.f32 %v843, %v1133
        %v1184 = vmul.f32 %v842, %v1137
        %v1185 = vmul.f32 %v841, %v1141
        %v1186 = vmul.f32 %v840, %v1145
        %v1187 = vmul.f32 %v839, %v1149
        %v1188 = vmul.f32 %v838, %v1153
        %v1189 = vmul.f32 %v869, %v1157
        %v1190 = vpack.c.bf16 %v306, %v741
        %v1191 = vpack.c.bf16 %v307, %v742
        %v1192 = vpack.c.bf16 %v308, %v743
        %v1193 = vpack.c.bf16 %v309, %v744
        %v1194 = vpack.c.bf16 %v310, %v745
        %v1195 = vpack.c.bf16 %v311, %v746
        %v1196 = vpack.c.bf16 %v312, %v747
        %v1197 = vpack.c.bf16 %v313, %v748
        %v1198 = vpack.c.bf16 %v314, %v749
        %v1199 = vpack.c.bf16 %v315, %v750
        %v1200 = vpack.c.bf16 %v316, %v751
        %v1201 = vpack.c.bf16 %v317, %v752
        %v1202 = vpack.c.bf16 %v318, %v753
        %v1203 = vpack.c.bf16 %v319, %v754
        %v1204 = vpack.c.bf16 %v320, %v755
        %v1205 = vpack.c.bf16 %v321, %v756
        %v1206 = vpack.c.bf16 %v322, %v757
        %v1207 = vpack.c.bf16 %v323, %v758
        %v1208 = vpack.c.bf16 %v324, %v759
        %v1209 = vpack.c.bf16 %v325, %v760
        %v1210 = vpack.c.bf16 %v326, %v761
        %v1211 = vpack.c.bf16 %v327, %v762
        %v1212 = vpack.c.bf16 %v328, %v763
        %v1213 = vpack.c.bf16 %v329, %v764
        %v1214 = vpack.c.bf16 %v330, %v765
        %v1215 = vpack.c.bf16 %v331, %v766
        %v1216 = vpack.c.bf16 %v332, %v767
        %v1217 = vpack.c.bf16 %v333, %v768
        %v1218 = vpack.c.bf16 %v334, %v769
        %v1219 = vpack.c.bf16 %v335, %v770
        %v1220 = vpack.c.bf16 %v336, %v771
        %v1221 = vpack.c.bf16 %v337, %v772
        %v1222 = vpack.c.bf16 %v1158, %v1158
        %v1223 = vpack.c.bf16 %v1159, %v1159
        %v1224 = vpack.c.bf16 %v1160, %v1160
        %v1225 = vpack.c.bf16 %v1161, %v1161
        %v1226 = vpack.c.bf16 %v1162, %v1162
        %v1227 = vpack.c.bf16 %v1163, %v1163
        %v1228 = vpack.c.bf16 %v1164, %v1164
        %v1229 = vpack.c.bf16 %v1165, %v1165
        %v1230 = vpack.c.bf16 %v1166, %v1166
        %v1231 = vpack.c.bf16 %v1167, %v1167
        %v1232 = vpack.c.bf16 %v1168, %v1168
        %v1233 = vpack.c.bf16 %v1169, %v1169
        %v1234 = vpack.c.bf16 %v1170, %v1170
        %v1235 = vpack.c.bf16 %v1171, %v1171
        %v1236 = vpack.c.bf16 %v1172, %v1172
        %v1237 = vpack.c.bf16 %v1173, %v1173
        %v1238 = vpack.c.bf16 %v1174, %v1174
        %v1239 = vpack.c.bf16 %v1175, %v1175
        %v1240 = vpack.c.bf16 %v1176, %v1176
        %v1241 = vpack.c.bf16 %v1177, %v1177
        %v1242 = vpack.c.bf16 %v1178, %v1178
        %v1243 = vpack.c.bf16 %v1179, %v1179
        %v1244 = vpack.c.bf16 %v1180, %v1180
        %v1245 = vpack.c.bf16 %v1181, %v1181
        %v1246 = vpack.c.bf16 %v1182, %v1182
        %v1247 = vpack.c.bf16 %v1183, %v1183
        %v1248 = vpack.c.bf16 %v1184, %v1184
        %v1249 = vpack.c.bf16 %v1185, %v1185
        %v1250 = vpack.c.bf16 %v1186, %v1186
        %v1251 = vpack.c.bf16 %v1187, %v1187
        %v1252 = vpack.c.bf16 %v1188, %v1188
        %v1253 = vpack.c.bf16 %v1189, %v1189
        %v1257 = vunpack.c.l.b16 %v298
        %v1258 = vunpack.c.l.b16 %v299
        %v1259 = vunpack.c.l.b16 %v300
        %v1260 = vpack.c.b16 %v1258, %v1257
        %v1261 = vpack.c.b16 %v1259, %v1259
        %vm1262 = vcmask 195584
        %v1264 = vsel %vm1262, %v1260, 0
        %v1267 = vsel %vm1262, %v1261, 0
        %vm1269 = vcmask 1043456
        %v1271 = vsel %vm1269, %v1222, 0
        %v1274 = vsel %vm1269, %v1223, 0
        %v1277 = vsel %vm1269, %v1224, 0
        %v1280 = vsel %vm1269, %v1225, 0
        %v1283 = vsel %vm1269, %v1226, 0
        %v1286 = vsel %vm1269, %v1227, 0
        %v1289 = vsel %vm1269, %v1228, 0
        %v1292 = vsel %vm1269, %v1229, 0
        %v1295 = vsel %vm1269, %v1230, 0
        %v1298 = vsel %vm1269, %v1231, 0
        %v1301 = vsel %vm1269, %v1232, 0
        %v1304 = vsel %vm1269, %v1233, 0
        %v1307 = vsel %vm1269, %v1234, 0
        %v1310 = vsel %vm1269, %v1235, 0
        %v1313 = vsel %vm1269, %v1236, 0
        %v1316 = vsel %vm1269, %v1237, 0
        %v1319 = vsel %vm1269, %v1238, 0
        %v1322 = vsel %vm1269, %v1239, 0
        %v1325 = vsel %vm1269, %v1240, 0
        %v1328 = vsel %vm1269, %v1241, 0
        %v1331 = vsel %vm1269, %v1242, 0
        %v1334 = vsel %vm1269, %v1243, 0
        %v1337 = vsel %vm1269, %v1244, 0
        %v1340 = vsel %vm1269, %v1245, 0
        %v1343 = vsel %vm1269, %v1246, 0
        %v1346 = vsel %vm1269, %v1247, 0
        %v1349 = vsel %vm1269, %v1248, 0
        %v1352 = vsel %vm1269, %v1249, 0
        %v1355 = vsel %vm1269, %v1250, 0
        %v1358 = vsel %vm1269, %v1251, 0
        %v1361 = vsel %vm1269, %v1252, 0
        %v1364 = vsel %vm1269, %v1253, 0
        %1366 = vmatprep.subr.bf16.mxu0 0
        %1367 = vmatpush1.bf16.msra.mxu0 0
        %1368 = vmatprep.subr.bf16.mxu0 0
        %1369 = vmatpush1.bf16.msra.mxu0 0
        %1370 = vmatprep.subr.bf16.mxu0 0
        %1371 = vmatpush1.bf16.msra.mxu0 0
        %1372 = vmatprep.subr.bf16.mxu0 0
        %1373 = vmatpush1.bf16.msra.mxu0 0
        %1374 = vmatprep.subr.bf16.mxu0 0
        %1375 = vmatpush1.bf16.msra.mxu0 0
        %1376 = vmatprep.subr.bf16.mxu0 0
        %1377 = vmatpush1.bf16.msra.mxu0 0
        %1378 = vmatprep.subr.bf16.mxu0 %v1274
        %1379 = vmatpush1.bf16.msra.mxu0 %v1271
        %1380 = vmatprep.subr.bf16.mxu0 %v1191
        %1381 = vmatpush1.bf16.msra.mxu0 %v1190
        %1382 = vmatprep.subr.bf16.mxu0 0
        %1383 = vmatpush2.bf16.msra.mxu0 0
        %1384 = vmatprep.subr.bf16.mxu0 0
        %1385 = vmatpush2.bf16.msra.mxu0 0
        %1386 = vmatprep.subr.bf16.mxu0 0
        %1387 = vmatpush2.bf16.msra.mxu0 0
        %1388 = vmatprep.subr.bf16.mxu0 0
        %1389 = vmatpush2.bf16.msra.mxu0 0
        %1390 = vmatprep.subr.bf16.mxu0 0
        %1391 = vmatpush2.bf16.msra.mxu0 0
        %1392 = vmatprep.subr.bf16.mxu0 0
        %1393 = vmatpush2.bf16.msra.mxu0 0
        %1394 = vmatprep.subr.bf16.mxu0 0
        %1395 = vmatpush2.bf16.msra.mxu0 0
        %1396 = vmatprep.subr.bf16.mxu0 0
        %1397 = vmatpush2.bf16.msra.mxu0 0
        %1398 = vmatprep.mubr.bf16.mxu0 0
        %1399 = vmatmul.mubr.bf16.gmra.mxu0 %v1264
        %v1400 = vpop.f32.mrf.mxu0
        %v1401 = vadd.f32 0.0, %v1400
        %v1402 = vpop.f32.mrf.mxu0
        %v1403 = vadd.f32 0.0, %v1402
        %v1404 = vpop.f32.mrf.mxu0
        %v1405 = vadd.f32 0.0, %v1404
        %v1406 = vpop.f32.mrf.mxu0
        %v1407 = vadd.f32 0.0, %v1406
        %1408 = vmatprep.mubr.bf16.mxu0 0
        %1409 = vmatmul.mubr.bf16.gmra.mxu0 %v1267
        %v1410 = vpop.f32.mrf.mxu0
        %v1411 = vadd.f32 0.0, %v1410
        %v1412 = vpop.f32.mrf.mxu0
        %v1413 = vadd.f32 0.0, %v1412
        %v1414 = vpop.f32.mrf.mxu0
        %v1415 = vpop.f32.mrf.mxu0
        %1416 = vdwg.mxu0
        %1417 = vmatprep.subr.bf16.mxu0 0
        %1418 = vmatpush1.bf16.msra.mxu0 0
        %1419 = vmatprep.subr.bf16.mxu0 0
        %1420 = vmatpush1.bf16.msra.mxu0 0
        %1421 = vmatprep.subr.bf16.mxu0 0
        %1422 = vmatpush1.bf16.msra.mxu0 0
        %1423 = vmatprep.subr.bf16.mxu0 0
        %1424 = vmatpush1.bf16.msra.mxu0 0
        %1425 = vmatprep.subr.bf16.mxu0 0
        %1426 = vmatpush1.bf16.msra.mxu0 0
        %1427 = vmatprep.subr.bf16.mxu0 0
        %1428 = vmatpush1.bf16.msra.mxu0 0
        %1429 = vmatprep.subr.bf16.mxu0 %v1280
        %1430 = vmatpush1.bf16.msra.mxu0 %v1277
        %1431 = vmatprep.subr.bf16.mxu0 %v1193
        %1432 = vmatpush1.bf16.msra.mxu0 %v1192
        %1433 = vmatprep.subr.bf16.mxu0 0
        %1434 = vmatpush2.bf16.msra.mxu0 0
        %1435 = vmatprep.subr.bf16.mxu0 0
        %1436 = vmatpush2.bf16.msra.mxu0 0
        %1437 = vmatprep.subr.bf16.mxu0 0
        %1438 = vmatpush2.bf16.msra.mxu0 0
        %1439 = vmatprep.subr.bf16.mxu0 0
        %1440 = vmatpush2.bf16.msra.mxu0 0
        %1441 = vmatprep.subr.bf16.mxu0 0
        %1442 = vmatpush2.bf16.msra.mxu0 0
        %1443 = vmatprep.subr.bf16.mxu0 0
        %1444 = vmatpush2.bf16.msra.mxu0 0
        %1445 = vmatprep.subr.bf16.mxu0 0
        %1446 = vmatpush2.bf16.msra.mxu0 0
        %1447 = vmatprep.subr.bf16.mxu0 0
        %1448 = vmatpush2.bf16.msra.mxu0 0
        %1449 = vmatprep.mubr.bf16.mxu0 0
        %1450 = vmatmul.mubr.bf16.gmra.mxu0 %v1264
        %v1451 = vpop.f32.mrf.mxu0
        %v1452 = vadd.f32 0.0, %v1451
        %v1453 = vpop.f32.mrf.mxu0
        %v1454 = vadd.f32 0.0, %v1453
        %v1455 = vpop.f32.mrf.mxu0
        %v1456 = vadd.f32 0.0, %v1455
        %v1457 = vpop.f32.mrf.mxu0
        %v1458 = vadd.f32 0.0, %v1457
        %1459 = vmatprep.mubr.bf16.mxu0 0
        %1460 = vmatmul.mubr.bf16.gmra.mxu0 %v1267
        %v1461 = vpop.f32.mrf.mxu0
        %v1462 = vadd.f32 0.0, %v1461
        %v1463 = vpop.f32.mrf.mxu0
        %v1464 = vadd.f32 0.0, %v1463
        %v1465 = vpop.f32.mrf.mxu0
        %v1466 = vpop.f32.mrf.mxu0
        %1467 = vdwg.mxu0
        %1468 = vmatprep.subr.bf16.mxu0 0
        %1469 = vmatpush1.bf16.msra.mxu0 0
        %1470 = vmatprep.subr.bf16.mxu0 0
        %1471 = vmatpush1.bf16.msra.mxu0 0
        %1472 = vmatprep.subr.bf16.mxu0 0
        %1473 = vmatpush1.bf16.msra.mxu0 0
        %1474 = vmatprep.subr.bf16.mxu0 0
        %1475 = vmatpush1.bf16.msra.mxu0 0
        %1476 = vmatprep.subr.bf16.mxu0 0
        %1477 = vmatpush1.bf16.msra.mxu0 0
        %1478 = vmatprep.subr.bf16.mxu0 0
        %1479 = vmatpush1.bf16.msra.mxu0 0
        %1480 = vmatprep.subr.bf16.mxu0 %v1286
        %1481 = vmatpush1.bf16.msra.mxu0 %v1283
        %1482 = vmatprep.subr.bf16.mxu0 %v1195
        %1483 = vmatpush1.bf16.msra.mxu0 %v1194
        %1484 = vmatprep.subr.bf16.mxu0 0
        %1485 = vmatpush2.bf16.msra.mxu0 0
        %1486 = vmatprep.subr.bf16.mxu0 0
        %1487 = vmatpush2.bf16.msra.mxu0 0
        %1488 = vmatprep.subr.bf16.mxu0 0
        %1489 = vmatpush2.bf16.msra.mxu0 0
        %1490 = vmatprep.subr.bf16.mxu0 0
        %1491 = vmatpush2.bf16.msra.mxu0 0
        %1492 = vmatprep.subr.bf16.mxu0 0
        %1493 = vmatpush2.bf16.msra.mxu0 0
        %1494 = vmatprep.subr.bf16.mxu0 0
        %1495 = vmatpush2.bf16.msra.mxu0 0
        %1496 = vmatprep.subr.bf16.mxu0 0
        %1497 = vmatpush2.bf16.msra.mxu0 0
        %1498 = vmatprep.subr.bf16.mxu0 0
        %1499 = vmatpush2.bf16.msra.mxu0 0
        %1500 = vmatprep.mubr.bf16.mxu0 0
        %1501 = vmatmul.mubr.bf16.gmra.mxu0 %v1264
        %v1502 = vpop.f32.mrf.mxu0
        %v1503 = vadd.f32 0.0, %v1502
        %v1504 = vpop.f32.mrf.mxu0
        %v1505 = vadd.f32 0.0, %v1504
        %v1506 = vpop.f32.mrf.mxu0
        %v1507 = vadd.f32 0.0, %v1506
        %v1508 = vpop.f32.mrf.mxu0
        %v1509 = vadd.f32 0.0, %v1508
        %1510 = vmatprep.mubr.bf16.mxu0 0
        %1511 = vmatmul.mubr.bf16.gmra.mxu0 %v1267
        %v1512 = vpop.f32.mrf.mxu0
        %v1513 = vadd.f32 0.0, %v1512
        %v1514 = vpop.f32.mrf.mxu0
        %v1515 = vadd.f32 0.0, %v1514
        %v1516 = vpop.f32.mrf.mxu0
        %v1517 = vpop.f32.mrf.mxu0
        %1518 = vdwg.mxu0
        %1519 = vmatprep.subr.bf16.mxu0 0
        %1520 = vmatpush1.bf16.msra.mxu0 0
        %1521 = vmatprep.subr.bf16.mxu0 0
        %1522 = vmatpush1.bf16.msra.mxu0 0
        %1523 = vmatprep.subr.bf16.mxu0 0
        %1524 = vmatpush1.bf16.msra.mxu0 0
        %1525 = vmatprep.subr.bf16.mxu0 0
        %1526 = vmatpush1.bf16.msra.mxu0 0
        %1527 = vmatprep.subr.bf16.mxu0 0
        %1528 = vmatpush1.bf16.msra.mxu0 0
        %1529 = vmatprep.subr.bf16.mxu0 0
        %1530 = vmatpush1.bf16.msra.mxu0 0
        %1531 = vmatprep.subr.bf16.mxu0 %v1292
        %1532 = vmatpush1.bf16.msra.mxu0 %v1289
        %1533 = vmatprep.subr.bf16.mxu0 %v1197
        %1534 = vmatpush1.bf16.msra.mxu0 %v1196
        %1535 = vmatprep.subr.bf16.mxu0 0
        %1536 = vmatpush2.bf16.msra.mxu0 0
        %1537 = vmatprep.subr.bf16.mxu0 0
        %1538 = vmatpush2.bf16.msra.mxu0 0
        %1539 = vmatprep.subr.bf16.mxu0 0
        %1540 = vmatpush2.bf16.msra.mxu0 0
        %1541 = vmatprep.subr.bf16.mxu0 0
        %1542 = vmatpush2.bf16.msra.mxu0 0
        %1543 = vmatprep.subr.bf16.mxu0 0
        %1544 = vmatpush2.bf16.msra.mxu0 0
        %1545 = vmatprep.subr.bf16.mxu0 0
        %1546 = vmatpush2.bf16.msra.mxu0 0
        %1547 = vmatprep.subr.bf16.mxu0 0
        %1548 = vmatpush2.bf16.msra.mxu0 0
        %1549 = vmatprep.subr.bf16.mxu0 0
        %1550 = vmatpush2.bf16.msra.mxu0 0
        %1551 = vmatprep.mubr.bf16.mxu0 0
        %1552 = vmatmul.mubr.bf16.gmra.mxu0 %v1264
        %v1553 = vpop.f32.mrf.mxu0
        %v1554 = vadd.f32 0.0, %v1553
        %v1555 = vpop.f32.mrf.mxu0
        %v1556 = vadd.f32 0.0, %v1555
        %v1557 = vpop.f32.mrf.mxu0
        %v1558 = vadd.f32 0.0, %v1557
        %v1559 = vpop.f32.mrf.mxu0
        %v1560 = vadd.f32 0.0, %v1559
        %1561 = vmatprep.mubr.bf16.mxu0 0
        %1562 = vmatmul.mubr.bf16.gmra.mxu0 %v1267
        %v1563 = vpop.f32.mrf.mxu0
        %v1564 = vadd.f32 0.0, %v1563
        %v1565 = vpop.f32.mrf.mxu0
        %v1566 = vadd.f32 0.0, %v1565
        %v1567 = vpop.f32.mrf.mxu0
        %v1568 = vpop.f32.mrf.mxu0
        %1569 = vdwg.mxu0
        %1570 = vmatprep.subr.bf16.mxu0 0
        %1571 = vmatpush1.bf16.msra.mxu0 0
        %1572 = vmatprep.subr.bf16.mxu0 0
        %1573 = vmatpush1.bf16.msra.mxu0 0
        %1574 = vmatprep.subr.bf16.mxu0 0
        %1575 = vmatpush1.bf16.msra.mxu0 0
        %1576 = vmatprep.subr.bf16.mxu0 0
        %1577 = vmatpush1.bf16.msra.mxu0 0
        %1578 = vmatprep.subr.bf16.mxu0 0
        %1579 = vmatpush1.bf16.msra.mxu0 0
        %1580 = vmatprep.subr.bf16.mxu0 0
        %1581 = vmatpush1.bf16.msra.mxu0 0
        %1582 = vmatprep.subr.bf16.mxu0 %v1298
        %1583 = vmatpush1.bf16.msra.mxu0 %v1295
        %1584 = vmatprep.subr.bf16.mxu0 %v1199
        %1585 = vmatpush1.bf16.msra.mxu0 %v1198
        %1586 = vmatprep.subr.bf16.mxu0 0
        %1587 = vmatpush2.bf16.msra.mxu0 0
        %1588 = vmatprep.subr.bf16.mxu0 0
        %1589 = vmatpush2.bf16.msra.mxu0 0
        %1590 = vmatprep.subr.bf16.mxu0 0
        %1591 = vmatpush2.bf16.msra.mxu0 0
        %1592 = vmatprep.subr.bf16.mxu0 0
        %1593 = vmatpush2.bf16.msra.mxu0 0
        %1594 = vmatprep.subr.bf16.mxu0 0
        %1595 = vmatpush2.bf16.msra.mxu0 0
        %1596 = vmatprep.subr.bf16.mxu0 0
        %1597 = vmatpush2.bf16.msra.mxu0 0
        %1598 = vmatprep.subr.bf16.mxu0 0
        %1599 = vmatpush2.bf16.msra.mxu0 0
        %1600 = vmatprep.subr.bf16.mxu0 0
        %1601 = vmatpush2.bf16.msra.mxu0 0
        %1602 = vmatprep.mubr.bf16.mxu0 0
        %1603 = vmatmul.mubr.bf16.gmra.mxu0 %v1264
        %v1604 = vpop.f32.mrf.mxu0
        %v1605 = vadd.f32 0.0, %v1604
        %v1606 = vpop.f32.mrf.mxu0
        %v1607 = vadd.f32 0.0, %v1606
        %v1608 = vpop.f32.mrf.mxu0
        %v1609 = vadd.f32 0.0, %v1608
        %v1610 = vpop.f32.mrf.mxu0
        %v1611 = vadd.f32 0.0, %v1610
        %1612 = vmatprep.mubr.bf16.mxu0 0
        %1613 = vmatmul.mubr.bf16.gmra.mxu0 %v1267
        %v1614 = vpop.f32.mrf.mxu0
        %v1615 = vadd.f32 0.0, %v1614
        %v1616 = vpop.f32.mrf.mxu0
        %v1617 = vadd.f32 0.0, %v1616
        %v1618 = vpop.f32.mrf.mxu0
        %v1619 = vpop.f32.mrf.mxu0
        %1620 = vdwg.mxu0
        %1621 = vmatprep.subr.bf16.mxu0 0
        %1622 = vmatpush1.bf16.msra.mxu0 0
        %1623 = vmatprep.subr.bf16.mxu0 0
        %1624 = vmatpush1.bf16.msra.mxu0 0
        %1625 = vmatprep.subr.bf16.mxu0 0
        %1626 = vmatpush1.bf16.msra.mxu0 0
        %1627 = vmatprep.subr.bf16.mxu0 0
        %1628 = vmatpush1.bf16.msra.mxu0 0
        %1629 = vmatprep.subr.bf16.mxu0 0
        %1630 = vmatpush1.bf16.msra.mxu0 0
        %1631 = vmatprep.subr.bf16.mxu0 0
        %1632 = vmatpush1.bf16.msra.mxu0 0
        %1633 = vmatprep.subr.bf16.mxu0 %v1304
        %1634 = vmatpush1.bf16.msra.mxu0 %v1301
        %1635 = vmatprep.subr.bf16.mxu0 %v1201
        %1636 = vmatpush1.bf16.msra.mxu0 %v1200
        %1637 = vmatprep.subr.bf16.mxu0 0
        %1638 = vmatpush2.bf16.msra.mxu0 0
        %1639 = vmatprep.subr.bf16.mxu0 0
        %1640 = vmatpush2.bf16.msra.mxu0 0
        %1641 = vmatprep.subr.bf16.mxu0 0
        %1642 = vmatpush2.bf16.msra.mxu0 0
        %1643 = vmatprep.subr.bf16.mxu0 0
        %1644 = vmatpush2.bf16.msra.mxu0 0
        %1645 = vmatprep.subr.bf16.mxu0 0
        %1646 = vmatpush2.bf16.msra.mxu0 0
        %1647 = vmatprep.subr.bf16.mxu0 0
        %1648 = vmatpush2.bf16.msra.mxu0 0
        %1649 = vmatprep.subr.bf16.mxu0 0
        %1650 = vmatpush2.bf16.msra.mxu0 0
        %1651 = vmatprep.subr.bf16.mxu0 0
        %1652 = vmatpush2.bf16.msra.mxu0 0
        %1653 = vmatprep.mubr.bf16.mxu0 0
        %1654 = vmatmul.mubr.bf16.gmra.mxu0 %v1264
        %v1655 = vpop.f32.mrf.mxu0
        %v1656 = vadd.f32 0.0, %v1655
        %v1657 = vpop.f32.mrf.mxu0
        %v1658 = vadd.f32 0.0, %v1657
        %v1659 = vpop.f32.mrf.mxu0
        %v1660 = vadd.f32 0.0, %v1659
        %v1661 = vpop.f32.mrf.mxu0
        %v1662 = vadd.f32 0.0, %v1661
        %1663 = vmatprep.mubr.bf16.mxu0 0
        %1664 = vmatmul.mubr.bf16.gmra.mxu0 %v1267
        %v1665 = vpop.f32.mrf.mxu0
        %v1666 = vadd.f32 0.0, %v1665
        %v1667 = vpop.f32.mrf.mxu0
        %v1668 = vadd.f32 0.0, %v1667
        %v1669 = vpop.f32.mrf.mxu0
        %v1670 = vpop.f32.mrf.mxu0
        %1671 = vdwg.mxu0
        %1672 = vmatprep.subr.bf16.mxu0 0
        %1673 = vmatpush1.bf16.msra.mxu0 0
        %1674 = vmatprep.subr.bf16.mxu0 0
        %1675 = vmatpush1.bf16.msra.mxu0 0
        %1676 = vmatprep.subr.bf16.mxu0 0
        %1677 = vmatpush1.bf16.msra.mxu0 0
        %1678 = vmatprep.subr.bf16.mxu0 0
        %1679 = vmatpush1.bf16.msra.mxu0 0
        %1680 = vmatprep.subr.bf16.mxu0 0
        %1681 = vmatpush1.bf16.msra.mxu0 0
        %1682 = vmatprep.subr.bf16.mxu0 0
        %1683 = vmatpush1.bf16.msra.mxu0 0
        %1684 = vmatprep.subr.bf16.mxu0 %v1310
        %1685 = vmatpush1.bf16.msra.mxu0 %v1307
        %1686 = vmatprep.subr.bf16.mxu0 %v1203
        %1687 = vmatpush1.bf16.msra.mxu0 %v1202
        %1688 = vmatprep.subr.bf16.mxu0 0
        %1689 = vmatpush2.bf16.msra.mxu0 0
        %1690 = vmatprep.subr.bf16.mxu0 0
        %1691 = vmatpush2.bf16.msra.mxu0 0
        %1692 = vmatprep.subr.bf16.mxu0 0
        %1693 = vmatpush2.bf16.msra.mxu0 0
        %1694 = vmatprep.subr.bf16.mxu0 0
        %1695 = vmatpush2.bf16.msra.mxu0 0
        %1696 = vmatprep.subr.bf16.mxu0 0
        %1697 = vmatpush2.bf16.msra.mxu0 0
        %1698 = vmatprep.subr.bf16.mxu0 0
        %1699 = vmatpush2.bf16.msra.mxu0 0
        %1700 = vmatprep.subr.bf16.mxu0 0
        %1701 = vmatpush2.bf16.msra.mxu0 0
        %1702 = vmatprep.subr.bf16.mxu0 0
        %1703 = vmatpush2.bf16.msra.mxu0 0
        %1704 = vmatprep.mubr.bf16.mxu0 0
        %1705 = vmatmul.mubr.bf16.gmra.mxu0 %v1264
        %v1706 = vpop.f32.mrf.mxu0
        %v1707 = vadd.f32 0.0, %v1706
        %v1708 = vpop.f32.mrf.mxu0
        %v1709 = vadd.f32 0.0, %v1708
        %v1710 = vpop.f32.mrf.mxu0
        %v1711 = vadd.f32 0.0, %v1710
        %v1712 = vpop.f32.mrf.mxu0
        %v1713 = vadd.f32 0.0, %v1712
        %1714 = vmatprep.mubr.bf16.mxu0 0
        %1715 = vmatmul.mubr.bf16.gmra.mxu0 %v1267
        %v1716 = vpop.f32.mrf.mxu0
        %v1717 = vadd.f32 0.0, %v1716
        %v1718 = vpop.f32.mrf.mxu0
        %v1719 = vadd.f32 0.0, %v1718
        %v1720 = vpop.f32.mrf.mxu0
        %v1721 = vpop.f32.mrf.mxu0
        %1722 = vdwg.mxu0
        %1723 = vmatprep.subr.bf16.mxu0 0
        %1724 = vmatpush1.bf16.msra.mxu0 0
        %1725 = vmatprep.subr.bf16.mxu0 0
        %1726 = vmatpush1.bf16.msra.mxu0 0
        %1727 = vmatprep.subr.bf16.mxu0 0
        %1728 = vmatpush1.bf16.msra.mxu0 0
        %1729 = vmatprep.subr.bf16.mxu0 0
        %1730 = vmatpush1.bf16.msra.mxu0 0
        %1731 = vmatprep.subr.bf16.mxu0 0
        %1732 = vmatpush1.bf16.msra.mxu0 0
        %1733 = vmatprep.subr.bf16.mxu0 0
        %1734 = vmatpush1.bf16.msra.mxu0 0
        %1735 = vmatprep.subr.bf16.mxu0 %v1316
        %1736 = vmatpush1.bf16.msra.mxu0 %v1313
        %1737 = vmatprep.subr.bf16.mxu0 %v1205
        %1738 = vmatpush1.bf16.msra.mxu0 %v1204
        %1739 = vmatprep.subr.bf16.mxu0 0
        %1740 = vmatpush2.bf16.msra.mxu0 0
        %1741 = vmatprep.subr.bf16.mxu0 0
        %1742 = vmatpush2.bf16.msra.mxu0 0
        %1743 = vmatprep.subr.bf16.mxu0 0
        %1744 = vmatpush2.bf16.msra.mxu0 0
        %1745 = vmatprep.subr.bf16.mxu0 0
        %1746 = vmatpush2.bf16.msra.mxu0 0
        %1747 = vmatprep.subr.bf16.mxu0 0
        %1748 = vmatpush2.bf16.msra.mxu0 0
        %1749 = vmatprep.subr.bf16.mxu0 0
        %1750 = vmatpush2.bf16.msra.mxu0 0
        %1751 = vmatprep.subr.bf16.mxu0 0
        %1752 = vmatpush2.bf16.msra.mxu0 0
        %1753 = vmatprep.subr.bf16.mxu0 0
        %1754 = vmatpush2.bf16.msra.mxu0 0
        %1755 = vmatprep.mubr.bf16.mxu0 0
        %1756 = vmatmul.mubr.bf16.gmra.mxu0 %v1264
        %v1757 = vpop.f32.mrf.mxu0
        %v1758 = vadd.f32 0.0, %v1757
        %v1759 = vpop.f32.mrf.mxu0
        %v1760 = vadd.f32 0.0, %v1759
        %v1761 = vpop.f32.mrf.mxu0
        %v1762 = vadd.f32 0.0, %v1761
        %v1763 = vpop.f32.mrf.mxu0
        %v1764 = vadd.f32 0.0, %v1763
        %1765 = vmatprep.mubr.bf16.mxu0 0
        %1766 = vmatmul.mubr.bf16.gmra.mxu0 %v1267
        %v1767 = vpop.f32.mrf.mxu0
        %v1768 = vadd.f32 0.0, %v1767
        %v1769 = vpop.f32.mrf.mxu0
        %v1770 = vadd.f32 0.0, %v1769
        %v1771 = vpop.f32.mrf.mxu0
        %v1772 = vpop.f32.mrf.mxu0
        %1773 = vdwg.mxu0
        %1774 = vmatprep.subr.bf16.mxu0 0
        %1775 = vmatpush1.bf16.msra.mxu0 0
        %1776 = vmatprep.subr.bf16.mxu0 0
        %1777 = vmatpush1.bf16.msra.mxu0 0
        %1778 = vmatprep.subr.bf16.mxu0 0
        %1779 = vmatpush1.bf16.msra.mxu0 0
        %1780 = vmatprep.subr.bf16.mxu0 0
        %1781 = vmatpush1.bf16.msra.mxu0 0
        %1782 = vmatprep.subr.bf16.mxu0 0
        %1783 = vmatpush1.bf16.msra.mxu0 0
        %1784 = vmatprep.subr.bf16.mxu0 0
        %1785 = vmatpush1.bf16.msra.mxu0 0
        %1786 = vmatprep.subr.bf16.mxu0 %v1322
        %1787 = vmatpush1.bf16.msra.mxu0 %v1319
        %1788 = vmatprep.subr.bf16.mxu0 %v1207
        %1789 = vmatpush1.bf16.msra.mxu0 %v1206
        %1790 = vmatprep.subr.bf16.mxu0 0
        %1791 = vmatpush2.bf16.msra.mxu0 0
        %1792 = vmatprep.subr.bf16.mxu0 0
        %1793 = vmatpush2.bf16.msra.mxu0 0
        %1794 = vmatprep.subr.bf16.mxu0 0
        %1795 = vmatpush2.bf16.msra.mxu0 0
        %1796 = vmatprep.subr.bf16.mxu0 0
        %1797 = vmatpush2.bf16.msra.mxu0 0
        %1798 = vmatprep.subr.bf16.mxu0 0
        %1799 = vmatpush2.bf16.msra.mxu0 0
        %1800 = vmatprep.subr.bf16.mxu0 0
        %1801 = vmatpush2.bf16.msra.mxu0 0
        %1802 = vmatprep.subr.bf16.mxu0 0
        %1803 = vmatpush2.bf16.msra.mxu0 0
        %1804 = vmatprep.subr.bf16.mxu0 0
        %1805 = vmatpush2.bf16.msra.mxu0 0
        %1806 = vmatprep.mubr.bf16.mxu0 0
        %1807 = vmatmul.mubr.bf16.gmra.mxu0 %v1264
        %v1808 = vpop.f32.mrf.mxu0
        %v1809 = vadd.f32 0.0, %v1808
        %v1810 = vpop.f32.mrf.mxu0
        %v1811 = vadd.f32 0.0, %v1810
        %v1812 = vpop.f32.mrf.mxu0
        %v1813 = vadd.f32 0.0, %v1812
        %v1814 = vpop.f32.mrf.mxu0
        %v1815 = vadd.f32 0.0, %v1814
        %1816 = vmatprep.mubr.bf16.mxu0 0
        %1817 = vmatmul.mubr.bf16.gmra.mxu0 %v1267
        %v1818 = vpop.f32.mrf.mxu0
        %v1819 = vadd.f32 0.0, %v1818
        %v1820 = vpop.f32.mrf.mxu0
        %v1821 = vadd.f32 0.0, %v1820
        %v1822 = vpop.f32.mrf.mxu0
        %v1823 = vpop.f32.mrf.mxu0
        %1824 = vdwg.mxu0
        %1825 = vmatprep.subr.bf16.mxu0 0
        %1826 = vmatpush1.bf16.msra.mxu0 0
        %1827 = vmatprep.subr.bf16.mxu0 0
        %1828 = vmatpush1.bf16.msra.mxu0 0
        %1829 = vmatprep.subr.bf16.mxu0 0
        %1830 = vmatpush1.bf16.msra.mxu0 0
        %1831 = vmatprep.subr.bf16.mxu0 0
        %1832 = vmatpush1.bf16.msra.mxu0 0
        %1833 = vmatprep.subr.bf16.mxu0 0
        %1834 = vmatpush1.bf16.msra.mxu0 0
        %1835 = vmatprep.subr.bf16.mxu0 0
        %1836 = vmatpush1.bf16.msra.mxu0 0
        %1837 = vmatprep.subr.bf16.mxu0 %v1328
        %1838 = vmatpush1.bf16.msra.mxu0 %v1325
        %1839 = vmatprep.subr.bf16.mxu0 %v1209
        %1840 = vmatpush1.bf16.msra.mxu0 %v1208
        %1841 = vmatprep.subr.bf16.mxu0 0
        %1842 = vmatpush2.bf16.msra.mxu0 0
        %1843 = vmatprep.subr.bf16.mxu0 0
        %1844 = vmatpush2.bf16.msra.mxu0 0
        %1845 = vmatprep.subr.bf16.mxu0 0
        %1846 = vmatpush2.bf16.msra.mxu0 0
        %1847 = vmatprep.subr.bf16.mxu0 0
        %1848 = vmatpush2.bf16.msra.mxu0 0
        %1849 = vmatprep.subr.bf16.mxu0 0
        %1850 = vmatpush2.bf16.msra.mxu0 0
        %1851 = vmatprep.subr.bf16.mxu0 0
        %1852 = vmatpush2.bf16.msra.mxu0 0
        %1853 = vmatprep.subr.bf16.mxu0 0
        %1854 = vmatpush2.bf16.msra.mxu0 0
        %1855 = vmatprep.subr.bf16.mxu0 0
        %1856 = vmatpush2.bf16.msra.mxu0 0
        %1857 = vmatprep.mubr.bf16.mxu0 0
        %1858 = vmatmul.mubr.bf16.gmra.mxu0 %v1264
        %v1859 = vpop.f32.mrf.mxu0
        %v1860 = vadd.f32 0.0, %v1859
        %v1861 = vpop.f32.mrf.mxu0
        %v1862 = vadd.f32 0.0, %v1861
        %v1863 = vpop.f32.mrf.mxu0
        %v1864 = vadd.f32 0.0, %v1863
        %v1865 = vpop.f32.mrf.mxu0
        %v1866 = vadd.f32 0.0, %v1865
        %1867 = vmatprep.mubr.bf16.mxu0 0
        %1868 = vmatmul.mubr.bf16.gmra.mxu0 %v1267
        %v1869 = vpop.f32.mrf.mxu0
        %v1870 = vadd.f32 0.0, %v1869
        %v1871 = vpop.f32.mrf.mxu0
        %v1872 = vadd.f32 0.0, %v1871
        %v1873 = vpop.f32.mrf.mxu0
        %v1874 = vpop.f32.mrf.mxu0
        %1875 = vdwg.mxu0
        %1876 = vmatprep.subr.bf16.mxu0 0
        %1877 = vmatpush1.bf16.msra.mxu0 0
        %1878 = vmatprep.subr.bf16.mxu0 0
        %1879 = vmatpush1.bf16.msra.mxu0 0
        %1880 = vmatprep.subr.bf16.mxu0 0
        %1881 = vmatpush1.bf16.msra.mxu0 0
        %1882 = vmatprep.subr.bf16.mxu0 0
        %1883 = vmatpush1.bf16.msra.mxu0 0
        %1884 = vmatprep.subr.bf16.mxu0 0
        %1885 = vmatpush1.bf16.msra.mxu0 0
        %1886 = vmatprep.subr.bf16.mxu0 0
        %1887 = vmatpush1.bf16.msra.mxu0 0
        %1888 = vmatprep.subr.bf16.mxu0 %v1334
        %1889 = vmatpush1.bf16.msra.mxu0 %v1331
        %1890 = vmatprep.subr.bf16.mxu0 %v1211
        %1891 = vmatpush1.bf16.msra.mxu0 %v1210
        %1892 = vmatprep.subr.bf16.mxu0 0
        %1893 = vmatpush2.bf16.msra.mxu0 0
        %1894 = vmatprep.subr.bf16.mxu0 0
        %1895 = vmatpush2.bf16.msra.mxu0 0
        %1896 = vmatprep.subr.bf16.mxu0 0
        %1897 = vmatpush2.bf16.msra.mxu0 0
        %1898 = vmatprep.subr.bf16.mxu0 0
        %1899 = vmatpush2.bf16.msra.mxu0 0
        %1900 = vmatprep.subr.bf16.mxu0 0
        %1901 = vmatpush2.bf16.msra.mxu0 0
        %1902 = vmatprep.subr.bf16.mxu0 0
        %1903 = vmatpush2.bf16.msra.mxu0 0
        %1904 = vmatprep.subr.bf16.mxu0 0
        %1905 = vmatpush2.bf16.msra.mxu0 0
        %1906 = vmatprep.subr.bf16.mxu0 0
        %1907 = vmatpush2.bf16.msra.mxu0 0
        %1908 = vmatprep.mubr.bf16.mxu0 0
        %1909 = vmatmul.mubr.bf16.gmra.mxu0 %v1264
        %v1910 = vpop.f32.mrf.mxu0
        %v1911 = vadd.f32 0.0, %v1910
        %v1912 = vpop.f32.mrf.mxu0
        %v1913 = vadd.f32 0.0, %v1912
        %v1914 = vpop.f32.mrf.mxu0
        %v1915 = vadd.f32 0.0, %v1914
        %v1916 = vpop.f32.mrf.mxu0
        %v1917 = vadd.f32 0.0, %v1916
        %1918 = vmatprep.mubr.bf16.mxu0 0
        %1919 = vmatmul.mubr.bf16.gmra.mxu0 %v1267
        %v1920 = vpop.f32.mrf.mxu0
        %v1921 = vadd.f32 0.0, %v1920
        %v1922 = vpop.f32.mrf.mxu0
        %v1923 = vadd.f32 0.0, %v1922
        %v1924 = vpop.f32.mrf.mxu0
        %v1925 = vpop.f32.mrf.mxu0
        %1926 = vdwg.mxu0
        %1927 = vmatprep.subr.bf16.mxu0 0
        %1928 = vmatpush1.bf16.msra.mxu0 0
        %1929 = vmatprep.subr.bf16.mxu0 0
        %1930 = vmatpush1.bf16.msra.mxu0 0
        %1931 = vmatprep.subr.bf16.mxu0 0
        %1932 = vmatpush1.bf16.msra.mxu0 0
        %1933 = vmatprep.subr.bf16.mxu0 0
        %1934 = vmatpush1.bf16.msra.mxu0 0
        %1935 = vmatprep.subr.bf16.mxu0 0
        %1936 = vmatpush1.bf16.msra.mxu0 0
        %1937 = vmatprep.subr.bf16.mxu0 0
        %1938 = vmatpush1.bf16.msra.mxu0 0
        %1939 = vmatprep.subr.bf16.mxu0 %v1340
        %1940 = vmatpush1.bf16.msra.mxu0 %v1337
        %1941 = vmatprep.subr.bf16.mxu0 %v1213
        %1942 = vmatpush1.bf16.msra.mxu0 %v1212
        %1943 = vmatprep.subr.bf16.mxu0 0
        %1944 = vmatpush2.bf16.msra.mxu0 0
        %1945 = vmatprep.subr.bf16.mxu0 0
        %1946 = vmatpush2.bf16.msra.mxu0 0
        %1947 = vmatprep.subr.bf16.mxu0 0
        %1948 = vmatpush2.bf16.msra.mxu0 0
        %1949 = vmatprep.subr.bf16.mxu0 0
        %1950 = vmatpush2.bf16.msra.mxu0 0
        %1951 = vmatprep.subr.bf16.mxu0 0
        %1952 = vmatpush2.bf16.msra.mxu0 0
        %1953 = vmatprep.subr.bf16.mxu0 0
        %1954 = vmatpush2.bf16.msra.mxu0 0
        %1955 = vmatprep.subr.bf16.mxu0 0
        %1956 = vmatpush2.bf16.msra.mxu0 0
        %1957 = vmatprep.subr.bf16.mxu0 0
        %1958 = vmatpush2.bf16.msra.mxu0 0
        %1959 = vmatprep.mubr.bf16.mxu0 0
        %1960 = vmatmul.mubr.bf16.gmra.mxu0 %v1264
        %v1961 = vpop.f32.mrf.mxu0
        %v1962 = vadd.f32 0.0, %v1961
        %v1963 = vpop.f32.mrf.mxu0
        %v1964 = vadd.f32 0.0, %v1963
        %v1965 = vpop.f32.mrf.mxu0
        %v1966 = vadd.f32 0.0, %v1965
        %v1967 = vpop.f32.mrf.mxu0
        %v1968 = vadd.f32 0.0, %v1967
        %1969 = vmatprep.mubr.bf16.mxu0 0
        %1970 = vmatmul.mubr.bf16.gmra.mxu0 %v1267
        %v1971 = vpop.f32.mrf.mxu0
        %v1972 = vadd.f32 0.0, %v1971
        %v1973 = vpop.f32.mrf.mxu0
        %v1974 = vadd.f32 0.0, %v1973
        %v1975 = vpop.f32.mrf.mxu0
        %v1976 = vpop.f32.mrf.mxu0
        %1977 = vdwg.mxu0
        %1978 = vmatprep.subr.bf16.mxu0 0
        %1979 = vmatpush1.bf16.msra.mxu0 0
        %1980 = vmatprep.subr.bf16.mxu0 0
        %1981 = vmatpush1.bf16.msra.mxu0 0
        %1982 = vmatprep.subr.bf16.mxu0 0
        %1983 = vmatpush1.bf16.msra.mxu0 0
        %1984 = vmatprep.subr.bf16.mxu0 0
        %1985 = vmatpush1.bf16.msra.mxu0 0
        %1986 = vmatprep.subr.bf16.mxu0 0
        %1987 = vmatpush1.bf16.msra.mxu0 0
        %1988 = vmatprep.subr.bf16.mxu0 0
        %1989 = vmatpush1.bf16.msra.mxu0 0
        %1990 = vmatprep.subr.bf16.mxu0 %v1346
        %1991 = vmatpush1.bf16.msra.mxu0 %v1343
        %1992 = vmatprep.subr.bf16.mxu0 %v1215
        %1993 = vmatpush1.bf16.msra.mxu0 %v1214
        %1994 = vmatprep.subr.bf16.mxu0 0
        %1995 = vmatpush2.bf16.msra.mxu0 0
        %1996 = vmatprep.subr.bf16.mxu0 0
        %1997 = vmatpush2.bf16.msra.mxu0 0
        %1998 = vmatprep.subr.bf16.mxu0 0
        %1999 = vmatpush2.bf16.msra.mxu0 0
        %2000 = vmatprep.subr.bf16.mxu0 0
        %2001 = vmatpush2.bf16.msra.mxu0 0
        %2002 = vmatprep.subr.bf16.mxu0 0
        %2003 = vmatpush2.bf16.msra.mxu0 0
        %2004 = vmatprep.subr.bf16.mxu0 0
        %2005 = vmatpush2.bf16.msra.mxu0 0
        %2006 = vmatprep.subr.bf16.mxu0 0
        %2007 = vmatpush2.bf16.msra.mxu0 0
        %2008 = vmatprep.subr.bf16.mxu0 0
        %2009 = vmatpush2.bf16.msra.mxu0 0
        %2010 = vmatprep.mubr.bf16.mxu0 0
        %2011 = vmatmul.mubr.bf16.gmra.mxu0 %v1264
        %v2012 = vpop.f32.mrf.mxu0
        %v2013 = vadd.f32 0.0, %v2012
        %v2014 = vpop.f32.mrf.mxu0
        %v2015 = vadd.f32 0.0, %v2014
        %v2016 = vpop.f32.mrf.mxu0
        %v2017 = vadd.f32 0.0, %v2016
        %v2018 = vpop.f32.mrf.mxu0
        %v2019 = vadd.f32 0.0, %v2018
        %2020 = vmatprep.mubr.bf16.mxu0 0
        %2021 = vmatmul.mubr.bf16.gmra.mxu0 %v1267
        %v2022 = vpop.f32.mrf.mxu0
        %v2023 = vadd.f32 0.0, %v2022
        %v2024 = vpop.f32.mrf.mxu0
        %v2025 = vadd.f32 0.0, %v2024
        %v2026 = vpop.f32.mrf.mxu0
        %v2027 = vpop.f32.mrf.mxu0
        %2028 = vdwg.mxu0
        %2029 = vmatprep.subr.bf16.mxu0 0
        %2030 = vmatpush1.bf16.msra.mxu0 0
        %2031 = vmatprep.subr.bf16.mxu0 0
        %2032 = vmatpush1.bf16.msra.mxu0 0
        %2033 = vmatprep.subr.bf16.mxu0 0
        %2034 = vmatpush1.bf16.msra.mxu0 0
        %2035 = vmatprep.subr.bf16.mxu0 0
        %2036 = vmatpush1.bf16.msra.mxu0 0
        %2037 = vmatprep.subr.bf16.mxu0 0
        %2038 = vmatpush1.bf16.msra.mxu0 0
        %2039 = vmatprep.subr.bf16.mxu0 0
        %2040 = vmatpush1.bf16.msra.mxu0 0
        %2041 = vmatprep.subr.bf16.mxu0 %v1352
        %2042 = vmatpush1.bf16.msra.mxu0 %v1349
        %2043 = vmatprep.subr.bf16.mxu0 %v1217
        %2044 = vmatpush1.bf16.msra.mxu0 %v1216
        %2045 = vmatprep.subr.bf16.mxu0 0
        %2046 = vmatpush2.bf16.msra.mxu0 0
        %2047 = vmatprep.subr.bf16.mxu0 0
        %2048 = vmatpush2.bf16.msra.mxu0 0
        %2049 = vmatprep.subr.bf16.mxu0 0
        %2050 = vmatpush2.bf16.msra.mxu0 0
        %2051 = vmatprep.subr.bf16.mxu0 0
        %2052 = vmatpush2.bf16.msra.mxu0 0
        %2053 = vmatprep.subr.bf16.mxu0 0
        %2054 = vmatpush2.bf16.msra.mxu0 0
        %2055 = vmatprep.subr.bf16.mxu0 0
        %2056 = vmatpush2.bf16.msra.mxu0 0
        %2057 = vmatprep.subr.bf16.mxu0 0
        %2058 = vmatpush2.bf16.msra.mxu0 0
        %2059 = vmatprep.subr.bf16.mxu0 0
        %2060 = vmatpush2.bf16.msra.mxu0 0
        %2061 = vmatprep.mubr.bf16.mxu0 0
        %2062 = vmatmul.mubr.bf16.gmra.mxu0 %v1264
        %v2063 = vpop.f32.mrf.mxu0
        %v2064 = vadd.f32 0.0, %v2063
        %v2065 = vpop.f32.mrf.mxu0
        %v2066 = vadd.f32 0.0, %v2065
        %v2067 = vpop.f32.mrf.mxu0
        %v2068 = vadd.f32 0.0, %v2067
        %v2069 = vpop.f32.mrf.mxu0
        %v2070 = vadd.f32 0.0, %v2069
        %2071 = vmatprep.mubr.bf16.mxu0 0
        %2072 = vmatmul.mubr.bf16.gmra.mxu0 %v1267
        %v2073 = vpop.f32.mrf.mxu0
        %v2074 = vadd.f32 0.0, %v2073
        %v2075 = vpop.f32.mrf.mxu0
        %v2076 = vadd.f32 0.0, %v2075
        %v2077 = vpop.f32.mrf.mxu0
        %v2078 = vpop.f32.mrf.mxu0
        %2079 = vdwg.mxu0
        %2080 = vmatprep.subr.bf16.mxu0 0
        %2081 = vmatpush1.bf16.msra.mxu0 0
        %2082 = vmatprep.subr.bf16.mxu0 0
        %2083 = vmatpush1.bf16.msra.mxu0 0
        %2084 = vmatprep.subr.bf16.mxu0 0
        %2085 = vmatpush1.bf16.msra.mxu0 0
        %2086 = vmatprep.subr.bf16.mxu0 0
        %2087 = vmatpush1.bf16.msra.mxu0 0
        %2088 = vmatprep.subr.bf16.mxu0 0
        %2089 = vmatpush1.bf16.msra.mxu0 0
        %2090 = vmatprep.subr.bf16.mxu0 0
        %2091 = vmatpush1.bf16.msra.mxu0 0
        %2092 = vmatprep.subr.bf16.mxu0 %v1358
        %2093 = vmatpush1.bf16.msra.mxu0 %v1355
        %2094 = vmatprep.subr.bf16.mxu0 %v1219
        %2095 = vmatpush1.bf16.msra.mxu0 %v1218
        %2096 = vmatprep.subr.bf16.mxu0 0
        %2097 = vmatpush2.bf16.msra.mxu0 0
        %2098 = vmatprep.subr.bf16.mxu0 0
        %2099 = vmatpush2.bf16.msra.mxu0 0
        %2100 = vmatprep.subr.bf16.mxu0 0
        %2101 = vmatpush2.bf16.msra.mxu0 0
        %2102 = vmatprep.subr.bf16.mxu0 0
        %2103 = vmatpush2.bf16.msra.mxu0 0
        %2104 = vmatprep.subr.bf16.mxu0 0
        %2105 = vmatpush2.bf16.msra.mxu0 0
        %2106 = vmatprep.subr.bf16.mxu0 0
        %2107 = vmatpush2.bf16.msra.mxu0 0
        %2108 = vmatprep.subr.bf16.mxu0 0
        %2109 = vmatpush2.bf16.msra.mxu0 0
        %2110 = vmatprep.subr.bf16.mxu0 0
        %2111 = vmatpush2.bf16.msra.mxu0 0
        %2112 = vmatprep.mubr.bf16.mxu0 0
        %2113 = vmatmul.mubr.bf16.gmra.mxu0 %v1264
        %v2114 = vpop.f32.mrf.mxu0
        %v2115 = vadd.f32 0.0, %v2114
        %v2116 = vpop.f32.mrf.mxu0
        %v2117 = vadd.f32 0.0, %v2116
        %v2118 = vpop.f32.mrf.mxu0
        %v2119 = vadd.f32 0.0, %v2118
        %v2120 = vpop.f32.mrf.mxu0
        %v2121 = vadd.f32 0.0, %v2120
        %2122 = vmatprep.mubr.bf16.mxu0 0
        %2123 = vmatmul.mubr.bf16.gmra.mxu0 %v1267
        %v2124 = vpop.f32.mrf.mxu0
        %v2125 = vadd.f32 0.0, %v2124
        %v2126 = vpop.f32.mrf.mxu0
        %v2127 = vadd.f32 0.0, %v2126
        %v2128 = vpop.f32.mrf.mxu0
        %v2129 = vpop.f32.mrf.mxu0
        %2130 = vdwg.mxu0
        %2131 = vmatprep.subr.bf16.mxu0 0
        %2132 = vmatpush1.bf16.msra.mxu0 0
        %2133 = vmatprep.subr.bf16.mxu0 0
        %2134 = vmatpush1.bf16.msra.mxu0 0
        %2135 = vmatprep.subr.bf16.mxu0 0
        %2136 = vmatpush1.bf16.msra.mxu0 0
        %2137 = vmatprep.subr.bf16.mxu0 0
        %2138 = vmatpush1.bf16.msra.mxu0 0
        %2139 = vmatprep.subr.bf16.mxu0 0
        %2140 = vmatpush1.bf16.msra.mxu0 0
        %2141 = vmatprep.subr.bf16.mxu0 0
        %2142 = vmatpush1.bf16.msra.mxu0 0
        %2143 = vmatprep.subr.bf16.mxu0 %v1364
        %2144 = vmatpush1.bf16.msra.mxu0 %v1361
        %2145 = vmatprep.subr.bf16.mxu0 %v1221
        %2146 = vmatpush1.bf16.msra.mxu0 %v1220
        %2147 = vmatprep.subr.bf16.mxu0 0
        %2148 = vmatpush2.bf16.msra.mxu0 0
        %2149 = vmatprep.subr.bf16.mxu0 0
        %2150 = vmatpush2.bf16.msra.mxu0 0
        %2151 = vmatprep.subr.bf16.mxu0 0
        %2152 = vmatpush2.bf16.msra.mxu0 0
        %2153 = vmatprep.subr.bf16.mxu0 0
        %2154 = vmatpush2.bf16.msra.mxu0 0
        %2155 = vmatprep.subr.bf16.mxu0 0
        %2156 = vmatpush2.bf16.msra.mxu0 0
        %2157 = vmatprep.subr.bf16.mxu0 0
        %2158 = vmatpush2.bf16.msra.mxu0 0
        %2159 = vmatprep.subr.bf16.mxu0 0
        %2160 = vmatpush2.bf16.msra.mxu0 0
        %2161 = vmatprep.subr.bf16.mxu0 0
        %2162 = vmatpush2.bf16.msra.mxu0 0
        %2163 = vmatprep.mubr.bf16.mxu0 0
        %2164 = vmatmul.mubr.bf16.gmra.mxu0 %v1264
        %v2165 = vpop.f32.mrf.mxu0
        %v2166 = vadd.f32 0.0, %v2165
        %v2167 = vpop.f32.mrf.mxu0
        %v2168 = vadd.f32 0.0, %v2167
        %v2169 = vpop.f32.mrf.mxu0
        %v2170 = vadd.f32 0.0, %v2169
        %v2171 = vpop.f32.mrf.mxu0
        %v2172 = vadd.f32 0.0, %v2171
        %2173 = vmatprep.mubr.bf16.mxu0 0
        %2174 = vmatmul.mubr.bf16.gmra.mxu0 %v1267
        %v2175 = vpop.f32.mrf.mxu0
        %v2176 = vadd.f32 0.0, %v2175
        %v2177 = vpop.f32.mrf.mxu0
        %v2178 = vadd.f32 0.0, %v2177
        %v2179 = vpop.f32.mrf.mxu0
        %v2180 = vpop.f32.mrf.mxu0
        %2181 = vdwg.mxu0
        %2182 = vrot.lane.b32.xlu0 %v1401, 64
        %v2183 = vpop.permute.xlu0 %2182
        %2184 = vrot.lane.b32.xlu0 %v1403, 64
        %v2185 = vpop.permute.xlu0 %2184
        %2186 = vrot.lane.b32.xlu0 %v1452, 64
        %v2187 = vpop.permute.xlu0 %2186
        %2188 = vrot.lane.b32.xlu0 %v1454, 64
        %v2189 = vpop.permute.xlu0 %2188
        %2190 = vrot.lane.b32.xlu0 %v1503, 64
        %v2191 = vpop.permute.xlu0 %2190
        %2192 = vrot.lane.b32.xlu0 %v1505, 64
        %v2193 = vpop.permute.xlu0 %2192
        %2194 = vrot.lane.b32.xlu0 %v1554, 64
        %v2195 = vpop.permute.xlu0 %2194
        %2196 = vrot.lane.b32.xlu0 %v1556, 64
        %v2197 = vpop.permute.xlu0 %2196
        %2198 = vrot.lane.b32.xlu0 %v1605, 64
        %v2199 = vpop.permute.xlu0 %2198
        %2200 = vrot.lane.b32.xlu0 %v1607, 64
        %v2201 = vpop.permute.xlu0 %2200
        %2202 = vrot.lane.b32.xlu0 %v1656, 64
        %v2203 = vpop.permute.xlu0 %2202
        %2204 = vrot.lane.b32.xlu0 %v1658, 64
        %v2205 = vpop.permute.xlu0 %2204
        %2206 = vrot.lane.b32.xlu0 %v1707, 64
        %v2207 = vpop.permute.xlu0 %2206
        %2208 = vrot.lane.b32.xlu0 %v1709, 64
        %v2209 = vpop.permute.xlu0 %2208
        %2210 = vrot.lane.b32.xlu0 %v1758, 64
        %v2211 = vpop.permute.xlu0 %2210
        %2212 = vrot.lane.b32.xlu0 %v1760, 64
        %v2213 = vpop.permute.xlu0 %2212
        %2214 = vrot.lane.b32.xlu0 %v1809, 64
        %v2215 = vpop.permute.xlu0 %2214
        %2216 = vrot.lane.b32.xlu0 %v1811, 64
        %v2217 = vpop.permute.xlu0 %2216
        %2218 = vrot.lane.b32.xlu0 %v1860, 64
        %v2219 = vpop.permute.xlu0 %2218
        %2220 = vrot.lane.b32.xlu0 %v1862, 64
        %v2221 = vpop.permute.xlu0 %2220
        %2222 = vrot.lane.b32.xlu0 %v1911, 64
        %v2223 = vpop.permute.xlu0 %2222
        %2224 = vrot.lane.b32.xlu0 %v1913, 64
        %v2225 = vpop.permute.xlu0 %2224
        %2226 = vrot.lane.b32.xlu0 %v1962, 64
        %v2227 = vpop.permute.xlu0 %2226
        %2228 = vrot.lane.b32.xlu0 %v1964, 64
        %v2229 = vpop.permute.xlu0 %2228
        %2230 = vrot.lane.b32.xlu0 %v2013, 64
        %v2231 = vpop.permute.xlu0 %2230
        %2232 = vrot.lane.b32.xlu0 %v2015, 64
        %v2233 = vpop.permute.xlu0 %2232
        %2234 = vrot.lane.b32.xlu0 %v2064, 64
        %v2235 = vpop.permute.xlu0 %2234
        %2236 = vrot.lane.b32.xlu0 %v2066, 64
        %v2237 = vpop.permute.xlu0 %2236
        %2238 = vrot.lane.b32.xlu0 %v2115, 64
        %v2239 = vpop.permute.xlu0 %2238
        %2240 = vrot.lane.b32.xlu0 %v2117, 64
        %v2241 = vpop.permute.xlu0 %2240
        %2242 = vrot.lane.b32.xlu0 %v2166, 64
        %v2243 = vpop.permute.xlu0 %2242
        %2244 = vrot.lane.b32.xlu0 %v2168, 64
        %v2245 = vpop.permute.xlu0 %2244
        %vm2246 = vcmp.lt.s32.totalorder %v403, 64
        %v2247 = vsel %vm2246, %v2243, %v2245
        %v2248 = vsel %vm2246, %v2241, %v2243
        %v2249 = vsel %vm2246, %v2239, %v2241
        %v2250 = vsel %vm2246, %v2237, %v2239
        %v2251 = vsel %vm2246, %v2235, %v2237
        %v2252 = vsel %vm2246, %v2233, %v2235
        %v2253 = vsel %vm2246, %v2231, %v2233
        %v2254 = vsel %vm2246, %v2229, %v2231
        %v2255 = vsel %vm2246, %v2227, %v2229
        %v2256 = vsel %vm2246, %v2225, %v2227
        %v2257 = vsel %vm2246, %v2223, %v2225
        %v2258 = vsel %vm2246, %v2221, %v2223
        %v2259 = vsel %vm2246, %v2219, %v2221
        %v2260 = vsel %vm2246, %v2217, %v2219
        %v2261 = vsel %vm2246, %v2215, %v2217
        %v2262 = vsel %vm2246, %v2213, %v2215
        %v2263 = vsel %vm2246, %v2211, %v2213
        %v2264 = vsel %vm2246, %v2209, %v2211
        %v2265 = vsel %vm2246, %v2207, %v2209
        %v2266 = vsel %vm2246, %v2205, %v2207
        %v2267 = vsel %vm2246, %v2203, %v2205
        %v2268 = vsel %vm2246, %v2201, %v2203
        %v2269 = vsel %vm2246, %v2199, %v2201
        %v2270 = vsel %vm2246, %v2197, %v2199
        %v2271 = vsel %vm2246, %v2195, %v2197
        %v2272 = vsel %vm2246, %v2193, %v2195
        %v2273 = vsel %vm2246, %v2191, %v2193
        %v2274 = vsel %vm2246, %v2189, %v2191
        %v2275 = vsel %vm2246, %v2187, %v2189
        %v2276 = vsel %vm2246, %v2185, %v2187
        %v2277 = vsel %vm2246, %v2183, %v2185
        %v2278 = vsel %vm2246, %v2245, %v2183
        %v2279 = vlaneseq
        %v2280 = vshrl.u32 %v2279, 7
        %v2281 = vsub.s32 2, %v2280
        %v2282 = vrot.slane %v282, %v2281
        %v2283 = vlaneseq
        %v2284 = vshrl.u32 %v2283, 7
        %v2285 = vsub.s32 6, %v2284
        %v2286 = vrot.slane %v282, %v2285
        %v2287 = vlaneseq
        %v2288 = vshrl.u32 %v2287, 7
        %v2289 = vsub.s32 2, %v2288
        %v2290 = vrot.slane %v283, %v2289
        %v2291 = vlaneseq
        %v2292 = vshrl.u32 %v2291, 7
        %v2293 = vsub.s32 6, %v2292
        %v2294 = vrot.slane %v283, %v2293
        %v2295 = vlaneseq
        %v2296 = vshrl.u32 %v2295, 7
        %v2297 = vsub.s32 2, %v2296
        %v2298 = vrot.slane %v284, %v2297
        %v2299 = vlaneseq
        %v2300 = vshrl.u32 %v2299, 7
        %v2301 = vsub.s32 6, %v2300
        %v2302 = vrot.slane %v284, %v2301
        %v2303 = vlaneseq
        %v2304 = vshrl.u32 %v2303, 7
        %v2305 = vsub.s32 2, %v2304
        %v2306 = vrot.slane %v285, %v2305
        %v2307 = vlaneseq
        %v2308 = vshrl.u32 %v2307, 7
        %v2309 = vsub.s32 6, %v2308
        %v2310 = vrot.slane %v285, %v2309
        %v2311 = vlaneseq
        %v2312 = vshrl.u32 %v2311, 7
        %v2313 = vsub.s32 2, %v2312
        %v2314 = vrot.slane %v286, %v2313
        %v2315 = vlaneseq
        %v2316 = vshrl.u32 %v2315, 7
        %v2317 = vsub.s32 6, %v2316
        %v2318 = vrot.slane %v286, %v2317
        %v2319 = vlaneseq
        %v2320 = vshrl.u32 %v2319, 7
        %v2321 = vsub.s32 2, %v2320
        %v2322 = vrot.slane %v287, %v2321
        %v2323 = vlaneseq
        %v2324 = vshrl.u32 %v2323, 7
        %v2325 = vsub.s32 6, %v2324
        %v2326 = vrot.slane %v287, %v2325
        %v2327 = vlaneseq
        %v2328 = vshrl.u32 %v2327, 7
        %v2329 = vsub.s32 2, %v2328
        %v2330 = vrot.slane %v288, %v2329
        %v2331 = vlaneseq
        %v2332 = vshrl.u32 %v2331, 7
        %v2333 = vsub.s32 6, %v2332
        %v2334 = vrot.slane %v288, %v2333
        %v2335 = vlaneseq
        %v2336 = vshrl.u32 %v2335, 7
        %v2337 = vsub.s32 2, %v2336
        %v2338 = vrot.slane %v289, %v2337
        %v2339 = vlaneseq
        %v2340 = vshrl.u32 %v2339, 7
        %v2341 = vsub.s32 6, %v2340
        %v2342 = vrot.slane %v289, %v2341
        %v2343 = vlaneseq
        %v2344 = vshrl.u32 %v2343, 7
        %v2345 = vsub.s32 2, %v2344
        %v2346 = vrot.slane %v290, %v2345
        %v2347 = vlaneseq
        %v2348 = vshrl.u32 %v2347, 7
        %v2349 = vsub.s32 6, %v2348
        %v2350 = vrot.slane %v290, %v2349
        %v2351 = vlaneseq
        %v2352 = vshrl.u32 %v2351, 7
        %v2353 = vsub.s32 2, %v2352
        %v2354 = vrot.slane %v291, %v2353
        %v2355 = vlaneseq
        %v2356 = vshrl.u32 %v2355, 7
        %v2357 = vsub.s32 6, %v2356
        %v2358 = vrot.slane %v291, %v2357
        %v2359 = vlaneseq
        %v2360 = vshrl.u32 %v2359, 7
        %v2361 = vsub.s32 2, %v2360
        %v2362 = vrot.slane %v292, %v2361
        %v2363 = vlaneseq
        %v2364 = vshrl.u32 %v2363, 7
        %v2365 = vsub.s32 6, %v2364
        %v2366 = vrot.slane %v292, %v2365
        %v2367 = vlaneseq
        %v2368 = vshrl.u32 %v2367, 7
        %v2369 = vsub.s32 2, %v2368
        %v2370 = vrot.slane %v293, %v2369
        %v2371 = vlaneseq
        %v2372 = vshrl.u32 %v2371, 7
        %v2373 = vsub.s32 6, %v2372
        %v2374 = vrot.slane %v293, %v2373
        %v2375 = vlaneseq
        %v2376 = vshrl.u32 %v2375, 7
        %v2377 = vsub.s32 2, %v2376
        %v2378 = vrot.slane %v294, %v2377
        %v2379 = vlaneseq
        %v2380 = vshrl.u32 %v2379, 7
        %v2381 = vsub.s32 6, %v2380
        %v2382 = vrot.slane %v294, %v2381
        %v2383 = vlaneseq
        %v2384 = vshrl.u32 %v2383, 7
        %v2385 = vsub.s32 2, %v2384
        %v2386 = vrot.slane %v295, %v2385
        %v2387 = vlaneseq
        %v2388 = vshrl.u32 %v2387, 7
        %v2389 = vsub.s32 6, %v2388
        %v2390 = vrot.slane %v295, %v2389
        %v2391 = vlaneseq
        %v2392 = vshrl.u32 %v2391, 7
        %v2393 = vsub.s32 2, %v2392
        %v2394 = vrot.slane %v296, %v2393
        %v2395 = vlaneseq
        %v2396 = vshrl.u32 %v2395, 7
        %v2397 = vsub.s32 6, %v2396
        %v2398 = vrot.slane %v296, %v2397
        %v2399 = vlaneseq
        %v2400 = vshrl.u32 %v2399, 7
        %v2401 = vsub.s32 2, %v2400
        %v2402 = vrot.slane %v297, %v2401
        %v2403 = vlaneseq
        %v2404 = vshrl.u32 %v2403, 7
        %v2405 = vsub.s32 6, %v2404
        %v2406 = vrot.slane %v297, %v2405
        %v2439 = vlaneseq
        %v2440 = vshrl.u32 %v2439, 7
        %v2441 = vsub.s32 2, %v2440
        %v2442 = vrot.slane %v2282, %v2441
        %v2443 = vlaneseq
        %v2444 = vshrl.u32 %v2443, 7
        %v2445 = vsub.s32 2, %v2444
        %v2446 = vrot.slane %v2286, %v2445
        %v2447 = vlaneseq
        %v2448 = vshrl.u32 %v2447, 7
        %v2449 = vsub.s32 2, %v2448
        %v2450 = vrot.slane %v2290, %v2449
        %v2451 = vlaneseq
        %v2452 = vshrl.u32 %v2451, 7
        %v2453 = vsub.s32 2, %v2452
        %v2454 = vrot.slane %v2294, %v2453
        %v2455 = vlaneseq
        %v2456 = vshrl.u32 %v2455, 7
        %v2457 = vsub.s32 2, %v2456
        %v2458 = vrot.slane %v2298, %v2457
        %v2459 = vlaneseq
        %v2460 = vshrl.u32 %v2459, 7
        %v2461 = vsub.s32 2, %v2460
        %v2462 = vrot.slane %v2302, %v2461
        %v2463 = vlaneseq
        %v2464 = vshrl.u32 %v2463, 7
        %v2465 = vsub.s32 2, %v2464
        %v2466 = vrot.slane %v2306, %v2465
        %v2467 = vlaneseq
        %v2468 = vshrl.u32 %v2467, 7
        %v2469 = vsub.s32 2, %v2468
        %v2470 = vrot.slane %v2310, %v2469
        %v2471 = vlaneseq
        %v2472 = vshrl.u32 %v2471, 7
        %v2473 = vsub.s32 2, %v2472
        %v2474 = vrot.slane %v2314, %v2473
        %v2475 = vlaneseq
        %v2476 = vshrl.u32 %v2475, 7
        %v2477 = vsub.s32 2, %v2476
        %v2478 = vrot.slane %v2318, %v2477
        %v2479 = vlaneseq
        %v2480 = vshrl.u32 %v2479, 7
        %v2481 = vsub.s32 2, %v2480
        %v2482 = vrot.slane %v2322, %v2481
        %v2483 = vlaneseq
        %v2484 = vshrl.u32 %v2483, 7
        %v2485 = vsub.s32 2, %v2484
        %v2486 = vrot.slane %v2326, %v2485
        %v2487 = vlaneseq
        %v2488 = vshrl.u32 %v2487, 7
        %v2489 = vsub.s32 2, %v2488
        %v2490 = vrot.slane %v2330, %v2489
        %v2491 = vlaneseq
        %v2492 = vshrl.u32 %v2491, 7
        %v2493 = vsub.s32 2, %v2492
        %v2494 = vrot.slane %v2334, %v2493
        %v2495 = vlaneseq
        %v2496 = vshrl.u32 %v2495, 7
        %v2497 = vsub.s32 2, %v2496
        %v2498 = vrot.slane %v2338, %v2497
        %v2499 = vlaneseq
        %v2500 = vshrl.u32 %v2499, 7
        %v2501 = vsub.s32 2, %v2500
        %v2502 = vrot.slane %v2342, %v2501
        %v2503 = vlaneseq
        %v2504 = vshrl.u32 %v2503, 7
        %v2505 = vsub.s32 2, %v2504
        %v2506 = vrot.slane %v2346, %v2505
        %v2507 = vlaneseq
        %v2508 = vshrl.u32 %v2507, 7
        %v2509 = vsub.s32 2, %v2508
        %v2510 = vrot.slane %v2350, %v2509
        %v2511 = vlaneseq
        %v2512 = vshrl.u32 %v2511, 7
        %v2513 = vsub.s32 2, %v2512
        %v2514 = vrot.slane %v2354, %v2513
        %v2515 = vlaneseq
        %v2516 = vshrl.u32 %v2515, 7
        %v2517 = vsub.s32 2, %v2516
        %v2518 = vrot.slane %v2358, %v2517
        %v2519 = vlaneseq
        %v2520 = vshrl.u32 %v2519, 7
        %v2521 = vsub.s32 2, %v2520
        %v2522 = vrot.slane %v2362, %v2521
        %v2523 = vlaneseq
        %v2524 = vshrl.u32 %v2523, 7
        %v2525 = vsub.s32 2, %v2524
        %v2526 = vrot.slane %v2366, %v2525
        %v2527 = vlaneseq
        %v2528 = vshrl.u32 %v2527, 7
        %v2529 = vsub.s32 2, %v2528
        %v2530 = vrot.slane %v2370, %v2529
        %v2531 = vlaneseq
        %v2532 = vshrl.u32 %v2531, 7
        %v2533 = vsub.s32 2, %v2532
        %v2534 = vrot.slane %v2374, %v2533
        %v2535 = vlaneseq
        %v2536 = vshrl.u32 %v2535, 7
        %v2537 = vsub.s32 2, %v2536
        %v2538 = vrot.slane %v2378, %v2537
        %v2539 = vlaneseq
        %v2540 = vshrl.u32 %v2539, 7
        %v2541 = vsub.s32 2, %v2540
        %v2542 = vrot.slane %v2382, %v2541
        %v2543 = vlaneseq
        %v2544 = vshrl.u32 %v2543, 7
        %v2545 = vsub.s32 2, %v2544
        %v2546 = vrot.slane %v2386, %v2545
        %v2547 = vlaneseq
        %v2548 = vshrl.u32 %v2547, 7
        %v2549 = vsub.s32 2, %v2548
        %v2550 = vrot.slane %v2390, %v2549
        %v2551 = vlaneseq
        %v2552 = vshrl.u32 %v2551, 7
        %v2553 = vsub.s32 2, %v2552
        %v2554 = vrot.slane %v2394, %v2553
        %v2555 = vlaneseq
        %v2556 = vshrl.u32 %v2555, 7
        %v2557 = vsub.s32 2, %v2556
        %v2558 = vrot.slane %v2398, %v2557
        %v2559 = vlaneseq
        %v2560 = vshrl.u32 %v2559, 7
        %v2561 = vsub.s32 2, %v2560
        %v2562 = vrot.slane %v2402, %v2561
        %v2563 = vlaneseq
        %v2564 = vshrl.u32 %v2563, 7
        %v2565 = vsub.s32 2, %v2564
        %v2566 = vrot.slane %v2406, %v2565
        %v2567 = vmul.f32 %v2278, %v2442
        %v2568 = vmul.f32 %v2277, %v2446
        %v2569 = vmul.f32 %v2276, %v2450
        %v2570 = vmul.f32 %v2275, %v2454
        %v2571 = vmul.f32 %v2274, %v2458
        %v2572 = vmul.f32 %v2273, %v2462
        %v2573 = vmul.f32 %v2272, %v2466
        %v2574 = vmul.f32 %v2271, %v2470
        %v2575 = vmul.f32 %v2270, %v2474
        %v2576 = vmul.f32 %v2269, %v2478
        %v2577 = vmul.f32 %v2268, %v2482
        %v2578 = vmul.f32 %v2267, %v2486
        %v2579 = vmul.f32 %v2266, %v2490
        %v2580 = vmul.f32 %v2265, %v2494
        %v2581 = vmul.f32 %v2264, %v2498
        %v2582 = vmul.f32 %v2263, %v2502
        %v2583 = vmul.f32 %v2262, %v2506
        %v2584 = vmul.f32 %v2261, %v2510
        %v2585 = vmul.f32 %v2260, %v2514
        %v2586 = vmul.f32 %v2259, %v2518
        %v2587 = vmul.f32 %v2258, %v2522
        %v2588 = vmul.f32 %v2257, %v2526
        %v2589 = vmul.f32 %v2256, %v2530
        %v2590 = vmul.f32 %v2255, %v2534
        %v2591 = vmul.f32 %v2254, %v2538
        %v2592 = vmul.f32 %v2253, %v2542
        %v2593 = vmul.f32 %v2252, %v2546
        %v2594 = vmul.f32 %v2251, %v2550
        %v2595 = vmul.f32 %v2250, %v2554
        %v2596 = vmul.f32 %v2249, %v2558
        %v2597 = vmul.f32 %v2248, %v2562
        %v2598 = vmul.f32 %v2247, %v2566
        %2599 = vrot.lane.b32.xlu0 %v1411, 64
        %v2600 = vpop.permute.xlu0 %2599
        %2601 = vrot.lane.b32.xlu0 %v1413, 64
        %v2602 = vpop.permute.xlu0 %2601
        %2603 = vrot.lane.b32.xlu0 %v1462, 64
        %v2604 = vpop.permute.xlu0 %2603
        %2605 = vrot.lane.b32.xlu0 %v1464, 64
        %v2606 = vpop.permute.xlu0 %2605
        %2607 = vrot.lane.b32.xlu0 %v1513, 64
        %v2608 = vpop.permute.xlu0 %2607
        %2609 = vrot.lane.b32.xlu0 %v1515, 64
        %v2610 = vpop.permute.xlu0 %2609
        %2611 = vrot.lane.b32.xlu0 %v1564, 64
        %v2612 = vpop.permute.xlu0 %2611
        %2613 = vrot.lane.b32.xlu0 %v1566, 64
        %v2614 = vpop.permute.xlu0 %2613
        %2615 = vrot.lane.b32.xlu0 %v1615, 64
        %v2616 = vpop.permute.xlu0 %2615
        %2617 = vrot.lane.b32.xlu0 %v1617, 64
        %v2618 = vpop.permute.xlu0 %2617
        %2619 = vrot.lane.b32.xlu0 %v1666, 64
        %v2620 = vpop.permute.xlu0 %2619
        %2621 = vrot.lane.b32.xlu0 %v1668, 64
        %v2622 = vpop.permute.xlu0 %2621
        %2623 = vrot.lane.b32.xlu0 %v1717, 64
        %v2624 = vpop.permute.xlu0 %2623
        %2625 = vrot.lane.b32.xlu0 %v1719, 64
        %v2626 = vpop.permute.xlu0 %2625
        %2627 = vrot.lane.b32.xlu0 %v1768, 64
        %v2628 = vpop.permute.xlu0 %2627
        %2629 = vrot.lane.b32.xlu0 %v1770, 64
        %v2630 = vpop.permute.xlu0 %2629
        %2631 = vrot.lane.b32.xlu0 %v1819, 64
        %v2632 = vpop.permute.xlu0 %2631
        %2633 = vrot.lane.b32.xlu0 %v1821, 64
        %v2634 = vpop.permute.xlu0 %2633
        %2635 = vrot.lane.b32.xlu0 %v1870, 64
        %v2636 = vpop.permute.xlu0 %2635
        %2637 = vrot.lane.b32.xlu0 %v1872, 64
        %v2638 = vpop.permute.xlu0 %2637
        %2639 = vrot.lane.b32.xlu0 %v1921, 64
        %v2640 = vpop.permute.xlu0 %2639
        %2641 = vrot.lane.b32.xlu0 %v1923, 64
        %v2642 = vpop.permute.xlu0 %2641
        %2643 = vrot.lane.b32.xlu0 %v1972, 64
        %v2644 = vpop.permute.xlu0 %2643
        %2645 = vrot.lane.b32.xlu0 %v1974, 64
        %v2646 = vpop.permute.xlu0 %2645
        %2647 = vrot.lane.b32.xlu0 %v2023, 64
        %v2648 = vpop.permute.xlu0 %2647
        %2649 = vrot.lane.b32.xlu0 %v2025, 64
        %v2650 = vpop.permute.xlu0 %2649
        %2651 = vrot.lane.b32.xlu0 %v2074, 64
        %v2652 = vpop.permute.xlu0 %2651
        %2653 = vrot.lane.b32.xlu0 %v2076, 64
        %v2654 = vpop.permute.xlu0 %2653
        %2655 = vrot.lane.b32.xlu0 %v2125, 64
        %v2656 = vpop.permute.xlu0 %2655
        %2657 = vrot.lane.b32.xlu0 %v2127, 64
        %v2658 = vpop.permute.xlu0 %2657
        %2659 = vrot.lane.b32.xlu0 %v2176, 64
        %v2660 = vpop.permute.xlu0 %2659
        %2661 = vrot.lane.b32.xlu0 %v2178, 64
        %v2662 = vpop.permute.xlu0 %2661
        %v2663 = vsel %vm2246, %v2660, %v2662
        %v2664 = vsel %vm2246, %v2658, %v2660
        %v2665 = vsel %vm2246, %v2656, %v2658
        %v2666 = vsel %vm2246, %v2654, %v2656
        %v2667 = vsel %vm2246, %v2652, %v2654
        %v2668 = vsel %vm2246, %v2650, %v2652
        %v2669 = vsel %vm2246, %v2648, %v2650
        %v2670 = vsel %vm2246, %v2646, %v2648
        %v2671 = vsel %vm2246, %v2644, %v2646
        %v2672 = vsel %vm2246, %v2642, %v2644
        %v2673 = vsel %vm2246, %v2640, %v2642
        %v2674 = vsel %vm2246, %v2638, %v2640
        %v2675 = vsel %vm2246, %v2636, %v2638
        %v2676 = vsel %vm2246, %v2634, %v2636
        %v2677 = vsel %vm2246, %v2632, %v2634
        %v2678 = vsel %vm2246, %v2630, %v2632
        %v2679 = vsel %vm2246, %v2628, %v2630
        %v2680 = vsel %vm2246, %v2626, %v2628
        %v2681 = vsel %vm2246, %v2624, %v2626
        %v2682 = vsel %vm2246, %v2622, %v2624
        %v2683 = vsel %vm2246, %v2620, %v2622
        %v2684 = vsel %vm2246, %v2618, %v2620
        %v2685 = vsel %vm2246, %v2616, %v2618
        %v2686 = vsel %vm2246, %v2614, %v2616
        %v2687 = vsel %vm2246, %v2612, %v2614
        %v2688 = vsel %vm2246, %v2610, %v2612
        %v2689 = vsel %vm2246, %v2608, %v2610
        %v2690 = vsel %vm2246, %v2606, %v2608
        %v2691 = vsel %vm2246, %v2604, %v2606
        %v2692 = vsel %vm2246, %v2602, %v2604
        %v2693 = vsel %vm2246, %v2600, %v2602
        %v2694 = vsel %vm2246, %v2662, %v2600
        %v2695 = vlaneseq
        %v2696 = vshrl.u32 %v2695, 7
        %v2697 = vsub.s32 3, %v2696
        %v2698 = vrot.slane %v282, %v2697
        %v2699 = vlaneseq
        %v2700 = vshrl.u32 %v2699, 7
        %v2701 = vsub.s32 7, %v2700
        %v2702 = vrot.slane %v282, %v2701
        %v2703 = vlaneseq
        %v2704 = vshrl.u32 %v2703, 7
        %v2705 = vsub.s32 3, %v2704
        %v2706 = vrot.slane %v283, %v2705
        %v2707 = vlaneseq
        %v2708 = vshrl.u32 %v2707, 7
        %v2709 = vsub.s32 7, %v2708
        %v2710 = vrot.slane %v283, %v2709
        %v2711 = vlaneseq
        %v2712 = vshrl.u32 %v2711, 7
        %v2713 = vsub.s32 3, %v2712
        %v2714 = vrot.slane %v284, %v2713
        %v2715 = vlaneseq
        %v2716 = vshrl.u32 %v2715, 7
        %v2717 = vsub.s32 7, %v2716
        %v2718 = vrot.slane %v284, %v2717
        %v2719 = vlaneseq
        %v2720 = vshrl.u32 %v2719, 7
        %v2721 = vsub.s32 3, %v2720
        %v2722 = vrot.slane %v285, %v2721
        %v2723 = vlaneseq
        %v2724 = vshrl.u32 %v2723, 7
        %v2725 = vsub.s32 7, %v2724
        %v2726 = vrot.slane %v285, %v2725
        %v2727 = vlaneseq
        %v2728 = vshrl.u32 %v2727, 7
        %v2729 = vsub.s32 3, %v2728
        %v2730 = vrot.slane %v286, %v2729
        %v2731 = vlaneseq
        %v2732 = vshrl.u32 %v2731, 7
        %v2733 = vsub.s32 7, %v2732
        %v2734 = vrot.slane %v286, %v2733
        %v2735 = vlaneseq
        %v2736 = vshrl.u32 %v2735, 7
        %v2737 = vsub.s32 3, %v2736
        %v2738 = vrot.slane %v287, %v2737
        %v2739 = vlaneseq
        %v2740 = vshrl.u32 %v2739, 7
        %v2741 = vsub.s32 7, %v2740
        %v2742 = vrot.slane %v287, %v2741
        %v2743 = vlaneseq
        %v2744 = vshrl.u32 %v2743, 7
        %v2745 = vsub.s32 3, %v2744
        %v2746 = vrot.slane %v288, %v2745
        %v2747 = vlaneseq
        %v2748 = vshrl.u32 %v2747, 7
        %v2749 = vsub.s32 7, %v2748
        %v2750 = vrot.slane %v288, %v2749
        %v2751 = vlaneseq
        %v2752 = vshrl.u32 %v2751, 7
        %v2753 = vsub.s32 3, %v2752
        %v2754 = vrot.slane %v289, %v2753
        %v2755 = vlaneseq
        %v2756 = vshrl.u32 %v2755, 7
        %v2757 = vsub.s32 7, %v2756
        %v2758 = vrot.slane %v289, %v2757
        %v2759 = vlaneseq
        %v2760 = vshrl.u32 %v2759, 7
        %v2761 = vsub.s32 3, %v2760
        %v2762 = vrot.slane %v290, %v2761
        %v2763 = vlaneseq
        %v2764 = vshrl.u32 %v2763, 7
        %v2765 = vsub.s32 7, %v2764
        %v2766 = vrot.slane %v290, %v2765
        %v2767 = vlaneseq
        %v2768 = vshrl.u32 %v2767, 7
        %v2769 = vsub.s32 3, %v2768
        %v2770 = vrot.slane %v291, %v2769
        %v2771 = vlaneseq
        %v2772 = vshrl.u32 %v2771, 7
        %v2773 = vsub.s32 7, %v2772
        %v2774 = vrot.slane %v291, %v2773
        %v2775 = vlaneseq
        %v2776 = vshrl.u32 %v2775, 7
        %v2777 = vsub.s32 3, %v2776
        %v2778 = vrot.slane %v292, %v2777
        %v2779 = vlaneseq
        %v2780 = vshrl.u32 %v2779, 7
        %v2781 = vsub.s32 7, %v2780
        %v2782 = vrot.slane %v292, %v2781
        %v2783 = vlaneseq
        %v2784 = vshrl.u32 %v2783, 7
        %v2785 = vsub.s32 3, %v2784
        %v2786 = vrot.slane %v293, %v2785
        %v2787 = vlaneseq
        %v2788 = vshrl.u32 %v2787, 7
        %v2789 = vsub.s32 7, %v2788
        %v2790 = vrot.slane %v293, %v2789
        %v2791 = vlaneseq
        %v2792 = vshrl.u32 %v2791, 7
        %v2793 = vsub.s32 3, %v2792
        %v2794 = vrot.slane %v294, %v2793
        %v2795 = vlaneseq
        %v2796 = vshrl.u32 %v2795, 7
        %v2797 = vsub.s32 7, %v2796
        %v2798 = vrot.slane %v294, %v2797
        %v2799 = vlaneseq
        %v2800 = vshrl.u32 %v2799, 7
        %v2801 = vsub.s32 3, %v2800
        %v2802 = vrot.slane %v295, %v2801
        %v2803 = vlaneseq
        %v2804 = vshrl.u32 %v2803, 7
        %v2805 = vsub.s32 7, %v2804
        %v2806 = vrot.slane %v295, %v2805
        %v2807 = vlaneseq
        %v2808 = vshrl.u32 %v2807, 7
        %v2809 = vsub.s32 3, %v2808
        %v2810 = vrot.slane %v296, %v2809
        %v2811 = vlaneseq
        %v2812 = vshrl.u32 %v2811, 7
        %v2813 = vsub.s32 7, %v2812
        %v2814 = vrot.slane %v296, %v2813
        %v2815 = vlaneseq
        %v2816 = vshrl.u32 %v2815, 7
        %v2817 = vsub.s32 3, %v2816
        %v2818 = vrot.slane %v297, %v2817
        %v2819 = vlaneseq
        %v2820 = vshrl.u32 %v2819, 7
        %v2821 = vsub.s32 7, %v2820
        %v2822 = vrot.slane %v297, %v2821
        %v2855 = vlaneseq
        %v2856 = vshrl.u32 %v2855, 7
        %v2857 = vsub.s32 3, %v2856
        %v2858 = vrot.slane %v2698, %v2857
        %v2859 = vlaneseq
        %v2860 = vshrl.u32 %v2859, 7
        %v2861 = vsub.s32 3, %v2860
        %v2862 = vrot.slane %v2702, %v2861
        %v2863 = vlaneseq
        %v2864 = vshrl.u32 %v2863, 7
        %v2865 = vsub.s32 3, %v2864
        %v2866 = vrot.slane %v2706, %v2865
        %v2867 = vlaneseq
        %v2868 = vshrl.u32 %v2867, 7
        %v2869 = vsub.s32 3, %v2868
        %v2870 = vrot.slane %v2710, %v2869
        %v2871 = vlaneseq
        %v2872 = vshrl.u32 %v2871, 7
        %v2873 = vsub.s32 3, %v2872
        %v2874 = vrot.slane %v2714, %v2873
        %v2875 = vlaneseq
        %v2876 = vshrl.u32 %v2875, 7
        %v2877 = vsub.s32 3, %v2876
        %v2878 = vrot.slane %v2718, %v2877
        %v2879 = vlaneseq
        %v2880 = vshrl.u32 %v2879, 7
        %v2881 = vsub.s32 3, %v2880
        %v2882 = vrot.slane %v2722, %v2881
        %v2883 = vlaneseq
        %v2884 = vshrl.u32 %v2883, 7
        %v2885 = vsub.s32 3, %v2884
        %v2886 = vrot.slane %v2726, %v2885
        %v2887 = vlaneseq
        %v2888 = vshrl.u32 %v2887, 7
        %v2889 = vsub.s32 3, %v2888
        %v2890 = vrot.slane %v2730, %v2889
        %v2891 = vlaneseq
        %v2892 = vshrl.u32 %v2891, 7
        %v2893 = vsub.s32 3, %v2892
        %v2894 = vrot.slane %v2734, %v2893
        %v2895 = vlaneseq
        %v2896 = vshrl.u32 %v2895, 7
        %v2897 = vsub.s32 3, %v2896
        %v2898 = vrot.slane %v2738, %v2897
        %v2899 = vlaneseq
        %v2900 = vshrl.u32 %v2899, 7
        %v2901 = vsub.s32 3, %v2900
        %v2902 = vrot.slane %v2742, %v2901
        %v2903 = vlaneseq
        %v2904 = vshrl.u32 %v2903, 7
        %v2905 = vsub.s32 3, %v2904
        %v2906 = vrot.slane %v2746, %v2905
        %v2907 = vlaneseq
        %v2908 = vshrl.u32 %v2907, 7
        %v2909 = vsub.s32 3, %v2908
        %v2910 = vrot.slane %v2750, %v2909
        %v2911 = vlaneseq
        %v2912 = vshrl.u32 %v2911, 7
        %v2913 = vsub.s32 3, %v2912
        %v2914 = vrot.slane %v2754, %v2913
        %v2915 = vlaneseq
        %v2916 = vshrl.u32 %v2915, 7
        %v2917 = vsub.s32 3, %v2916
        %v2918 = vrot.slane %v2758, %v2917
        %v2919 = vlaneseq
        %v2920 = vshrl.u32 %v2919, 7
        %v2921 = vsub.s32 3, %v2920
        %v2922 = vrot.slane %v2762, %v2921
        %v2923 = vlaneseq
        %v2924 = vshrl.u32 %v2923, 7
        %v2925 = vsub.s32 3, %v2924
        %v2926 = vrot.slane %v2766, %v2925
        %v2927 = vlaneseq
        %v2928 = vshrl.u32 %v2927, 7
        %v2929 = vsub.s32 3, %v2928
        %v2930 = vrot.slane %v2770, %v2929
        %v2931 = vlaneseq
        %v2932 = vshrl.u32 %v2931, 7
        %v2933 = vsub.s32 3, %v2932
        %v2934 = vrot.slane %v2774, %v2933
        %v2935 = vlaneseq
        %v2936 = vshrl.u32 %v2935, 7
        %v2937 = vsub.s32 3, %v2936
        %v2938 = vrot.slane %v2778, %v2937
        %v2939 = vlaneseq
        %v2940 = vshrl.u32 %v2939, 7
        %v2941 = vsub.s32 3, %v2940
        %v2942 = vrot.slane %v2782, %v2941
        %v2943 = vlaneseq
        %v2944 = vshrl.u32 %v2943, 7
        %v2945 = vsub.s32 3, %v2944
        %v2946 = vrot.slane %v2786, %v2945
        %v2947 = vlaneseq
        %v2948 = vshrl.u32 %v2947, 7
        %v2949 = vsub.s32 3, %v2948
        %v2950 = vrot.slane %v2790, %v2949
        %v2951 = vlaneseq
        %v2952 = vshrl.u32 %v2951, 7
        %v2953 = vsub.s32 3, %v2952
        %v2954 = vrot.slane %v2794, %v2953
        %v2955 = vlaneseq
        %v2956 = vshrl.u32 %v2955, 7
        %v2957 = vsub.s32 3, %v2956
        %v2958 = vrot.slane %v2798, %v2957
        %v2959 = vlaneseq
        %v2960 = vshrl.u32 %v2959, 7
        %v2961 = vsub.s32 3, %v2960
        %v2962 = vrot.slane %v2802, %v2961
        %v2963 = vlaneseq
        %v2964 = vshrl.u32 %v2963, 7
        %v2965 = vsub.s32 3, %v2964
        %v2966 = vrot.slane %v2806, %v2965
        %v2967 = vlaneseq
        %v2968 = vshrl.u32 %v2967, 7
        %v2969 = vsub.s32 3, %v2968
        %v2970 = vrot.slane %v2810, %v2969
        %v2971 = vlaneseq
        %v2972 = vshrl.u32 %v2971, 7
        %v2973 = vsub.s32 3, %v2972
        %v2974 = vrot.slane %v2814, %v2973
        %v2975 = vlaneseq
        %v2976 = vshrl.u32 %v2975, 7
        %v2977 = vsub.s32 3, %v2976
        %v2978 = vrot.slane %v2818, %v2977
        %v2979 = vlaneseq
        %v2980 = vshrl.u32 %v2979, 7
        %v2981 = vsub.s32 3, %v2980
        %v2982 = vrot.slane %v2822, %v2981
        %v2983 = vmul.f32 %v2693, %v2858
        %v2984 = vmul.f32 %v2692, %v2862
        %v2985 = vmul.f32 %v2691, %v2866
        %v2986 = vmul.f32 %v2690, %v2870
        %v2987 = vmul.f32 %v2689, %v2874
        %v2988 = vmul.f32 %v2688, %v2878
        %v2989 = vmul.f32 %v2687, %v2882
        %v2990 = vmul.f32 %v2686, %v2886
        %v2991 = vmul.f32 %v2685, %v2890
        %v2992 = vmul.f32 %v2684, %v2894
        %v2993 = vmul.f32 %v2683, %v2898
        %v2994 = vmul.f32 %v2682, %v2902
        %v2995 = vmul.f32 %v2681, %v2906
        %v2996 = vmul.f32 %v2680, %v2910
        %v2997 = vmul.f32 %v2679, %v2914
        %v2998 = vmul.f32 %v2678, %v2918
        %v2999 = vmul.f32 %v2677, %v2922
        %v3000 = vmul.f32 %v2676, %v2926
        %v3001 = vmul.f32 %v2675, %v2930
        %v3002 = vmul.f32 %v2674, %v2934
        %v3003 = vmul.f32 %v2673, %v2938
        %v3004 = vmul.f32 %v2672, %v2942
        %v3005 = vmul.f32 %v2671, %v2946
        %v3006 = vmul.f32 %v2670, %v2950
        %v3007 = vmul.f32 %v2669, %v2954
        %v3008 = vmul.f32 %v2668, %v2958
        %v3009 = vmul.f32 %v2667, %v2962
        %v3010 = vmul.f32 %v2666, %v2966
        %v3011 = vmul.f32 %v2665, %v2970
        %v3012 = vmul.f32 %v2664, %v2974
        %v3013 = vmul.f32 %v2663, %v2978
        %v3014 = vmul.f32 %v2694, %v2982
        %3016 = vset.pattern.permute.xlu0 0
        %3017 = vperm.xlu0 %3016, %v304
        %v3018 = vpop.permute.xlu0 %3017
        %v3020 = vadd.f32 %v1405, %v3018
        %v3021 = vadd.f32 %v1407, %v3018
        %v3022 = vadd.f32 %v1456, %v3018
        %v3023 = vadd.f32 %v1458, %v3018
        %v3024 = vadd.f32 %v1507, %v3018
        %v3025 = vadd.f32 %v1509, %v3018
        %v3026 = vadd.f32 %v1558, %v3018
        %v3027 = vadd.f32 %v1560, %v3018
        %v3028 = vadd.f32 %v1609, %v3018
        %v3029 = vadd.f32 %v1611, %v3018
        %v3030 = vadd.f32 %v1660, %v3018
        %v3031 = vadd.f32 %v1662, %v3018
        %v3032 = vadd.f32 %v1711, %v3018
        %v3033 = vadd.f32 %v1713, %v3018
        %v3034 = vadd.f32 %v1762, %v3018
        %v3035 = vadd.f32 %v1764, %v3018
        %v3036 = vadd.f32 %v1813, %v3018
        %v3037 = vadd.f32 %v1815, %v3018
        %v3038 = vadd.f32 %v1864, %v3018
        %v3039 = vadd.f32 %v1866, %v3018
        %v3040 = vadd.f32 %v1915, %v3018
        %v3041 = vadd.f32 %v1917, %v3018
        %v3042 = vadd.f32 %v1966, %v3018
        %v3043 = vadd.f32 %v1968, %v3018
        %v3044 = vadd.f32 %v2017, %v3018
        %v3045 = vadd.f32 %v2019, %v3018
        %v3046 = vadd.f32 %v2068, %v3018
        %v3047 = vadd.f32 %v2070, %v3018
        %v3048 = vadd.f32 %v2119, %v3018
        %v3049 = vadd.f32 %v2121, %v3018
        %v3050 = vadd.f32 %v2170, %v3018
        %v3051 = vadd.f32 %v2172, %v3018
        %v3052 = vadd.f32 %v2567, %v2983
        %v3053 = vadd.f32 %v2568, %v2984
        %v3054 = vadd.f32 %v2569, %v2985
        %v3055 = vadd.f32 %v2570, %v2986
        %v3056 = vadd.f32 %v2571, %v2987
        %v3057 = vadd.f32 %v2572, %v2988
        %v3058 = vadd.f32 %v2573, %v2989
        %v3059 = vadd.f32 %v2574, %v2990
        %v3060 = vadd.f32 %v2575, %v2991
        %v3061 = vadd.f32 %v2576, %v2992
        %v3062 = vadd.f32 %v2577, %v2993
        %v3063 = vadd.f32 %v2578, %v2994
        %v3064 = vadd.f32 %v2579, %v2995
        %v3065 = vadd.f32 %v2580, %v2996
        %v3066 = vadd.f32 %v2581, %v2997
        %v3067 = vadd.f32 %v2582, %v2998
        %v3068 = vadd.f32 %v2583, %v2999
        %v3069 = vadd.f32 %v2584, %v3000
        %v3070 = vadd.f32 %v2585, %v3001
        %v3071 = vadd.f32 %v2586, %v3002
        %v3072 = vadd.f32 %v2587, %v3003
        %v3073 = vadd.f32 %v2588, %v3004
        %v3074 = vadd.f32 %v2589, %v3005
        %v3075 = vadd.f32 %v2590, %v3006
        %v3076 = vadd.f32 %v2591, %v3007
        %v3077 = vadd.f32 %v2592, %v3008
        %v3078 = vadd.f32 %v2593, %v3009
        %v3079 = vadd.f32 %v2594, %v3010
        %v3080 = vadd.f32 %v2595, %v3011
        %v3081 = vadd.f32 %v2596, %v3012
        %v3082 = vadd.f32 %v2597, %v3013
        %v3083 = vadd.f32 %v2598, %v3014
        %v3084 = vadd.f32 %v3020, %v3052
        %v3085 = vadd.f32 %v3021, %v3053
        %v3086 = vadd.f32 %v3022, %v3054
        %v3087 = vadd.f32 %v3023, %v3055
        %v3088 = vadd.f32 %v3024, %v3056
        %v3089 = vadd.f32 %v3025, %v3057
        %v3090 = vadd.f32 %v3026, %v3058
        %v3091 = vadd.f32 %v3027, %v3059
        %v3092 = vadd.f32 %v3028, %v3060
        %v3093 = vadd.f32 %v3029, %v3061
        %v3094 = vadd.f32 %v3030, %v3062
        %v3095 = vadd.f32 %v3031, %v3063
        %v3096 = vadd.f32 %v3032, %v3064
        %v3097 = vadd.f32 %v3033, %v3065
        %v3098 = vadd.f32 %v3034, %v3066
        %v3099 = vadd.f32 %v3035, %v3067
        %v3100 = vadd.f32 %v3036, %v3068
        %v3101 = vadd.f32 %v3037, %v3069
        %v3102 = vadd.f32 %v3038, %v3070
        %v3103 = vadd.f32 %v3039, %v3071
        %v3104 = vadd.f32 %v3040, %v3072
        %v3105 = vadd.f32 %v3041, %v3073
        %v3106 = vadd.f32 %v3042, %v3074
        %v3107 = vadd.f32 %v3043, %v3075
        %v3108 = vadd.f32 %v3044, %v3076
        %v3109 = vadd.f32 %v3045, %v3077
        %v3110 = vadd.f32 %v3046, %v3078
        %v3111 = vadd.f32 %v3047, %v3079
        %v3112 = vadd.f32 %v3048, %v3080
        %v3113 = vadd.f32 %v3049, %v3081
        %v3114 = vadd.f32 %v3050, %v3082
        %v3115 = vadd.f32 %v3051, %v3083
        %v3116 = vmax.f32 %v3084, 0.0
        %v3117 = vmax.f32 %v3085, 0.0
        %v3118 = vmax.f32 %v3086, 0.0
        %v3119 = vmax.f32 %v3087, 0.0
        %v3120 = vmax.f32 %v3088, 0.0
        %v3121 = vmax.f32 %v3089, 0.0
        %v3122 = vmax.f32 %v3090, 0.0
        %v3123 = vmax.f32 %v3091, 0.0
        %v3124 = vmax.f32 %v3092, 0.0
        %v3125 = vmax.f32 %v3093, 0.0
        %v3126 = vmax.f32 %v3094, 0.0
        %v3127 = vmax.f32 %v3095, 0.0
        %v3128 = vmax.f32 %v3096, 0.0
        %v3129 = vmax.f32 %v3097, 0.0
        %v3130 = vmax.f32 %v3098, 0.0
        %v3131 = vmax.f32 %v3099, 0.0
        %v3132 = vmax.f32 %v3100, 0.0
        %v3133 = vmax.f32 %v3101, 0.0
        %v3134 = vmax.f32 %v3102, 0.0
        %v3135 = vmax.f32 %v3103, 0.0
        %v3136 = vmax.f32 %v3104, 0.0
        %v3137 = vmax.f32 %v3105, 0.0
        %v3138 = vmax.f32 %v3106, 0.0
        %v3139 = vmax.f32 %v3107, 0.0
        %v3140 = vmax.f32 %v3108, 0.0
        %v3141 = vmax.f32 %v3109, 0.0
        %v3142 = vmax.f32 %v3110, 0.0
        %v3143 = vmax.f32 %v3111, 0.0
        %v3144 = vmax.f32 %v3112, 0.0
        %v3145 = vmax.f32 %v3113, 0.0
        %v3146 = vmax.f32 %v3114, 0.0
        %v3147 = vmax.f32 %v3115, 0.0
        %3148 = vrot.lane.b32.xlu0 %v3116, 1
        %v3149 = vpop.permute.xlu0 %3148
        %3150 = vrot.lane.b32.xlu0 %v3117, 1
        %v3151 = vpop.permute.xlu0 %3150
        %3152 = vrot.lane.b32.xlu0 %v3118, 1
        %v3153 = vpop.permute.xlu0 %3152
        %3154 = vrot.lane.b32.xlu0 %v3119, 1
        %v3155 = vpop.permute.xlu0 %3154
        %3156 = vrot.lane.b32.xlu0 %v3120, 1
        %v3157 = vpop.permute.xlu0 %3156
        %3158 = vrot.lane.b32.xlu0 %v3121, 1
        %v3159 = vpop.permute.xlu0 %3158
        %3160 = vrot.lane.b32.xlu0 %v3122, 1
        %v3161 = vpop.permute.xlu0 %3160
        %3162 = vrot.lane.b32.xlu0 %v3123, 1
        %v3163 = vpop.permute.xlu0 %3162
        %3164 = vrot.lane.b32.xlu0 %v3124, 1
        %v3165 = vpop.permute.xlu0 %3164
        %3166 = vrot.lane.b32.xlu0 %v3125, 1
        %v3167 = vpop.permute.xlu0 %3166
        %3168 = vrot.lane.b32.xlu0 %v3126, 1
        %v3169 = vpop.permute.xlu0 %3168
        %3170 = vrot.lane.b32.xlu0 %v3127, 1
        %v3171 = vpop.permute.xlu0 %3170
        %3172 = vrot.lane.b32.xlu0 %v3128, 1
        %v3173 = vpop.permute.xlu0 %3172
        %3174 = vrot.lane.b32.xlu0 %v3129, 1
        %v3175 = vpop.permute.xlu0 %3174
        %3176 = vrot.lane.b32.xlu0 %v3130, 1
        %v3177 = vpop.permute.xlu0 %3176
        %3178 = vrot.lane.b32.xlu0 %v3131, 1
        %v3179 = vpop.permute.xlu0 %3178
        %3180 = vrot.lane.b32.xlu0 %v3132, 1
        %v3181 = vpop.permute.xlu0 %3180
        %3182 = vrot.lane.b32.xlu0 %v3133, 1
        %v3183 = vpop.permute.xlu0 %3182
        %3184 = vrot.lane.b32.xlu0 %v3134, 1
        %v3185 = vpop.permute.xlu0 %3184
        %3186 = vrot.lane.b32.xlu0 %v3135, 1
        %v3187 = vpop.permute.xlu0 %3186
        %3188 = vrot.lane.b32.xlu0 %v3136, 1
        %v3189 = vpop.permute.xlu0 %3188
        %3190 = vrot.lane.b32.xlu0 %v3137, 1
        %v3191 = vpop.permute.xlu0 %3190
        %3192 = vrot.lane.b32.xlu0 %v3138, 1
        %v3193 = vpop.permute.xlu0 %3192
        %3194 = vrot.lane.b32.xlu0 %v3139, 1
        %v3195 = vpop.permute.xlu0 %3194
        %3196 = vrot.lane.b32.xlu0 %v3140, 1
        %v3197 = vpop.permute.xlu0 %3196
        %3198 = vrot.lane.b32.xlu0 %v3141, 1
        %v3199 = vpop.permute.xlu0 %3198
        %3200 = vrot.lane.b32.xlu0 %v3142, 1
        %v3201 = vpop.permute.xlu0 %3200
        %3202 = vrot.lane.b32.xlu0 %v3143, 1
        %v3203 = vpop.permute.xlu0 %3202
        %3204 = vrot.lane.b32.xlu0 %v3144, 1
        %v3205 = vpop.permute.xlu0 %3204
        %3206 = vrot.lane.b32.xlu0 %v3145, 1
        %v3207 = vpop.permute.xlu0 %3206
        %3208 = vrot.lane.b32.xlu0 %v3146, 1
        %v3209 = vpop.permute.xlu0 %3208
        %3210 = vrot.lane.b32.xlu0 %v3147, 1
        %v3211 = vpop.permute.xlu0 %3210
        %v3212 = vsel %vm404, %v3209, %v3211
        %v3213 = vsel %vm404, %v3207, %v3209
        %v3214 = vsel %vm404, %v3205, %v3207
        %v3215 = vsel %vm404, %v3203, %v3205
        %v3216 = vsel %vm404, %v3201, %v3203
        %v3217 = vsel %vm404, %v3199, %v3201
        %v3218 = vsel %vm404, %v3197, %v3199
        %v3219 = vsel %vm404, %v3195, %v3197
        %v3220 = vsel %vm404, %v3193, %v3195
        %v3221 = vsel %vm404, %v3191, %v3193
        %v3222 = vsel %vm404, %v3189, %v3191
        %v3223 = vsel %vm404, %v3187, %v3189
        %v3224 = vsel %vm404, %v3185, %v3187
        %v3225 = vsel %vm404, %v3183, %v3185
        %v3226 = vsel %vm404, %v3181, %v3183
        %v3227 = vsel %vm404, %v3179, %v3181
        %v3228 = vsel %vm404, %v3177, %v3179
        %v3229 = vsel %vm404, %v3175, %v3177
        %v3230 = vsel %vm404, %v3173, %v3175
        %v3231 = vsel %vm404, %v3171, %v3173
        %v3232 = vsel %vm404, %v3169, %v3171
        %v3233 = vsel %vm404, %v3167, %v3169
        %v3234 = vsel %vm404, %v3165, %v3167
        %v3235 = vsel %vm404, %v3163, %v3165
        %v3236 = vsel %vm404, %v3161, %v3163
        %v3237 = vsel %vm404, %v3159, %v3161
        %v3238 = vsel %vm404, %v3157, %v3159
        %v3239 = vsel %vm404, %v3155, %v3157
        %v3240 = vsel %vm404, %v3153, %v3155
        %v3241 = vsel %vm404, %v3151, %v3153
        %v3242 = vsel %vm404, %v3149, %v3151
        %v3243 = vsel %vm404, %v3211, %v3149
        %v3244 = vmul.f32 %v3243, %v616
        %v3245 = vmul.f32 %v3242, %v620
        %v3246 = vmul.f32 %v3241, %v624
        %v3247 = vmul.f32 %v3240, %v628
        %v3248 = vmul.f32 %v3239, %v632
        %v3249 = vmul.f32 %v3238, %v636
        %v3250 = vmul.f32 %v3237, %v640
        %v3251 = vmul.f32 %v3236, %v644
        %v3252 = vmul.f32 %v3235, %v648
        %v3253 = vmul.f32 %v3234, %v652
        %v3254 = vmul.f32 %v3233, %v656
        %v3255 = vmul.f32 %v3232, %v660
        %v3256 = vmul.f32 %v3231, %v664
        %v3257 = vmul.f32 %v3230, %v668
        %v3258 = vmul.f32 %v3229, %v672
        %v3259 = vmul.f32 %v3228, %v676
        %v3260 = vmul.f32 %v3227, %v680
        %v3261 = vmul.f32 %v3226, %v684
        %v3262 = vmul.f32 %v3225, %v688
        %v3263 = vmul.f32 %v3224, %v692
        %v3264 = vmul.f32 %v3223, %v696
        %v3265 = vmul.f32 %v3222, %v700
        %v3266 = vmul.f32 %v3221, %v704
        %v3267 = vmul.f32 %v3220, %v708
        %v3268 = vmul.f32 %v3219, %v712
        %v3269 = vmul.f32 %v3218, %v716
        %v3270 = vmul.f32 %v3217, %v720
        %v3271 = vmul.f32 %v3216, %v724
        %v3272 = vmul.f32 %v3215, %v728
        %v3273 = vmul.f32 %v3214, %v732
        %v3274 = vmul.f32 %v3213, %v736
        %v3275 = vmul.f32 %v3212, %v740
        %3276 = vrot.lane.b32.xlu0 %v3116, 127
        %v3277 = vpop.permute.xlu0 %3276
        %3278 = vrot.lane.b32.xlu0 %v3117, 127
        %v3279 = vpop.permute.xlu0 %3278
        %3280 = vrot.lane.b32.xlu0 %v3118, 127
        %v3281 = vpop.permute.xlu0 %3280
        %3282 = vrot.lane.b32.xlu0 %v3119, 127
        %v3283 = vpop.permute.xlu0 %3282
        %3284 = vrot.lane.b32.xlu0 %v3120, 127
        %v3285 = vpop.permute.xlu0 %3284
        %3286 = vrot.lane.b32.xlu0 %v3121, 127
        %v3287 = vpop.permute.xlu0 %3286
        %3288 = vrot.lane.b32.xlu0 %v3122, 127
        %v3289 = vpop.permute.xlu0 %3288
        %3290 = vrot.lane.b32.xlu0 %v3123, 127
        %v3291 = vpop.permute.xlu0 %3290
        %3292 = vrot.lane.b32.xlu0 %v3124, 127
        %v3293 = vpop.permute.xlu0 %3292
        %3294 = vrot.lane.b32.xlu0 %v3125, 127
        %v3295 = vpop.permute.xlu0 %3294
        %3296 = vrot.lane.b32.xlu0 %v3126, 127
        %v3297 = vpop.permute.xlu0 %3296
        %3298 = vrot.lane.b32.xlu0 %v3127, 127
        %v3299 = vpop.permute.xlu0 %3298
        %3300 = vrot.lane.b32.xlu0 %v3128, 127
        %v3301 = vpop.permute.xlu0 %3300
        %3302 = vrot.lane.b32.xlu0 %v3129, 127
        %v3303 = vpop.permute.xlu0 %3302
        %3304 = vrot.lane.b32.xlu0 %v3130, 127
        %v3305 = vpop.permute.xlu0 %3304
        %3306 = vrot.lane.b32.xlu0 %v3131, 127
        %v3307 = vpop.permute.xlu0 %3306
        %3308 = vrot.lane.b32.xlu0 %v3132, 127
        %v3309 = vpop.permute.xlu0 %3308
        %3310 = vrot.lane.b32.xlu0 %v3133, 127
        %v3311 = vpop.permute.xlu0 %3310
        %3312 = vrot.lane.b32.xlu0 %v3134, 127
        %v3313 = vpop.permute.xlu0 %3312
        %3314 = vrot.lane.b32.xlu0 %v3135, 127
        %v3315 = vpop.permute.xlu0 %3314
        %3316 = vrot.lane.b32.xlu0 %v3136, 127
        %v3317 = vpop.permute.xlu0 %3316
        %3318 = vrot.lane.b32.xlu0 %v3137, 127
        %v3319 = vpop.permute.xlu0 %3318
        %3320 = vrot.lane.b32.xlu0 %v3138, 127
        %v3321 = vpop.permute.xlu0 %3320
        %3322 = vrot.lane.b32.xlu0 %v3139, 127
        %v3323 = vpop.permute.xlu0 %3322
        %3324 = vrot.lane.b32.xlu0 %v3140, 127
        %v3325 = vpop.permute.xlu0 %3324
        %3326 = vrot.lane.b32.xlu0 %v3141, 127
        %v3327 = vpop.permute.xlu0 %3326
        %3328 = vrot.lane.b32.xlu0 %v3142, 127
        %v3329 = vpop.permute.xlu0 %3328
        %3330 = vrot.lane.b32.xlu0 %v3143, 127
        %v3331 = vpop.permute.xlu0 %3330
        %3332 = vrot.lane.b32.xlu0 %v3144, 127
        %v3333 = vpop.permute.xlu0 %3332
        %3334 = vrot.lane.b32.xlu0 %v3145, 127
        %v3335 = vpop.permute.xlu0 %3334
        %3336 = vrot.lane.b32.xlu0 %v3146, 127
        %v3337 = vpop.permute.xlu0 %3336
        %3338 = vrot.lane.b32.xlu0 %v3147, 127
        %v3339 = vpop.permute.xlu0 %3338
        %v3340 = vsel %vm837, %v3337, %v3339
        %v3341 = vsel %vm837, %v3335, %v3337
        %v3342 = vsel %vm837, %v3333, %v3335
        %v3343 = vsel %vm837, %v3331, %v3333
        %v3344 = vsel %vm837, %v3329, %v3331
        %v3345 = vsel %vm837, %v3327, %v3329
        %v3346 = vsel %vm837, %v3325, %v3327
        %v3347 = vsel %vm837, %v3323, %v3325
        %v3348 = vsel %vm837, %v3321, %v3323
        %v3349 = vsel %vm837, %v3319, %v3321
        %v3350 = vsel %vm837, %v3317, %v3319
        %v3351 = vsel %vm837, %v3315, %v3317
        %v3352 = vsel %vm837, %v3313, %v3315
        %v3353 = vsel %vm837, %v3311, %v3313
        %v3354 = vsel %vm837, %v3309, %v3311
        %v3355 = vsel %vm837, %v3307, %v3309
        %v3356 = vsel %vm837, %v3305, %v3307
        %v3357 = vsel %vm837, %v3303, %v3305
        %v3358 = vsel %vm837, %v3301, %v3303
        %v3359 = vsel %vm837, %v3299, %v3301
        %v3360 = vsel %vm837, %v3297, %v3299
        %v3361 = vsel %vm837, %v3295, %v3297
        %v3362 = vsel %vm837, %v3293, %v3295
        %v3363 = vsel %vm837, %v3291, %v3293
        %v3364 = vsel %vm837, %v3289, %v3291
        %v3365 = vsel %vm837, %v3287, %v3289
        %v3366 = vsel %vm837, %v3285, %v3287
        %v3367 = vsel %vm837, %v3283, %v3285
        %v3368 = vsel %vm837, %v3281, %v3283
        %v3369 = vsel %vm837, %v3279, %v3281
        %v3370 = vsel %vm837, %v3277, %v3279
        %v3371 = vsel %vm837, %v3339, %v3277
        %v3372 = vmul.f32 %v3370, %v1033
        %v3373 = vmul.f32 %v3369, %v1037
        %v3374 = vmul.f32 %v3368, %v1041
        %v3375 = vmul.f32 %v3367, %v1045
        %v3376 = vmul.f32 %v3366, %v1049
        %v3377 = vmul.f32 %v3365, %v1053
        %v3378 = vmul.f32 %v3364, %v1057
        %v3379 = vmul.f32 %v3363, %v1061
        %v3380 = vmul.f32 %v3362, %v1065
        %v3381 = vmul.f32 %v3361, %v1069
        %v3382 = vmul.f32 %v3360, %v1073
        %v3383 = vmul.f32 %v3359, %v1077
        %v3384 = vmul.f32 %v3358, %v1081
        %v3385 = vmul.f32 %v3357, %v1085
        %v3386 = vmul.f32 %v3356, %v1089
        %v3387 = vmul.f32 %v3355, %v1093
        %v3388 = vmul.f32 %v3354, %v1097
        %v3389 = vmul.f32 %v3353, %v1101
        %v3390 = vmul.f32 %v3352, %v1105
        %v3391 = vmul.f32 %v3351, %v1109
        %v3392 = vmul.f32 %v3350, %v1113
        %v3393 = vmul.f32 %v3349, %v1117
        %v3394 = vmul.f32 %v3348, %v1121
        %v3395 = vmul.f32 %v3347, %v1125
        %v3396 = vmul.f32 %v3346, %v1129
        %v3397 = vmul.f32 %v3345, %v1133
        %v3398 = vmul.f32 %v3344, %v1137
        %v3399 = vmul.f32 %v3343, %v1141
        %v3400 = vmul.f32 %v3342, %v1145
        %v3401 = vmul.f32 %v3341, %v1149
        %v3402 = vmul.f32 %v3340, %v1153
        %v3403 = vmul.f32 %v3371, %v1157
        %v3404 = vpack.c.bf16 %v3116, %v3244
        %v3405 = vpack.c.bf16 %v3117, %v3245
        %v3406 = vpack.c.bf16 %v3118, %v3246
        %v3407 = vpack.c.bf16 %v3119, %v3247
        %v3408 = vpack.c.bf16 %v3120, %v3248
        %v3409 = vpack.c.bf16 %v3121, %v3249
        %v3410 = vpack.c.bf16 %v3122, %v3250
        %v3411 = vpack.c.bf16 %v3123, %v3251
        %v3412 = vpack.c.bf16 %v3124, %v3252
        %v3413 = vpack.c.bf16 %v3125, %v3253
        %v3414 = vpack.c.bf16 %v3126, %v3254
        %v3415 = vpack.c.bf16 %v3127, %v3255
        %v3416 = vpack.c.bf16 %v3128, %v3256
        %v3417 = vpack.c.bf16 %v3129, %v3257
        %v3418 = vpack.c.bf16 %v3130, %v3258
        %v3419 = vpack.c.bf16 %v3131, %v3259
        %v3420 = vpack.c.bf16 %v3132, %v3260
        %v3421 = vpack.c.bf16 %v3133, %v3261
        %v3422 = vpack.c.bf16 %v3134, %v3262
        %v3423 = vpack.c.bf16 %v3135, %v3263
        %v3424 = vpack.c.bf16 %v3136, %v3264
        %v3425 = vpack.c.bf16 %v3137, %v3265
        %v3426 = vpack.c.bf16 %v3138, %v3266
        %v3427 = vpack.c.bf16 %v3139, %v3267
        %v3428 = vpack.c.bf16 %v3140, %v3268
        %v3429 = vpack.c.bf16 %v3141, %v3269
        %v3430 = vpack.c.bf16 %v3142, %v3270
        %v3431 = vpack.c.bf16 %v3143, %v3271
        %v3432 = vpack.c.bf16 %v3144, %v3272
        %v3433 = vpack.c.bf16 %v3145, %v3273
        %v3434 = vpack.c.bf16 %v3146, %v3274
        %v3435 = vpack.c.bf16 %v3147, %v3275
        %v3436 = vpack.c.bf16 %v3372, %v3372
        %v3437 = vpack.c.bf16 %v3373, %v3373
        %v3438 = vpack.c.bf16 %v3374, %v3374
        %v3439 = vpack.c.bf16 %v3375, %v3375
        %v3440 = vpack.c.bf16 %v3376, %v3376
        %v3441 = vpack.c.bf16 %v3377, %v3377
        %v3442 = vpack.c.bf16 %v3378, %v3378
        %v3443 = vpack.c.bf16 %v3379, %v3379
        %v3444 = vpack.c.bf16 %v3380, %v3380
        %v3445 = vpack.c.bf16 %v3381, %v3381
        %v3446 = vpack.c.bf16 %v3382, %v3382
        %v3447 = vpack.c.bf16 %v3383, %v3383
        %v3448 = vpack.c.bf16 %v3384, %v3384
        %v3449 = vpack.c.bf16 %v3385, %v3385
        %v3450 = vpack.c.bf16 %v3386, %v3386
        %v3451 = vpack.c.bf16 %v3387, %v3387
        %v3452 = vpack.c.bf16 %v3388, %v3388
        %v3453 = vpack.c.bf16 %v3389, %v3389
        %v3454 = vpack.c.bf16 %v3390, %v3390
        %v3455 = vpack.c.bf16 %v3391, %v3391
        %v3456 = vpack.c.bf16 %v3392, %v3392
        %v3457 = vpack.c.bf16 %v3393, %v3393
        %v3458 = vpack.c.bf16 %v3394, %v3394
        %v3459 = vpack.c.bf16 %v3395, %v3395
        %v3460 = vpack.c.bf16 %v3396, %v3396
        %v3461 = vpack.c.bf16 %v3397, %v3397
        %v3462 = vpack.c.bf16 %v3398, %v3398
        %v3463 = vpack.c.bf16 %v3399, %v3399
        %v3464 = vpack.c.bf16 %v3400, %v3400
        %v3465 = vpack.c.bf16 %v3401, %v3401
        %v3466 = vpack.c.bf16 %v3402, %v3402
        %v3467 = vpack.c.bf16 %v3403, %v3403
        %v3471 = vunpack.c.l.b16 %v301
        %v3472 = vunpack.c.l.b16 %v302
        %v3473 = vunpack.c.l.b16 %v303
        %v3474 = vpack.c.b16 %v3472, %v3471
        %v3475 = vpack.c.b16 %v3473, %v3473
        %v3477 = vsel %vm1262, %v3474, 0
        %v3480 = vsel %vm1262, %v3475, 0
        %v3483 = vsel %vm1269, %v3436, 0
        %v3486 = vsel %vm1269, %v3437, 0
        %v3489 = vsel %vm1269, %v3438, 0
        %v3492 = vsel %vm1269, %v3439, 0
        %v3495 = vsel %vm1269, %v3440, 0
        %v3498 = vsel %vm1269, %v3441, 0
        %v3501 = vsel %vm1269, %v3442, 0
        %v3504 = vsel %vm1269, %v3443, 0
        %v3507 = vsel %vm1269, %v3444, 0
        %v3510 = vsel %vm1269, %v3445, 0
        %v3513 = vsel %vm1269, %v3446, 0
        %v3516 = vsel %vm1269, %v3447, 0
        %v3519 = vsel %vm1269, %v3448, 0
        %v3522 = vsel %vm1269, %v3449, 0
        %v3525 = vsel %vm1269, %v3450, 0
        %v3528 = vsel %vm1269, %v3451, 0
        %v3531 = vsel %vm1269, %v3452, 0
        %v3534 = vsel %vm1269, %v3453, 0
        %v3537 = vsel %vm1269, %v3454, 0
        %v3540 = vsel %vm1269, %v3455, 0
        %v3543 = vsel %vm1269, %v3456, 0
        %v3546 = vsel %vm1269, %v3457, 0
        %v3549 = vsel %vm1269, %v3458, 0
        %v3552 = vsel %vm1269, %v3459, 0
        %v3555 = vsel %vm1269, %v3460, 0
        %v3558 = vsel %vm1269, %v3461, 0
        %v3561 = vsel %vm1269, %v3462, 0
        %v3564 = vsel %vm1269, %v3463, 0
        %v3567 = vsel %vm1269, %v3464, 0
        %v3570 = vsel %vm1269, %v3465, 0
        %v3573 = vsel %vm1269, %v3466, 0
        %v3576 = vsel %vm1269, %v3467, 0
        %3578 = vmatprep.subr.bf16.mxu0 0
        %3579 = vmatpush1.bf16.msra.mxu0 0
        %3580 = vmatprep.subr.bf16.mxu0 0
        %3581 = vmatpush1.bf16.msra.mxu0 0
        %3582 = vmatprep.subr.bf16.mxu0 0
        %3583 = vmatpush1.bf16.msra.mxu0 0
        %3584 = vmatprep.subr.bf16.mxu0 0
        %3585 = vmatpush1.bf16.msra.mxu0 0
        %3586 = vmatprep.subr.bf16.mxu0 0
        %3587 = vmatpush1.bf16.msra.mxu0 0
        %3588 = vmatprep.subr.bf16.mxu0 0
        %3589 = vmatpush1.bf16.msra.mxu0 0
        %3590 = vmatprep.subr.bf16.mxu0 %v3486
        %3591 = vmatpush1.bf16.msra.mxu0 %v3483
        %3592 = vmatprep.subr.bf16.mxu0 %v3405
        %3593 = vmatpush1.bf16.msra.mxu0 %v3404
        %3594 = vmatprep.subr.bf16.mxu0 0
        %3595 = vmatpush2.bf16.msra.mxu0 0
        %3596 = vmatprep.subr.bf16.mxu0 0
        %3597 = vmatpush2.bf16.msra.mxu0 0
        %3598 = vmatprep.subr.bf16.mxu0 0
        %3599 = vmatpush2.bf16.msra.mxu0 0
        %3600 = vmatprep.subr.bf16.mxu0 0
        %3601 = vmatpush2.bf16.msra.mxu0 0
        %3602 = vmatprep.subr.bf16.mxu0 0
        %3603 = vmatpush2.bf16.msra.mxu0 0
        %3604 = vmatprep.subr.bf16.mxu0 0
        %3605 = vmatpush2.bf16.msra.mxu0 0
        %3606 = vmatprep.subr.bf16.mxu0 0
        %3607 = vmatpush2.bf16.msra.mxu0 0
        %3608 = vmatprep.subr.bf16.mxu0 0
        %3609 = vmatpush2.bf16.msra.mxu0 0
        %3610 = vmatprep.mubr.bf16.mxu0 0
        %3611 = vmatmul.mubr.bf16.gmra.mxu0 %v3477
        %v3612 = vpop.f32.mrf.mxu0
        %v3613 = vadd.f32 0.0, %v3612
        %v3614 = vpop.f32.mrf.mxu0
        %v3615 = vadd.f32 0.0, %v3614
        %v3616 = vpop.f32.mrf.mxu0
        %v3617 = vadd.f32 0.0, %v3616
        %v3618 = vpop.f32.mrf.mxu0
        %v3619 = vadd.f32 0.0, %v3618
        %3620 = vmatprep.mubr.bf16.mxu0 0
        %3621 = vmatmul.mubr.bf16.gmra.mxu0 %v3480
        %v3622 = vpop.f32.mrf.mxu0
        %v3623 = vadd.f32 0.0, %v3622
        %v3624 = vpop.f32.mrf.mxu0
        %v3625 = vadd.f32 0.0, %v3624
        %v3626 = vpop.f32.mrf.mxu0
        %v3627 = vpop.f32.mrf.mxu0
        %3628 = vdwg.mxu0
        %3629 = vmatprep.subr.bf16.mxu0 0
        %3630 = vmatpush1.bf16.msra.mxu0 0
        %3631 = vmatprep.subr.bf16.mxu0 0
        %3632 = vmatpush1.bf16.msra.mxu0 0
        %3633 = vmatprep.subr.bf16.mxu0 0
        %3634 = vmatpush1.bf16.msra.mxu0 0
        %3635 = vmatprep.subr.bf16.mxu0 0
        %3636 = vmatpush1.bf16.msra.mxu0 0
        %3637 = vmatprep.subr.bf16.mxu0 0
        %3638 = vmatpush1.bf16.msra.mxu0 0
        %3639 = vmatprep.subr.bf16.mxu0 0
        %3640 = vmatpush1.bf16.msra.mxu0 0
        %3641 = vmatprep.subr.bf16.mxu0 %v3492
        %3642 = vmatpush1.bf16.msra.mxu0 %v3489
        %3643 = vmatprep.subr.bf16.mxu0 %v3407
        %3644 = vmatpush1.bf16.msra.mxu0 %v3406
        %3645 = vmatprep.subr.bf16.mxu0 0
        %3646 = vmatpush2.bf16.msra.mxu0 0
        %3647 = vmatprep.subr.bf16.mxu0 0
        %3648 = vmatpush2.bf16.msra.mxu0 0
        %3649 = vmatprep.subr.bf16.mxu0 0
        %3650 = vmatpush2.bf16.msra.mxu0 0
        %3651 = vmatprep.subr.bf16.mxu0 0
        %3652 = vmatpush2.bf16.msra.mxu0 0
        %3653 = vmatprep.subr.bf16.mxu0 0
        %3654 = vmatpush2.bf16.msra.mxu0 0
        %3655 = vmatprep.subr.bf16.mxu0 0
        %3656 = vmatpush2.bf16.msra.mxu0 0
        %3657 = vmatprep.subr.bf16.mxu0 0
        %3658 = vmatpush2.bf16.msra.mxu0 0
        %3659 = vmatprep.subr.bf16.mxu0 0
        %3660 = vmatpush2.bf16.msra.mxu0 0
        %3661 = vmatprep.mubr.bf16.mxu0 0
        %3662 = vmatmul.mubr.bf16.gmra.mxu0 %v3477
        %v3663 = vpop.f32.mrf.mxu0
        %v3664 = vadd.f32 0.0, %v3663
        %v3665 = vpop.f32.mrf.mxu0
        %v3666 = vadd.f32 0.0, %v3665
        %v3667 = vpop.f32.mrf.mxu0
        %v3668 = vadd.f32 0.0, %v3667
        %v3669 = vpop.f32.mrf.mxu0
        %v3670 = vadd.f32 0.0, %v3669
        %3671 = vmatprep.mubr.bf16.mxu0 0
        %3672 = vmatmul.mubr.bf16.gmra.mxu0 %v3480
        %v3673 = vpop.f32.mrf.mxu0
        %v3674 = vadd.f32 0.0, %v3673
        %v3675 = vpop.f32.mrf.mxu0
        %v3676 = vadd.f32 0.0, %v3675
        %v3677 = vpop.f32.mrf.mxu0
        %v3678 = vpop.f32.mrf.mxu0
        %3679 = vdwg.mxu0
        %3680 = vmatprep.subr.bf16.mxu0 0
        %3681 = vmatpush1.bf16.msra.mxu0 0
        %3682 = vmatprep.subr.bf16.mxu0 0
        %3683 = vmatpush1.bf16.msra.mxu0 0
        %3684 = vmatprep.subr.bf16.mxu0 0
        %3685 = vmatpush1.bf16.msra.mxu0 0
        %3686 = vmatprep.subr.bf16.mxu0 0
        %3687 = vmatpush1.bf16.msra.mxu0 0
        %3688 = vmatprep.subr.bf16.mxu0 0
        %3689 = vmatpush1.bf16.msra.mxu0 0
        %3690 = vmatprep.subr.bf16.mxu0 0
        %3691 = vmatpush1.bf16.msra.mxu0 0
        %3692 = vmatprep.subr.bf16.mxu0 %v3498
        %3693 = vmatpush1.bf16.msra.mxu0 %v3495
        %3694 = vmatprep.subr.bf16.mxu0 %v3409
        %3695 = vmatpush1.bf16.msra.mxu0 %v3408
        %3696 = vmatprep.subr.bf16.mxu0 0
        %3697 = vmatpush2.bf16.msra.mxu0 0
        %3698 = vmatprep.subr.bf16.mxu0 0
        %3699 = vmatpush2.bf16.msra.mxu0 0
        %3700 = vmatprep.subr.bf16.mxu0 0
        %3701 = vmatpush2.bf16.msra.mxu0 0
        %3702 = vmatprep.subr.bf16.mxu0 0
        %3703 = vmatpush2.bf16.msra.mxu0 0
        %3704 = vmatprep.subr.bf16.mxu0 0
        %3705 = vmatpush2.bf16.msra.mxu0 0
        %3706 = vmatprep.subr.bf16.mxu0 0
        %3707 = vmatpush2.bf16.msra.mxu0 0
        %3708 = vmatprep.subr.bf16.mxu0 0
        %3709 = vmatpush2.bf16.msra.mxu0 0
        %3710 = vmatprep.subr.bf16.mxu0 0
        %3711 = vmatpush2.bf16.msra.mxu0 0
        %3712 = vmatprep.mubr.bf16.mxu0 0
        %3713 = vmatmul.mubr.bf16.gmra.mxu0 %v3477
        %v3714 = vpop.f32.mrf.mxu0
        %v3715 = vadd.f32 0.0, %v3714
        %v3716 = vpop.f32.mrf.mxu0
        %v3717 = vadd.f32 0.0, %v3716
        %v3718 = vpop.f32.mrf.mxu0
        %v3719 = vadd.f32 0.0, %v3718
        %v3720 = vpop.f32.mrf.mxu0
        %v3721 = vadd.f32 0.0, %v3720
        %3722 = vmatprep.mubr.bf16.mxu0 0
        %3723 = vmatmul.mubr.bf16.gmra.mxu0 %v3480
        %v3724 = vpop.f32.mrf.mxu0
        %v3725 = vadd.f32 0.0, %v3724
        %v3726 = vpop.f32.mrf.mxu0
        %v3727 = vadd.f32 0.0, %v3726
        %v3728 = vpop.f32.mrf.mxu0
        %v3729 = vpop.f32.mrf.mxu0
        %3730 = vdwg.mxu0
        %3731 = vmatprep.subr.bf16.mxu0 0
        %3732 = vmatpush1.bf16.msra.mxu0 0
        %3733 = vmatprep.subr.bf16.mxu0 0
        %3734 = vmatpush1.bf16.msra.mxu0 0
        %3735 = vmatprep.subr.bf16.mxu0 0
        %3736 = vmatpush1.bf16.msra.mxu0 0
        %3737 = vmatprep.subr.bf16.mxu0 0
        %3738 = vmatpush1.bf16.msra.mxu0 0
        %3739 = vmatprep.subr.bf16.mxu0 0
        %3740 = vmatpush1.bf16.msra.mxu0 0
        %3741 = vmatprep.subr.bf16.mxu0 0
        %3742 = vmatpush1.bf16.msra.mxu0 0
        %3743 = vmatprep.subr.bf16.mxu0 %v3504
        %3744 = vmatpush1.bf16.msra.mxu0 %v3501
        %3745 = vmatprep.subr.bf16.mxu0 %v3411
        %3746 = vmatpush1.bf16.msra.mxu0 %v3410
        %3747 = vmatprep.subr.bf16.mxu0 0
        %3748 = vmatpush2.bf16.msra.mxu0 0
        %3749 = vmatprep.subr.bf16.mxu0 0
        %3750 = vmatpush2.bf16.msra.mxu0 0
        %3751 = vmatprep.subr.bf16.mxu0 0
        %3752 = vmatpush2.bf16.msra.mxu0 0
        %3753 = vmatprep.subr.bf16.mxu0 0
        %3754 = vmatpush2.bf16.msra.mxu0 0
        %3755 = vmatprep.subr.bf16.mxu0 0
        %3756 = vmatpush2.bf16.msra.mxu0 0
        %3757 = vmatprep.subr.bf16.mxu0 0
        %3758 = vmatpush2.bf16.msra.mxu0 0
        %3759 = vmatprep.subr.bf16.mxu0 0
        %3760 = vmatpush2.bf16.msra.mxu0 0
        %3761 = vmatprep.subr.bf16.mxu0 0
        %3762 = vmatpush2.bf16.msra.mxu0 0
        %3763 = vmatprep.mubr.bf16.mxu0 0
        %3764 = vmatmul.mubr.bf16.gmra.mxu0 %v3477
        %v3765 = vpop.f32.mrf.mxu0
        %v3766 = vadd.f32 0.0, %v3765
        %v3767 = vpop.f32.mrf.mxu0
        %v3768 = vadd.f32 0.0, %v3767
        %v3769 = vpop.f32.mrf.mxu0
        %v3770 = vadd.f32 0.0, %v3769
        %v3771 = vpop.f32.mrf.mxu0
        %v3772 = vadd.f32 0.0, %v3771
        %3773 = vmatprep.mubr.bf16.mxu0 0
        %3774 = vmatmul.mubr.bf16.gmra.mxu0 %v3480
        %v3775 = vpop.f32.mrf.mxu0
        %v3776 = vadd.f32 0.0, %v3775
        %v3777 = vpop.f32.mrf.mxu0
        %v3778 = vadd.f32 0.0, %v3777
        %v3779 = vpop.f32.mrf.mxu0
        %v3780 = vpop.f32.mrf.mxu0
        %3781 = vdwg.mxu0
        %3782 = vmatprep.subr.bf16.mxu0 0
        %3783 = vmatpush1.bf16.msra.mxu0 0
        %3784 = vmatprep.subr.bf16.mxu0 0
        %3785 = vmatpush1.bf16.msra.mxu0 0
        %3786 = vmatprep.subr.bf16.mxu0 0
        %3787 = vmatpush1.bf16.msra.mxu0 0
        %3788 = vmatprep.subr.bf16.mxu0 0
        %3789 = vmatpush1.bf16.msra.mxu0 0
        %3790 = vmatprep.subr.bf16.mxu0 0
        %3791 = vmatpush1.bf16.msra.mxu0 0
        %3792 = vmatprep.subr.bf16.mxu0 0
        %3793 = vmatpush1.bf16.msra.mxu0 0
        %3794 = vmatprep.subr.bf16.mxu0 %v3510
        %3795 = vmatpush1.bf16.msra.mxu0 %v3507
        %3796 = vmatprep.subr.bf16.mxu0 %v3413
        %3797 = vmatpush1.bf16.msra.mxu0 %v3412
        %3798 = vmatprep.subr.bf16.mxu0 0
        %3799 = vmatpush2.bf16.msra.mxu0 0
        %3800 = vmatprep.subr.bf16.mxu0 0
        %3801 = vmatpush2.bf16.msra.mxu0 0
        %3802 = vmatprep.subr.bf16.mxu0 0
        %3803 = vmatpush2.bf16.msra.mxu0 0
        %3804 = vmatprep.subr.bf16.mxu0 0
        %3805 = vmatpush2.bf16.msra.mxu0 0
        %3806 = vmatprep.subr.bf16.mxu0 0
        %3807 = vmatpush2.bf16.msra.mxu0 0
        %3808 = vmatprep.subr.bf16.mxu0 0
        %3809 = vmatpush2.bf16.msra.mxu0 0
        %3810 = vmatprep.subr.bf16.mxu0 0
        %3811 = vmatpush2.bf16.msra.mxu0 0
        %3812 = vmatprep.subr.bf16.mxu0 0
        %3813 = vmatpush2.bf16.msra.mxu0 0
        %3814 = vmatprep.mubr.bf16.mxu0 0
        %3815 = vmatmul.mubr.bf16.gmra.mxu0 %v3477
        %v3816 = vpop.f32.mrf.mxu0
        %v3817 = vadd.f32 0.0, %v3816
        %v3818 = vpop.f32.mrf.mxu0
        %v3819 = vadd.f32 0.0, %v3818
        %v3820 = vpop.f32.mrf.mxu0
        %v3821 = vadd.f32 0.0, %v3820
        %v3822 = vpop.f32.mrf.mxu0
        %v3823 = vadd.f32 0.0, %v3822
        %3824 = vmatprep.mubr.bf16.mxu0 0
        %3825 = vmatmul.mubr.bf16.gmra.mxu0 %v3480
        %v3826 = vpop.f32.mrf.mxu0
        %v3827 = vadd.f32 0.0, %v3826
        %v3828 = vpop.f32.mrf.mxu0
        %v3829 = vadd.f32 0.0, %v3828
        %v3830 = vpop.f32.mrf.mxu0
        %v3831 = vpop.f32.mrf.mxu0
        %3832 = vdwg.mxu0
        %3833 = vmatprep.subr.bf16.mxu0 0
        %3834 = vmatpush1.bf16.msra.mxu0 0
        %3835 = vmatprep.subr.bf16.mxu0 0
        %3836 = vmatpush1.bf16.msra.mxu0 0
        %3837 = vmatprep.subr.bf16.mxu0 0
        %3838 = vmatpush1.bf16.msra.mxu0 0
        %3839 = vmatprep.subr.bf16.mxu0 0
        %3840 = vmatpush1.bf16.msra.mxu0 0
        %3841 = vmatprep.subr.bf16.mxu0 0
        %3842 = vmatpush1.bf16.msra.mxu0 0
        %3843 = vmatprep.subr.bf16.mxu0 0
        %3844 = vmatpush1.bf16.msra.mxu0 0
        %3845 = vmatprep.subr.bf16.mxu0 %v3516
        %3846 = vmatpush1.bf16.msra.mxu0 %v3513
        %3847 = vmatprep.subr.bf16.mxu0 %v3415
        %3848 = vmatpush1.bf16.msra.mxu0 %v3414
        %3849 = vmatprep.subr.bf16.mxu0 0
        %3850 = vmatpush2.bf16.msra.mxu0 0
        %3851 = vmatprep.subr.bf16.mxu0 0
        %3852 = vmatpush2.bf16.msra.mxu0 0
        %3853 = vmatprep.subr.bf16.mxu0 0
        %3854 = vmatpush2.bf16.msra.mxu0 0
        %3855 = vmatprep.subr.bf16.mxu0 0
        %3856 = vmatpush2.bf16.msra.mxu0 0
        %3857 = vmatprep.subr.bf16.mxu0 0
        %3858 = vmatpush2.bf16.msra.mxu0 0
        %3859 = vmatprep.subr.bf16.mxu0 0
        %3860 = vmatpush2.bf16.msra.mxu0 0
        %3861 = vmatprep.subr.bf16.mxu0 0
        %3862 = vmatpush2.bf16.msra.mxu0 0
        %3863 = vmatprep.subr.bf16.mxu0 0
        %3864 = vmatpush2.bf16.msra.mxu0 0
        %3865 = vmatprep.mubr.bf16.mxu0 0
        %3866 = vmatmul.mubr.bf16.gmra.mxu0 %v3477
        %v3867 = vpop.f32.mrf.mxu0
        %v3868 = vadd.f32 0.0, %v3867
        %v3869 = vpop.f32.mrf.mxu0
        %v3870 = vadd.f32 0.0, %v3869
        %v3871 = vpop.f32.mrf.mxu0
        %v3872 = vadd.f32 0.0, %v3871
        %v3873 = vpop.f32.mrf.mxu0
        %v3874 = vadd.f32 0.0, %v3873
        %3875 = vmatprep.mubr.bf16.mxu0 0
        %3876 = vmatmul.mubr.bf16.gmra.mxu0 %v3480
        %v3877 = vpop.f32.mrf.mxu0
        %v3878 = vadd.f32 0.0, %v3877
        %v3879 = vpop.f32.mrf.mxu0
        %v3880 = vadd.f32 0.0, %v3879
        %v3881 = vpop.f32.mrf.mxu0
        %v3882 = vpop.f32.mrf.mxu0
        %3883 = vdwg.mxu0
        %3884 = vmatprep.subr.bf16.mxu0 0
        %3885 = vmatpush1.bf16.msra.mxu0 0
        %3886 = vmatprep.subr.bf16.mxu0 0
        %3887 = vmatpush1.bf16.msra.mxu0 0
        %3888 = vmatprep.subr.bf16.mxu0 0
        %3889 = vmatpush1.bf16.msra.mxu0 0
        %3890 = vmatprep.subr.bf16.mxu0 0
        %3891 = vmatpush1.bf16.msra.mxu0 0
        %3892 = vmatprep.subr.bf16.mxu0 0
        %3893 = vmatpush1.bf16.msra.mxu0 0
        %3894 = vmatprep.subr.bf16.mxu0 0
        %3895 = vmatpush1.bf16.msra.mxu0 0
        %3896 = vmatprep.subr.bf16.mxu0 %v3522
        %3897 = vmatpush1.bf16.msra.mxu0 %v3519
        %3898 = vmatprep.subr.bf16.mxu0 %v3417
        %3899 = vmatpush1.bf16.msra.mxu0 %v3416
        %3900 = vmatprep.subr.bf16.mxu0 0
        %3901 = vmatpush2.bf16.msra.mxu0 0
        %3902 = vmatprep.subr.bf16.mxu0 0
        %3903 = vmatpush2.bf16.msra.mxu0 0
        %3904 = vmatprep.subr.bf16.mxu0 0
        %3905 = vmatpush2.bf16.msra.mxu0 0
        %3906 = vmatprep.subr.bf16.mxu0 0
        %3907 = vmatpush2.bf16.msra.mxu0 0
        %3908 = vmatprep.subr.bf16.mxu0 0
        %3909 = vmatpush2.bf16.msra.mxu0 0
        %3910 = vmatprep.subr.bf16.mxu0 0
        %3911 = vmatpush2.bf16.msra.mxu0 0
        %3912 = vmatprep.subr.bf16.mxu0 0
        %3913 = vmatpush2.bf16.msra.mxu0 0
        %3914 = vmatprep.subr.bf16.mxu0 0
        %3915 = vmatpush2.bf16.msra.mxu0 0
        %3916 = vmatprep.mubr.bf16.mxu0 0
        %3917 = vmatmul.mubr.bf16.gmra.mxu0 %v3477
        %v3918 = vpop.f32.mrf.mxu0
        %v3919 = vadd.f32 0.0, %v3918
        %v3920 = vpop.f32.mrf.mxu0
        %v3921 = vadd.f32 0.0, %v3920
        %v3922 = vpop.f32.mrf.mxu0
        %v3923 = vadd.f32 0.0, %v3922
        %v3924 = vpop.f32.mrf.mxu0
        %v3925 = vadd.f32 0.0, %v3924
        %3926 = vmatprep.mubr.bf16.mxu0 0
        %3927 = vmatmul.mubr.bf16.gmra.mxu0 %v3480
        %v3928 = vpop.f32.mrf.mxu0
        %v3929 = vadd.f32 0.0, %v3928
        %v3930 = vpop.f32.mrf.mxu0
        %v3931 = vadd.f32 0.0, %v3930
        %v3932 = vpop.f32.mrf.mxu0
        %v3933 = vpop.f32.mrf.mxu0
        %3934 = vdwg.mxu0
        %3935 = vmatprep.subr.bf16.mxu0 0
        %3936 = vmatpush1.bf16.msra.mxu0 0
        %3937 = vmatprep.subr.bf16.mxu0 0
        %3938 = vmatpush1.bf16.msra.mxu0 0
        %3939 = vmatprep.subr.bf16.mxu0 0
        %3940 = vmatpush1.bf16.msra.mxu0 0
        %3941 = vmatprep.subr.bf16.mxu0 0
        %3942 = vmatpush1.bf16.msra.mxu0 0
        %3943 = vmatprep.subr.bf16.mxu0 0
        %3944 = vmatpush1.bf16.msra.mxu0 0
        %3945 = vmatprep.subr.bf16.mxu0 0
        %3946 = vmatpush1.bf16.msra.mxu0 0
        %3947 = vmatprep.subr.bf16.mxu0 %v3528
        %3948 = vmatpush1.bf16.msra.mxu0 %v3525
        %3949 = vmatprep.subr.bf16.mxu0 %v3419
        %3950 = vmatpush1.bf16.msra.mxu0 %v3418
        %3951 = vmatprep.subr.bf16.mxu0 0
        %3952 = vmatpush2.bf16.msra.mxu0 0
        %3953 = vmatprep.subr.bf16.mxu0 0
        %3954 = vmatpush2.bf16.msra.mxu0 0
        %3955 = vmatprep.subr.bf16.mxu0 0
        %3956 = vmatpush2.bf16.msra.mxu0 0
        %3957 = vmatprep.subr.bf16.mxu0 0
        %3958 = vmatpush2.bf16.msra.mxu0 0
        %3959 = vmatprep.subr.bf16.mxu0 0
        %3960 = vmatpush2.bf16.msra.mxu0 0
        %3961 = vmatprep.subr.bf16.mxu0 0
        %3962 = vmatpush2.bf16.msra.mxu0 0
        %3963 = vmatprep.subr.bf16.mxu0 0
        %3964 = vmatpush2.bf16.msra.mxu0 0
        %3965 = vmatprep.subr.bf16.mxu0 0
        %3966 = vmatpush2.bf16.msra.mxu0 0
        %3967 = vmatprep.mubr.bf16.mxu0 0
        %3968 = vmatmul.mubr.bf16.gmra.mxu0 %v3477
        %v3969 = vpop.f32.mrf.mxu0
        %v3970 = vadd.f32 0.0, %v3969
        %v3971 = vpop.f32.mrf.mxu0
        %v3972 = vadd.f32 0.0, %v3971
        %v3973 = vpop.f32.mrf.mxu0
        %v3974 = vadd.f32 0.0, %v3973
        %v3975 = vpop.f32.mrf.mxu0
        %v3976 = vadd.f32 0.0, %v3975
        %3977 = vmatprep.mubr.bf16.mxu0 0
        %3978 = vmatmul.mubr.bf16.gmra.mxu0 %v3480
        %v3979 = vpop.f32.mrf.mxu0
        %v3980 = vadd.f32 0.0, %v3979
        %v3981 = vpop.f32.mrf.mxu0
        %v3982 = vadd.f32 0.0, %v3981
        %v3983 = vpop.f32.mrf.mxu0
        %v3984 = vpop.f32.mrf.mxu0
        %3985 = vdwg.mxu0
        %3986 = vmatprep.subr.bf16.mxu0 0
        %3987 = vmatpush1.bf16.msra.mxu0 0
        %3988 = vmatprep.subr.bf16.mxu0 0
        %3989 = vmatpush1.bf16.msra.mxu0 0
        %3990 = vmatprep.subr.bf16.mxu0 0
        %3991 = vmatpush1.bf16.msra.mxu0 0
        %3992 = vmatprep.subr.bf16.mxu0 0
        %3993 = vmatpush1.bf16.msra.mxu0 0
        %3994 = vmatprep.subr.bf16.mxu0 0
        %3995 = vmatpush1.bf16.msra.mxu0 0
        %3996 = vmatprep.subr.bf16.mxu0 0
        %3997 = vmatpush1.bf16.msra.mxu0 0
        %3998 = vmatprep.subr.bf16.mxu0 %v3534
        %3999 = vmatpush1.bf16.msra.mxu0 %v3531
        %4000 = vmatprep.subr.bf16.mxu0 %v3421
        %4001 = vmatpush1.bf16.msra.mxu0 %v3420
        %4002 = vmatprep.subr.bf16.mxu0 0
        %4003 = vmatpush2.bf16.msra.mxu0 0
        %4004 = vmatprep.subr.bf16.mxu0 0
        %4005 = vmatpush2.bf16.msra.mxu0 0
        %4006 = vmatprep.subr.bf16.mxu0 0
        %4007 = vmatpush2.bf16.msra.mxu0 0
        %4008 = vmatprep.subr.bf16.mxu0 0
        %4009 = vmatpush2.bf16.msra.mxu0 0
        %4010 = vmatprep.subr.bf16.mxu0 0
        %4011 = vmatpush2.bf16.msra.mxu0 0
        %4012 = vmatprep.subr.bf16.mxu0 0
        %4013 = vmatpush2.bf16.msra.mxu0 0
        %4014 = vmatprep.subr.bf16.mxu0 0
        %4015 = vmatpush2.bf16.msra.mxu0 0
        %4016 = vmatprep.subr.bf16.mxu0 0
        %4017 = vmatpush2.bf16.msra.mxu0 0
        %4018 = vmatprep.mubr.bf16.mxu0 0
        %4019 = vmatmul.mubr.bf16.gmra.mxu0 %v3477
        %v4020 = vpop.f32.mrf.mxu0
        %v4021 = vadd.f32 0.0, %v4020
        %v4022 = vpop.f32.mrf.mxu0
        %v4023 = vadd.f32 0.0, %v4022
        %v4024 = vpop.f32.mrf.mxu0
        %v4025 = vadd.f32 0.0, %v4024
        %v4026 = vpop.f32.mrf.mxu0
        %v4027 = vadd.f32 0.0, %v4026
        %4028 = vmatprep.mubr.bf16.mxu0 0
        %4029 = vmatmul.mubr.bf16.gmra.mxu0 %v3480
        %v4030 = vpop.f32.mrf.mxu0
        %v4031 = vadd.f32 0.0, %v4030
        %v4032 = vpop.f32.mrf.mxu0
        %v4033 = vadd.f32 0.0, %v4032
        %v4034 = vpop.f32.mrf.mxu0
        %v4035 = vpop.f32.mrf.mxu0
        %4036 = vdwg.mxu0
        %4037 = vmatprep.subr.bf16.mxu0 0
        %4038 = vmatpush1.bf16.msra.mxu0 0
        %4039 = vmatprep.subr.bf16.mxu0 0
        %4040 = vmatpush1.bf16.msra.mxu0 0
        %4041 = vmatprep.subr.bf16.mxu0 0
        %4042 = vmatpush1.bf16.msra.mxu0 0
        %4043 = vmatprep.subr.bf16.mxu0 0
        %4044 = vmatpush1.bf16.msra.mxu0 0
        %4045 = vmatprep.subr.bf16.mxu0 0
        %4046 = vmatpush1.bf16.msra.mxu0 0
        %4047 = vmatprep.subr.bf16.mxu0 0
        %4048 = vmatpush1.bf16.msra.mxu0 0
        %4049 = vmatprep.subr.bf16.mxu0 %v3540
        %4050 = vmatpush1.bf16.msra.mxu0 %v3537
        %4051 = vmatprep.subr.bf16.mxu0 %v3423
        %4052 = vmatpush1.bf16.msra.mxu0 %v3422
        %4053 = vmatprep.subr.bf16.mxu0 0
        %4054 = vmatpush2.bf16.msra.mxu0 0
        %4055 = vmatprep.subr.bf16.mxu0 0
        %4056 = vmatpush2.bf16.msra.mxu0 0
        %4057 = vmatprep.subr.bf16.mxu0 0
        %4058 = vmatpush2.bf16.msra.mxu0 0
        %4059 = vmatprep.subr.bf16.mxu0 0
        %4060 = vmatpush2.bf16.msra.mxu0 0
        %4061 = vmatprep.subr.bf16.mxu0 0
        %4062 = vmatpush2.bf16.msra.mxu0 0
        %4063 = vmatprep.subr.bf16.mxu0 0
        %4064 = vmatpush2.bf16.msra.mxu0 0
        %4065 = vmatprep.subr.bf16.mxu0 0
        %4066 = vmatpush2.bf16.msra.mxu0 0
        %4067 = vmatprep.subr.bf16.mxu0 0
        %4068 = vmatpush2.bf16.msra.mxu0 0
        %4069 = vmatprep.mubr.bf16.mxu0 0
        %4070 = vmatmul.mubr.bf16.gmra.mxu0 %v3477
        %v4071 = vpop.f32.mrf.mxu0
        %v4072 = vadd.f32 0.0, %v4071
        %v4073 = vpop.f32.mrf.mxu0
        %v4074 = vadd.f32 0.0, %v4073
        %v4075 = vpop.f32.mrf.mxu0
        %v4076 = vadd.f32 0.0, %v4075
        %v4077 = vpop.f32.mrf.mxu0
        %v4078 = vadd.f32 0.0, %v4077
        %4079 = vmatprep.mubr.bf16.mxu0 0
        %4080 = vmatmul.mubr.bf16.gmra.mxu0 %v3480
        %v4081 = vpop.f32.mrf.mxu0
        %v4082 = vadd.f32 0.0, %v4081
        %v4083 = vpop.f32.mrf.mxu0
        %v4084 = vadd.f32 0.0, %v4083
        %v4085 = vpop.f32.mrf.mxu0
        %v4086 = vpop.f32.mrf.mxu0
        %4087 = vdwg.mxu0
        %4088 = vmatprep.subr.bf16.mxu0 0
        %4089 = vmatpush1.bf16.msra.mxu0 0
        %4090 = vmatprep.subr.bf16.mxu0 0
        %4091 = vmatpush1.bf16.msra.mxu0 0
        %4092 = vmatprep.subr.bf16.mxu0 0
        %4093 = vmatpush1.bf16.msra.mxu0 0
        %4094 = vmatprep.subr.bf16.mxu0 0
        %4095 = vmatpush1.bf16.msra.mxu0 0
        %4096 = vmatprep.subr.bf16.mxu0 0
        %4097 = vmatpush1.bf16.msra.mxu0 0
        %4098 = vmatprep.subr.bf16.mxu0 0
        %4099 = vmatpush1.bf16.msra.mxu0 0
        %4100 = vmatprep.subr.bf16.mxu0 %v3546
        %4101 = vmatpush1.bf16.msra.mxu0 %v3543
        %4102 = vmatprep.subr.bf16.mxu0 %v3425
        %4103 = vmatpush1.bf16.msra.mxu0 %v3424
        %4104 = vmatprep.subr.bf16.mxu0 0
        %4105 = vmatpush2.bf16.msra.mxu0 0
        %4106 = vmatprep.subr.bf16.mxu0 0
        %4107 = vmatpush2.bf16.msra.mxu0 0
        %4108 = vmatprep.subr.bf16.mxu0 0
        %4109 = vmatpush2.bf16.msra.mxu0 0
        %4110 = vmatprep.subr.bf16.mxu0 0
        %4111 = vmatpush2.bf16.msra.mxu0 0
        %4112 = vmatprep.subr.bf16.mxu0 0
        %4113 = vmatpush2.bf16.msra.mxu0 0
        %4114 = vmatprep.subr.bf16.mxu0 0
        %4115 = vmatpush2.bf16.msra.mxu0 0
        %4116 = vmatprep.subr.bf16.mxu0 0
        %4117 = vmatpush2.bf16.msra.mxu0 0
        %4118 = vmatprep.subr.bf16.mxu0 0
        %4119 = vmatpush2.bf16.msra.mxu0 0
        %4120 = vmatprep.mubr.bf16.mxu0 0
        %4121 = vmatmul.mubr.bf16.gmra.mxu0 %v3477
        %v4122 = vpop.f32.mrf.mxu0
        %v4123 = vadd.f32 0.0, %v4122
        %v4124 = vpop.f32.mrf.mxu0
        %v4125 = vadd.f32 0.0, %v4124
        %v4126 = vpop.f32.mrf.mxu0
        %v4127 = vadd.f32 0.0, %v4126
        %v4128 = vpop.f32.mrf.mxu0
        %v4129 = vadd.f32 0.0, %v4128
        %4130 = vmatprep.mubr.bf16.mxu0 0
        %4131 = vmatmul.mubr.bf16.gmra.mxu0 %v3480
        %v4132 = vpop.f32.mrf.mxu0
        %v4133 = vadd.f32 0.0, %v4132
        %v4134 = vpop.f32.mrf.mxu0
        %v4135 = vadd.f32 0.0, %v4134
        %v4136 = vpop.f32.mrf.mxu0
        %v4137 = vpop.f32.mrf.mxu0
        %4138 = vdwg.mxu0
        %4139 = vmatprep.subr.bf16.mxu0 0
        %4140 = vmatpush1.bf16.msra.mxu0 0
        %4141 = vmatprep.subr.bf16.mxu0 0
        %4142 = vmatpush1.bf16.msra.mxu0 0
        %4143 = vmatprep.subr.bf16.mxu0 0
        %4144 = vmatpush1.bf16.msra.mxu0 0
        %4145 = vmatprep.subr.bf16.mxu0 0
        %4146 = vmatpush1.bf16.msra.mxu0 0
        %4147 = vmatprep.subr.bf16.mxu0 0
        %4148 = vmatpush1.bf16.msra.mxu0 0
        %4149 = vmatprep.subr.bf16.mxu0 0
        %4150 = vmatpush1.bf16.msra.mxu0 0
        %4151 = vmatprep.subr.bf16.mxu0 %v3552
        %4152 = vmatpush1.bf16.msra.mxu0 %v3549
        %4153 = vmatprep.subr.bf16.mxu0 %v3427
        %4154 = vmatpush1.bf16.msra.mxu0 %v3426
        %4155 = vmatprep.subr.bf16.mxu0 0
        %4156 = vmatpush2.bf16.msra.mxu0 0
        %4157 = vmatprep.subr.bf16.mxu0 0
        %4158 = vmatpush2.bf16.msra.mxu0 0
        %4159 = vmatprep.subr.bf16.mxu0 0
        %4160 = vmatpush2.bf16.msra.mxu0 0
        %4161 = vmatprep.subr.bf16.mxu0 0
        %4162 = vmatpush2.bf16.msra.mxu0 0
        %4163 = vmatprep.subr.bf16.mxu0 0
        %4164 = vmatpush2.bf16.msra.mxu0 0
        %4165 = vmatprep.subr.bf16.mxu0 0
        %4166 = vmatpush2.bf16.msra.mxu0 0
        %4167 = vmatprep.subr.bf16.mxu0 0
        %4168 = vmatpush2.bf16.msra.mxu0 0
        %4169 = vmatprep.subr.bf16.mxu0 0
        %4170 = vmatpush2.bf16.msra.mxu0 0
        %4171 = vmatprep.mubr.bf16.mxu0 0
        %4172 = vmatmul.mubr.bf16.gmra.mxu0 %v3477
        %v4173 = vpop.f32.mrf.mxu0
        %v4174 = vadd.f32 0.0, %v4173
        %v4175 = vpop.f32.mrf.mxu0
        %v4176 = vadd.f32 0.0, %v4175
        %v4177 = vpop.f32.mrf.mxu0
        %v4178 = vadd.f32 0.0, %v4177
        %v4179 = vpop.f32.mrf.mxu0
        %v4180 = vadd.f32 0.0, %v4179
        %4181 = vmatprep.mubr.bf16.mxu0 0
        %4182 = vmatmul.mubr.bf16.gmra.mxu0 %v3480
        %v4183 = vpop.f32.mrf.mxu0
        %v4184 = vadd.f32 0.0, %v4183
        %v4185 = vpop.f32.mrf.mxu0
        %v4186 = vadd.f32 0.0, %v4185
        %v4187 = vpop.f32.mrf.mxu0
        %v4188 = vpop.f32.mrf.mxu0
        %4189 = vdwg.mxu0
        %4190 = vmatprep.subr.bf16.mxu0 0
        %4191 = vmatpush1.bf16.msra.mxu0 0
        %4192 = vmatprep.subr.bf16.mxu0 0
        %4193 = vmatpush1.bf16.msra.mxu0 0
        %4194 = vmatprep.subr.bf16.mxu0 0
        %4195 = vmatpush1.bf16.msra.mxu0 0
        %4196 = vmatprep.subr.bf16.mxu0 0
        %4197 = vmatpush1.bf16.msra.mxu0 0
        %4198 = vmatprep.subr.bf16.mxu0 0
        %4199 = vmatpush1.bf16.msra.mxu0 0
        %4200 = vmatprep.subr.bf16.mxu0 0
        %4201 = vmatpush1.bf16.msra.mxu0 0
        %4202 = vmatprep.subr.bf16.mxu0 %v3558
        %4203 = vmatpush1.bf16.msra.mxu0 %v3555
        %4204 = vmatprep.subr.bf16.mxu0 %v3429
        %4205 = vmatpush1.bf16.msra.mxu0 %v3428
        %4206 = vmatprep.subr.bf16.mxu0 0
        %4207 = vmatpush2.bf16.msra.mxu0 0
        %4208 = vmatprep.subr.bf16.mxu0 0
        %4209 = vmatpush2.bf16.msra.mxu0 0
        %4210 = vmatprep.subr.bf16.mxu0 0
        %4211 = vmatpush2.bf16.msra.mxu0 0
        %4212 = vmatprep.subr.bf16.mxu0 0
        %4213 = vmatpush2.bf16.msra.mxu0 0
        %4214 = vmatprep.subr.bf16.mxu0 0
        %4215 = vmatpush2.bf16.msra.mxu0 0
        %4216 = vmatprep.subr.bf16.mxu0 0
        %4217 = vmatpush2.bf16.msra.mxu0 0
        %4218 = vmatprep.subr.bf16.mxu0 0
        %4219 = vmatpush2.bf16.msra.mxu0 0
        %4220 = vmatprep.subr.bf16.mxu0 0
        %4221 = vmatpush2.bf16.msra.mxu0 0
        %4222 = vmatprep.mubr.bf16.mxu0 0
        %4223 = vmatmul.mubr.bf16.gmra.mxu0 %v3477
        %v4224 = vpop.f32.mrf.mxu0
        %v4225 = vadd.f32 0.0, %v4224
        %v4226 = vpop.f32.mrf.mxu0
        %v4227 = vadd.f32 0.0, %v4226
        %v4228 = vpop.f32.mrf.mxu0
        %v4229 = vadd.f32 0.0, %v4228
        %v4230 = vpop.f32.mrf.mxu0
        %v4231 = vadd.f32 0.0, %v4230
        %4232 = vmatprep.mubr.bf16.mxu0 0
        %4233 = vmatmul.mubr.bf16.gmra.mxu0 %v3480
        %v4234 = vpop.f32.mrf.mxu0
        %v4235 = vadd.f32 0.0, %v4234
        %v4236 = vpop.f32.mrf.mxu0
        %v4237 = vadd.f32 0.0, %v4236
        %v4238 = vpop.f32.mrf.mxu0
        %v4239 = vpop.f32.mrf.mxu0
        %4240 = vdwg.mxu0
        %4241 = vmatprep.subr.bf16.mxu0 0
        %4242 = vmatpush1.bf16.msra.mxu0 0
        %4243 = vmatprep.subr.bf16.mxu0 0
        %4244 = vmatpush1.bf16.msra.mxu0 0
        %4245 = vmatprep.subr.bf16.mxu0 0
        %4246 = vmatpush1.bf16.msra.mxu0 0
        %4247 = vmatprep.subr.bf16.mxu0 0
        %4248 = vmatpush1.bf16.msra.mxu0 0
        %4249 = vmatprep.subr.bf16.mxu0 0
        %4250 = vmatpush1.bf16.msra.mxu0 0
        %4251 = vmatprep.subr.bf16.mxu0 0
        %4252 = vmatpush1.bf16.msra.mxu0 0
        %4253 = vmatprep.subr.bf16.mxu0 %v3564
        %4254 = vmatpush1.bf16.msra.mxu0 %v3561
        %4255 = vmatprep.subr.bf16.mxu0 %v3431
        %4256 = vmatpush1.bf16.msra.mxu0 %v3430
        %4257 = vmatprep.subr.bf16.mxu0 0
        %4258 = vmatpush2.bf16.msra.mxu0 0
        %4259 = vmatprep.subr.bf16.mxu0 0
        %4260 = vmatpush2.bf16.msra.mxu0 0
        %4261 = vmatprep.subr.bf16.mxu0 0
        %4262 = vmatpush2.bf16.msra.mxu0 0
        %4263 = vmatprep.subr.bf16.mxu0 0
        %4264 = vmatpush2.bf16.msra.mxu0 0
        %4265 = vmatprep.subr.bf16.mxu0 0
        %4266 = vmatpush2.bf16.msra.mxu0 0
        %4267 = vmatprep.subr.bf16.mxu0 0
        %4268 = vmatpush2.bf16.msra.mxu0 0
        %4269 = vmatprep.subr.bf16.mxu0 0
        %4270 = vmatpush2.bf16.msra.mxu0 0
        %4271 = vmatprep.subr.bf16.mxu0 0
        %4272 = vmatpush2.bf16.msra.mxu0 0
        %4273 = vmatprep.mubr.bf16.mxu0 0
        %4274 = vmatmul.mubr.bf16.gmra.mxu0 %v3477
        %v4275 = vpop.f32.mrf.mxu0
        %v4276 = vadd.f32 0.0, %v4275
        %v4277 = vpop.f32.mrf.mxu0
        %v4278 = vadd.f32 0.0, %v4277
        %v4279 = vpop.f32.mrf.mxu0
        %v4280 = vadd.f32 0.0, %v4279
        %v4281 = vpop.f32.mrf.mxu0
        %v4282 = vadd.f32 0.0, %v4281
        %4283 = vmatprep.mubr.bf16.mxu0 0
        %4284 = vmatmul.mubr.bf16.gmra.mxu0 %v3480
        %v4285 = vpop.f32.mrf.mxu0
        %v4286 = vadd.f32 0.0, %v4285
        %v4287 = vpop.f32.mrf.mxu0
        %v4288 = vadd.f32 0.0, %v4287
        %v4289 = vpop.f32.mrf.mxu0
        %v4290 = vpop.f32.mrf.mxu0
        %4291 = vdwg.mxu0
        %4292 = vmatprep.subr.bf16.mxu0 0
        %4293 = vmatpush1.bf16.msra.mxu0 0
        %4294 = vmatprep.subr.bf16.mxu0 0
        %4295 = vmatpush1.bf16.msra.mxu0 0
        %4296 = vmatprep.subr.bf16.mxu0 0
        %4297 = vmatpush1.bf16.msra.mxu0 0
        %4298 = vmatprep.subr.bf16.mxu0 0
        %4299 = vmatpush1.bf16.msra.mxu0 0
        %4300 = vmatprep.subr.bf16.mxu0 0
        %4301 = vmatpush1.bf16.msra.mxu0 0
        %4302 = vmatprep.subr.bf16.mxu0 0
        %4303 = vmatpush1.bf16.msra.mxu0 0
        %4304 = vmatprep.subr.bf16.mxu0 %v3570
        %4305 = vmatpush1.bf16.msra.mxu0 %v3567
        %4306 = vmatprep.subr.bf16.mxu0 %v3433
        %4307 = vmatpush1.bf16.msra.mxu0 %v3432
        %4308 = vmatprep.subr.bf16.mxu0 0
        %4309 = vmatpush2.bf16.msra.mxu0 0
        %4310 = vmatprep.subr.bf16.mxu0 0
        %4311 = vmatpush2.bf16.msra.mxu0 0
        %4312 = vmatprep.subr.bf16.mxu0 0
        %4313 = vmatpush2.bf16.msra.mxu0 0
        %4314 = vmatprep.subr.bf16.mxu0 0
        %4315 = vmatpush2.bf16.msra.mxu0 0
        %4316 = vmatprep.subr.bf16.mxu0 0
        %4317 = vmatpush2.bf16.msra.mxu0 0
        %4318 = vmatprep.subr.bf16.mxu0 0
        %4319 = vmatpush2.bf16.msra.mxu0 0
        %4320 = vmatprep.subr.bf16.mxu0 0
        %4321 = vmatpush2.bf16.msra.mxu0 0
        %4322 = vmatprep.subr.bf16.mxu0 0
        %4323 = vmatpush2.bf16.msra.mxu0 0
        %4324 = vmatprep.mubr.bf16.mxu0 0
        %4325 = vmatmul.mubr.bf16.gmra.mxu0 %v3477
        %v4326 = vpop.f32.mrf.mxu0
        %v4327 = vadd.f32 0.0, %v4326
        %v4328 = vpop.f32.mrf.mxu0
        %v4329 = vadd.f32 0.0, %v4328
        %v4330 = vpop.f32.mrf.mxu0
        %v4331 = vadd.f32 0.0, %v4330
        %v4332 = vpop.f32.mrf.mxu0
        %v4333 = vadd.f32 0.0, %v4332
        %4334 = vmatprep.mubr.bf16.mxu0 0
        %4335 = vmatmul.mubr.bf16.gmra.mxu0 %v3480
        %v4336 = vpop.f32.mrf.mxu0
        %v4337 = vadd.f32 0.0, %v4336
        %v4338 = vpop.f32.mrf.mxu0
        %v4339 = vadd.f32 0.0, %v4338
        %v4340 = vpop.f32.mrf.mxu0
        %v4341 = vpop.f32.mrf.mxu0
        %4342 = vdwg.mxu0
        %4343 = vmatprep.subr.bf16.mxu0 0
        %4344 = vmatpush1.bf16.msra.mxu0 0
        %4345 = vmatprep.subr.bf16.mxu0 0
        %4346 = vmatpush1.bf16.msra.mxu0 0
        %4347 = vmatprep.subr.bf16.mxu0 0
        %4348 = vmatpush1.bf16.msra.mxu0 0
        %4349 = vmatprep.subr.bf16.mxu0 0
        %4350 = vmatpush1.bf16.msra.mxu0 0
        %4351 = vmatprep.subr.bf16.mxu0 0
        %4352 = vmatpush1.bf16.msra.mxu0 0
        %4353 = vmatprep.subr.bf16.mxu0 0
        %4354 = vmatpush1.bf16.msra.mxu0 0
        %4355 = vmatprep.subr.bf16.mxu0 %v3576
        %4356 = vmatpush1.bf16.msra.mxu0 %v3573
        %4357 = vmatprep.subr.bf16.mxu0 %v3435
        %4358 = vmatpush1.bf16.msra.mxu0 %v3434
        %4359 = vmatprep.subr.bf16.mxu0 0
        %4360 = vmatpush2.bf16.msra.mxu0 0
        %4361 = vmatprep.subr.bf16.mxu0 0
        %4362 = vmatpush2.bf16.msra.mxu0 0
        %4363 = vmatprep.subr.bf16.mxu0 0
        %4364 = vmatpush2.bf16.msra.mxu0 0
        %4365 = vmatprep.subr.bf16.mxu0 0
        %4366 = vmatpush2.bf16.msra.mxu0 0
        %4367 = vmatprep.subr.bf16.mxu0 0
        %4368 = vmatpush2.bf16.msra.mxu0 0
        %4369 = vmatprep.subr.bf16.mxu0 0
        %4370 = vmatpush2.bf16.msra.mxu0 0
        %4371 = vmatprep.subr.bf16.mxu0 0
        %4372 = vmatpush2.bf16.msra.mxu0 0
        %4373 = vmatprep.subr.bf16.mxu0 0
        %4374 = vmatpush2.bf16.msra.mxu0 0
        %4375 = vmatprep.mubr.bf16.mxu0 0
        %4376 = vmatmul.mubr.bf16.gmra.mxu0 %v3477
        %v4377 = vpop.f32.mrf.mxu0
        %v4378 = vadd.f32 0.0, %v4377
        %v4379 = vpop.f32.mrf.mxu0
        %v4380 = vadd.f32 0.0, %v4379
        %v4381 = vpop.f32.mrf.mxu0
        %v4382 = vadd.f32 0.0, %v4381
        %v4383 = vpop.f32.mrf.mxu0
        %v4384 = vadd.f32 0.0, %v4383
        %4385 = vmatprep.mubr.bf16.mxu0 0
        %4386 = vmatmul.mubr.bf16.gmra.mxu0 %v3480
        %v4387 = vpop.f32.mrf.mxu0
        %v4388 = vadd.f32 0.0, %v4387
        %v4389 = vpop.f32.mrf.mxu0
        %v4390 = vadd.f32 0.0, %v4389
        %v4391 = vpop.f32.mrf.mxu0
        %v4392 = vpop.f32.mrf.mxu0
        %4393 = vdwg.mxu0
        %4394 = vrot.lane.b32.xlu0 %v3613, 64
        %v4395 = vpop.permute.xlu0 %4394
        %4396 = vrot.lane.b32.xlu0 %v3615, 64
        %v4397 = vpop.permute.xlu0 %4396
        %4398 = vrot.lane.b32.xlu0 %v3664, 64
        %v4399 = vpop.permute.xlu0 %4398
        %4400 = vrot.lane.b32.xlu0 %v3666, 64
        %v4401 = vpop.permute.xlu0 %4400
        %4402 = vrot.lane.b32.xlu0 %v3715, 64
        %v4403 = vpop.permute.xlu0 %4402
        %4404 = vrot.lane.b32.xlu0 %v3717, 64
        %v4405 = vpop.permute.xlu0 %4404
        %4406 = vrot.lane.b32.xlu0 %v3766, 64
        %v4407 = vpop.permute.xlu0 %4406
        %4408 = vrot.lane.b32.xlu0 %v3768, 64
        %v4409 = vpop.permute.xlu0 %4408
        %4410 = vrot.lane.b32.xlu0 %v3817, 64
        %v4411 = vpop.permute.xlu0 %4410
        %4412 = vrot.lane.b32.xlu0 %v3819, 64
        %v4413 = vpop.permute.xlu0 %4412
        %4414 = vrot.lane.b32.xlu0 %v3868, 64
        %v4415 = vpop.permute.xlu0 %4414
        %4416 = vrot.lane.b32.xlu0 %v3870, 64
        %v4417 = vpop.permute.xlu0 %4416
        %4418 = vrot.lane.b32.xlu0 %v3919, 64
        %v4419 = vpop.permute.xlu0 %4418
        %4420 = vrot.lane.b32.xlu0 %v3921, 64
        %v4421 = vpop.permute.xlu0 %4420
        %4422 = vrot.lane.b32.xlu0 %v3970, 64
        %v4423 = vpop.permute.xlu0 %4422
        %4424 = vrot.lane.b32.xlu0 %v3972, 64
        %v4425 = vpop.permute.xlu0 %4424
        %4426 = vrot.lane.b32.xlu0 %v4021, 64
        %v4427 = vpop.permute.xlu0 %4426
        %4428 = vrot.lane.b32.xlu0 %v4023, 64
        %v4429 = vpop.permute.xlu0 %4428
        %4430 = vrot.lane.b32.xlu0 %v4072, 64
        %v4431 = vpop.permute.xlu0 %4430
        %4432 = vrot.lane.b32.xlu0 %v4074, 64
        %v4433 = vpop.permute.xlu0 %4432
        %4434 = vrot.lane.b32.xlu0 %v4123, 64
        %v4435 = vpop.permute.xlu0 %4434
        %4436 = vrot.lane.b32.xlu0 %v4125, 64
        %v4437 = vpop.permute.xlu0 %4436
        %4438 = vrot.lane.b32.xlu0 %v4174, 64
        %v4439 = vpop.permute.xlu0 %4438
        %4440 = vrot.lane.b32.xlu0 %v4176, 64
        %v4441 = vpop.permute.xlu0 %4440
        %4442 = vrot.lane.b32.xlu0 %v4225, 64
        %v4443 = vpop.permute.xlu0 %4442
        %4444 = vrot.lane.b32.xlu0 %v4227, 64
        %v4445 = vpop.permute.xlu0 %4444
        %4446 = vrot.lane.b32.xlu0 %v4276, 64
        %v4447 = vpop.permute.xlu0 %4446
        %4448 = vrot.lane.b32.xlu0 %v4278, 64
        %v4449 = vpop.permute.xlu0 %4448
        %4450 = vrot.lane.b32.xlu0 %v4327, 64
        %v4451 = vpop.permute.xlu0 %4450
        %4452 = vrot.lane.b32.xlu0 %v4329, 64
        %v4453 = vpop.permute.xlu0 %4452
        %4454 = vrot.lane.b32.xlu0 %v4378, 64
        %v4455 = vpop.permute.xlu0 %4454
        %4456 = vrot.lane.b32.xlu0 %v4380, 64
        %v4457 = vpop.permute.xlu0 %4456
        %v4458 = vsel %vm2246, %v4455, %v4457
        %v4459 = vsel %vm2246, %v4453, %v4455
        %v4460 = vsel %vm2246, %v4451, %v4453
        %v4461 = vsel %vm2246, %v4449, %v4451
        %v4462 = vsel %vm2246, %v4447, %v4449
        %v4463 = vsel %vm2246, %v4445, %v4447
        %v4464 = vsel %vm2246, %v4443, %v4445
        %v4465 = vsel %vm2246, %v4441, %v4443
        %v4466 = vsel %vm2246, %v4439, %v4441
        %v4467 = vsel %vm2246, %v4437, %v4439
        %v4468 = vsel %vm2246, %v4435, %v4437
        %v4469 = vsel %vm2246, %v4433, %v4435
        %v4470 = vsel %vm2246, %v4431, %v4433
        %v4471 = vsel %vm2246, %v4429, %v4431
        %v4472 = vsel %vm2246, %v4427, %v4429
        %v4473 = vsel %vm2246, %v4425, %v4427
        %v4474 = vsel %vm2246, %v4423, %v4425
        %v4475 = vsel %vm2246, %v4421, %v4423
        %v4476 = vsel %vm2246, %v4419, %v4421
        %v4477 = vsel %vm2246, %v4417, %v4419
        %v4478 = vsel %vm2246, %v4415, %v4417
        %v4479 = vsel %vm2246, %v4413, %v4415
        %v4480 = vsel %vm2246, %v4411, %v4413
        %v4481 = vsel %vm2246, %v4409, %v4411
        %v4482 = vsel %vm2246, %v4407, %v4409
        %v4483 = vsel %vm2246, %v4405, %v4407
        %v4484 = vsel %vm2246, %v4403, %v4405
        %v4485 = vsel %vm2246, %v4401, %v4403
        %v4486 = vsel %vm2246, %v4399, %v4401
        %v4487 = vsel %vm2246, %v4397, %v4399
        %v4488 = vsel %vm2246, %v4395, %v4397
        %v4489 = vsel %vm2246, %v4457, %v4395
        %v4490 = vmul.f32 %v4489, %v2442
        %v4491 = vmul.f32 %v4488, %v2446
        %v4492 = vmul.f32 %v4487, %v2450
        %v4493 = vmul.f32 %v4486, %v2454
        %v4494 = vmul.f32 %v4485, %v2458
        %v4495 = vmul.f32 %v4484, %v2462
        %v4496 = vmul.f32 %v4483, %v2466
        %v4497 = vmul.f32 %v4482, %v2470
        %v4498 = vmul.f32 %v4481, %v2474
        %v4499 = vmul.f32 %v4480, %v2478
        %v4500 = vmul.f32 %v4479, %v2482
        %v4501 = vmul.f32 %v4478, %v2486
        %v4502 = vmul.f32 %v4477, %v2490
        %v4503 = vmul.f32 %v4476, %v2494
        %v4504 = vmul.f32 %v4475, %v2498
        %v4505 = vmul.f32 %v4474, %v2502
        %v4506 = vmul.f32 %v4473, %v2506
        %v4507 = vmul.f32 %v4472, %v2510
        %v4508 = vmul.f32 %v4471, %v2514
        %v4509 = vmul.f32 %v4470, %v2518
        %v4510 = vmul.f32 %v4469, %v2522
        %v4511 = vmul.f32 %v4468, %v2526
        %v4512 = vmul.f32 %v4467, %v2530
        %v4513 = vmul.f32 %v4466, %v2534
        %v4514 = vmul.f32 %v4465, %v2538
        %v4515 = vmul.f32 %v4464, %v2542
        %v4516 = vmul.f32 %v4463, %v2546
        %v4517 = vmul.f32 %v4462, %v2550
        %v4518 = vmul.f32 %v4461, %v2554
        %v4519 = vmul.f32 %v4460, %v2558
        %v4520 = vmul.f32 %v4459, %v2562
        %v4521 = vmul.f32 %v4458, %v2566
        %4522 = vrot.lane.b32.xlu0 %v3623, 64
        %v4523 = vpop.permute.xlu0 %4522
        %4524 = vrot.lane.b32.xlu0 %v3625, 64
        %v4525 = vpop.permute.xlu0 %4524
        %4526 = vrot.lane.b32.xlu0 %v3674, 64
        %v4527 = vpop.permute.xlu0 %4526
        %4528 = vrot.lane.b32.xlu0 %v3676, 64
        %v4529 = vpop.permute.xlu0 %4528
        %4530 = vrot.lane.b32.xlu0 %v3725, 64
        %v4531 = vpop.permute.xlu0 %4530
        %4532 = vrot.lane.b32.xlu0 %v3727, 64
        %v4533 = vpop.permute.xlu0 %4532
        %4534 = vrot.lane.b32.xlu0 %v3776, 64
        %v4535 = vpop.permute.xlu0 %4534
        %4536 = vrot.lane.b32.xlu0 %v3778, 64
        %v4537 = vpop.permute.xlu0 %4536
        %4538 = vrot.lane.b32.xlu0 %v3827, 64
        %v4539 = vpop.permute.xlu0 %4538
        %4540 = vrot.lane.b32.xlu0 %v3829, 64
        %v4541 = vpop.permute.xlu0 %4540
        %4542 = vrot.lane.b32.xlu0 %v3878, 64
        %v4543 = vpop.permute.xlu0 %4542
        %4544 = vrot.lane.b32.xlu0 %v3880, 64
        %v4545 = vpop.permute.xlu0 %4544
        %4546 = vrot.lane.b32.xlu0 %v3929, 64
        %v4547 = vpop.permute.xlu0 %4546
        %4548 = vrot.lane.b32.xlu0 %v3931, 64
        %v4549 = vpop.permute.xlu0 %4548
        %4550 = vrot.lane.b32.xlu0 %v3980, 64
        %v4551 = vpop.permute.xlu0 %4550
        %4552 = vrot.lane.b32.xlu0 %v3982, 64
        %v4553 = vpop.permute.xlu0 %4552
        %4554 = vrot.lane.b32.xlu0 %v4031, 64
        %v4555 = vpop.permute.xlu0 %4554
        %4556 = vrot.lane.b32.xlu0 %v4033, 64
        %v4557 = vpop.permute.xlu0 %4556
        %4558 = vrot.lane.b32.xlu0 %v4082, 64
        %v4559 = vpop.permute.xlu0 %4558
        %4560 = vrot.lane.b32.xlu0 %v4084, 64
        %v4561 = vpop.permute.xlu0 %4560
        %4562 = vrot.lane.b32.xlu0 %v4133, 64
        %v4563 = vpop.permute.xlu0 %4562
        %4564 = vrot.lane.b32.xlu0 %v4135, 64
        %v4565 = vpop.permute.xlu0 %4564
        %4566 = vrot.lane.b32.xlu0 %v4184, 64
        %v4567 = vpop.permute.xlu0 %4566
        %4568 = vrot.lane.b32.xlu0 %v4186, 64
        %v4569 = vpop.permute.xlu0 %4568
        %4570 = vrot.lane.b32.xlu0 %v4235, 64
        %v4571 = vpop.permute.xlu0 %4570
        %4572 = vrot.lane.b32.xlu0 %v4237, 64
        %v4573 = vpop.permute.xlu0 %4572
        %4574 = vrot.lane.b32.xlu0 %v4286, 64
        %v4575 = vpop.permute.xlu0 %4574
        %4576 = vrot.lane.b32.xlu0 %v4288, 64
        %v4577 = vpop.permute.xlu0 %4576
        %4578 = vrot.lane.b32.xlu0 %v4337, 64
        %v4579 = vpop.permute.xlu0 %4578
        %4580 = vrot.lane.b32.xlu0 %v4339, 64
        %v4581 = vpop.permute.xlu0 %4580
        %4582 = vrot.lane.b32.xlu0 %v4388, 64
        %v4583 = vpop.permute.xlu0 %4582
        %4584 = vrot.lane.b32.xlu0 %v4390, 64
        %v4585 = vpop.permute.xlu0 %4584
        %v4586 = vsel %vm2246, %v4583, %v4585
        %v4587 = vsel %vm2246, %v4581, %v4583
        %v4588 = vsel %vm2246, %v4579, %v4581
        %v4589 = vsel %vm2246, %v4577, %v4579
        %v4590 = vsel %vm2246, %v4575, %v4577
        %v4591 = vsel %vm2246, %v4573, %v4575
        %v4592 = vsel %vm2246, %v4571, %v4573
        %v4593 = vsel %vm2246, %v4569, %v4571
        %v4594 = vsel %vm2246, %v4567, %v4569
        %v4595 = vsel %vm2246, %v4565, %v4567
        %v4596 = vsel %vm2246, %v4563, %v4565
        %v4597 = vsel %vm2246, %v4561, %v4563
        %v4598 = vsel %vm2246, %v4559, %v4561
        %v4599 = vsel %vm2246, %v4557, %v4559
        %v4600 = vsel %vm2246, %v4555, %v4557
        %v4601 = vsel %vm2246, %v4553, %v4555
        %v4602 = vsel %vm2246, %v4551, %v4553
        %v4603 = vsel %vm2246, %v4549, %v4551
        %v4604 = vsel %vm2246, %v4547, %v4549
        %v4605 = vsel %vm2246, %v4545, %v4547
        %v4606 = vsel %vm2246, %v4543, %v4545
        %v4607 = vsel %vm2246, %v4541, %v4543
        %v4608 = vsel %vm2246, %v4539, %v4541
        %v4609 = vsel %vm2246, %v4537, %v4539
        %v4610 = vsel %vm2246, %v4535, %v4537
        %v4611 = vsel %vm2246, %v4533, %v4535
        %v4612 = vsel %vm2246, %v4531, %v4533
        %v4613 = vsel %vm2246, %v4529, %v4531
        %v4614 = vsel %vm2246, %v4527, %v4529
        %v4615 = vsel %vm2246, %v4525, %v4527
        %v4616 = vsel %vm2246, %v4523, %v4525
        %v4617 = vsel %vm2246, %v4585, %v4523
        %v4618 = vmul.f32 %v4616, %v2858
        %v4619 = vmul.f32 %v4615, %v2862
        %v4620 = vmul.f32 %v4614, %v2866
        %v4621 = vmul.f32 %v4613, %v2870
        %v4622 = vmul.f32 %v4612, %v2874
        %v4623 = vmul.f32 %v4611, %v2878
        %v4624 = vmul.f32 %v4610, %v2882
        %v4625 = vmul.f32 %v4609, %v2886
        %v4626 = vmul.f32 %v4608, %v2890
        %v4627 = vmul.f32 %v4607, %v2894
        %v4628 = vmul.f32 %v4606, %v2898
        %v4629 = vmul.f32 %v4605, %v2902
        %v4630 = vmul.f32 %v4604, %v2906
        %v4631 = vmul.f32 %v4603, %v2910
        %v4632 = vmul.f32 %v4602, %v2914
        %v4633 = vmul.f32 %v4601, %v2918
        %v4634 = vmul.f32 %v4600, %v2922
        %v4635 = vmul.f32 %v4599, %v2926
        %v4636 = vmul.f32 %v4598, %v2930
        %v4637 = vmul.f32 %v4597, %v2934
        %v4638 = vmul.f32 %v4596, %v2938
        %v4639 = vmul.f32 %v4595, %v2942
        %v4640 = vmul.f32 %v4594, %v2946
        %v4641 = vmul.f32 %v4593, %v2950
        %v4642 = vmul.f32 %v4592, %v2954
        %v4643 = vmul.f32 %v4591, %v2958
        %v4644 = vmul.f32 %v4590, %v2962
        %v4645 = vmul.f32 %v4589, %v2966
        %v4646 = vmul.f32 %v4588, %v2970
        %v4647 = vmul.f32 %v4587, %v2974
        %v4648 = vmul.f32 %v4586, %v2978
        %v4649 = vmul.f32 %v4617, %v2982
        %4651 = vset.pattern.permute.xlu0 0
        %4652 = vperm.xlu0 %4651, %v305
        %v4653 = vpop.permute.xlu0 %4652
        %v4655 = vadd.f32 %v3617, %v4653
        %v4656 = vadd.f32 %v3619, %v4653
        %v4657 = vadd.f32 %v3668, %v4653
        %v4658 = vadd.f32 %v3670, %v4653
        %v4659 = vadd.f32 %v3719, %v4653
        %v4660 = vadd.f32 %v3721, %v4653
        %v4661 = vadd.f32 %v3770, %v4653
        %v4662 = vadd.f32 %v3772, %v4653
        %v4663 = vadd.f32 %v3821, %v4653
        %v4664 = vadd.f32 %v3823, %v4653
        %v4665 = vadd.f32 %v3872, %v4653
        %v4666 = vadd.f32 %v3874, %v4653
        %v4667 = vadd.f32 %v3923, %v4653
        %v4668 = vadd.f32 %v3925, %v4653
        %v4669 = vadd.f32 %v3974, %v4653
        %v4670 = vadd.f32 %v3976, %v4653
        %v4671 = vadd.f32 %v4025, %v4653
        %v4672 = vadd.f32 %v4027, %v4653
        %v4673 = vadd.f32 %v4076, %v4653
        %v4674 = vadd.f32 %v4078, %v4653
        %v4675 = vadd.f32 %v4127, %v4653
        %v4676 = vadd.f32 %v4129, %v4653
        %v4677 = vadd.f32 %v4178, %v4653
        %v4678 = vadd.f32 %v4180, %v4653
        %v4679 = vadd.f32 %v4229, %v4653
        %v4680 = vadd.f32 %v4231, %v4653
        %v4681 = vadd.f32 %v4280, %v4653
        %v4682 = vadd.f32 %v4282, %v4653
        %v4683 = vadd.f32 %v4331, %v4653
        %v4684 = vadd.f32 %v4333, %v4653
        %v4685 = vadd.f32 %v4382, %v4653
        %v4686 = vadd.f32 %v4384, %v4653
        %v4687 = vadd.f32 %v4490, %v4618
        %v4688 = vadd.f32 %v4491, %v4619
        %v4689 = vadd.f32 %v4492, %v4620
        %v4690 = vadd.f32 %v4493, %v4621
        %v4691 = vadd.f32 %v4494, %v4622
        %v4692 = vadd.f32 %v4495, %v4623
        %v4693 = vadd.f32 %v4496, %v4624
        %v4694 = vadd.f32 %v4497, %v4625
        %v4695 = vadd.f32 %v4498, %v4626
        %v4696 = vadd.f32 %v4499, %v4627
        %v4697 = vadd.f32 %v4500, %v4628
        %v4698 = vadd.f32 %v4501, %v4629
        %v4699 = vadd.f32 %v4502, %v4630
        %v4700 = vadd.f32 %v4503, %v4631
        %v4701 = vadd.f32 %v4504, %v4632
        %v4702 = vadd.f32 %v4505, %v4633
        %v4703 = vadd.f32 %v4506, %v4634
        %v4704 = vadd.f32 %v4507, %v4635
        %v4705 = vadd.f32 %v4508, %v4636
        %v4706 = vadd.f32 %v4509, %v4637
        %v4707 = vadd.f32 %v4510, %v4638
        %v4708 = vadd.f32 %v4511, %v4639
        %v4709 = vadd.f32 %v4512, %v4640
        %v4710 = vadd.f32 %v4513, %v4641
        %v4711 = vadd.f32 %v4514, %v4642
        %v4712 = vadd.f32 %v4515, %v4643
        %v4713 = vadd.f32 %v4516, %v4644
        %v4714 = vadd.f32 %v4517, %v4645
        %v4715 = vadd.f32 %v4518, %v4646
        %v4716 = vadd.f32 %v4519, %v4647
        %v4717 = vadd.f32 %v4520, %v4648
        %v4718 = vadd.f32 %v4521, %v4649
        %v4719 = vadd.f32 %v4655, %v4687
        %v4720 = vadd.f32 %v4656, %v4688
        %v4721 = vadd.f32 %v4657, %v4689
        %v4722 = vadd.f32 %v4658, %v4690
        %v4723 = vadd.f32 %v4659, %v4691
        %v4724 = vadd.f32 %v4660, %v4692
        %v4725 = vadd.f32 %v4661, %v4693
        %v4726 = vadd.f32 %v4662, %v4694
        %v4727 = vadd.f32 %v4663, %v4695
        %v4728 = vadd.f32 %v4664, %v4696
        %v4729 = vadd.f32 %v4665, %v4697
        %v4730 = vadd.f32 %v4666, %v4698
        %v4731 = vadd.f32 %v4667, %v4699
        %v4732 = vadd.f32 %v4668, %v4700
        %v4733 = vadd.f32 %v4669, %v4701
        %v4734 = vadd.f32 %v4670, %v4702
        %v4735 = vadd.f32 %v4671, %v4703
        %v4736 = vadd.f32 %v4672, %v4704
        %v4737 = vadd.f32 %v4673, %v4705
        %v4738 = vadd.f32 %v4674, %v4706
        %v4739 = vadd.f32 %v4675, %v4707
        %v4740 = vadd.f32 %v4676, %v4708
        %v4741 = vadd.f32 %v4677, %v4709
        %v4742 = vadd.f32 %v4678, %v4710
        %v4743 = vadd.f32 %v4679, %v4711
        %v4744 = vadd.f32 %v4680, %v4712
        %v4745 = vadd.f32 %v4681, %v4713
        %v4746 = vadd.f32 %v4682, %v4714
        %v4747 = vadd.f32 %v4683, %v4715
        %v4748 = vadd.f32 %v4684, %v4716
        %v4749 = vadd.f32 %v4685, %v4717
        %v4750 = vadd.f32 %v4686, %v4718
        %4751 = vst [vmem:[%s280] sm:$0xff] %v4719
        %4752 = vst [vmem:[%s280 + $0x8] sm:$0xff] %v4720
        %4753 = vst [vmem:[%s280 + $0x10] sm:$0xff] %v4721
        %4754 = vst [vmem:[%s280 + $0x18] sm:$0xff] %v4722
        %4755 = vst [vmem:[%s280 + $0x20] sm:$0xff] %v4723
        %4756 = vst [vmem:[%s280 + $0x28] sm:$0xff] %v4724
        %4757 = vst [vmem:[%s280 + $0x30] sm:$0xff] %v4725
        %4758 = vst [vmem:[%s280 + $0x38] sm:$0xff] %v4726
        %4759 = vst [vmem:[%s280 + $0x40] sm:$0xff] %v4727
        %4760 = vst [vmem:[%s280 + $0x48] sm:$0xff] %v4728
        %4761 = vst [vmem:[%s280 + $0x50] sm:$0xff] %v4729
        %4762 = vst [vmem:[%s280 + $0x58] sm:$0xff] %v4730
        %4763 = vst [vmem:[%s280 + $0x60] sm:$0xff] %v4731
        %4764 = vst [vmem:[%s280 + $0x68] sm:$0xff] %v4732
        %4765 = vst [vmem:[%s280 + $0x70] sm:$0xff] %v4733
        %4766 = vst [vmem:[%s280 + $0x78] sm:$0xff] %v4734
        %4767 = vst [vmem:[%s280 + $0x80] sm:$0xff] %v4735
        %4768 = vst [vmem:[%s280 + $0x88] sm:$0xff] %v4736
        %4769 = vst [vmem:[%s280 + $0x90] sm:$0xff] %v4737
        %4770 = vst [vmem:[%s280 + $0x98] sm:$0xff] %v4738
        %4771 = vst [vmem:[%s280 + $0xa0] sm:$0xff] %v4739
        %4772 = vst [vmem:[%s280 + $0xa8] sm:$0xff] %v4740
        %4773 = vst [vmem:[%s280 + $0xb0] sm:$0xff] %v4741
        %4774 = vst [vmem:[%s280 + $0xb8] sm:$0xff] %v4742
        %4775 = vst [vmem:[%s280 + $0xc0] sm:$0xff] %v4743
        %4776 = vst [vmem:[%s280 + $0xc8] sm:$0xff] %v4744
        %4777 = vst [vmem:[%s280 + $0xd0] sm:$0xff] %v4745
        %4778 = vst [vmem:[%s280 + $0xd8] sm:$0xff] %v4746
        %4779 = vst [vmem:[%s280 + $0xe0] sm:$0xff] %v4747
        %4780 = vst [vmem:[%s280 + $0xe8] sm:$0xff] %v4748
        %4781 = vst [vmem:[%s280 + $0xf0] sm:$0xff] %v4749
        %4782 = vst [vmem:[%s280 + $0xf8] sm:$0xff] %v4750
        %s4783 = sand.u32 %s163, 1
        %s4784 = scalar_lea.sflag [#allocation4], %s4783
        %s4785 = sand.u32 %s163, 1
        %s4786 = smul.addr %s4785, 256
        %s4787 = scalar_lea.vmem [#allocation7], %s4786
        // Predicated region
        $region53: #{tpu_custom_call.1} parent=43 // pred_check
          %p4788 = pneg %p173
        $region54: #{tpu_custom_call.1} parent=43 // pred_check_branch
          %4790 = sbr.rel (%p4788) target = $region56
        $region55: #{tpu_custom_call.1} parent=43 // pred_region
          %s4792 = ssub.s32 4096, 4096
          %4793 = vsyncadd %s4784, %s4792
          %s4794 = smul.addr %s24, 32
          %s4795 = smul.addr %s4794, 128
          %s4796 = scalar_lea.hbm %s6, %s4795
          %s4798 = sshll.u32 %s4787, 4
          %s4799 = int_to_ptr.vmem [resolvable:$true] %s4798
          %4801 = dma.vmem_to_hbm [thread:$0]  %s4799, 4096, %s4796, %s4784
        $region56: #{tpu_custom_call.1} parent=43 // pred_fallthru
          _
      $region44: #{tpu_custom_call.1} parent=5 // pred_fallthru
        _
      %p4802 = scmp.le.s32.totalorder 2, %s19
      // Predicated region
      $region57: #{tpu_custom_call.1} parent=5 // pred_check
        %p4803 = pneg %p4802
      $region58: #{tpu_custom_call.1} parent=5 // pred_check_branch
        %4805 = sbr.rel (%p4803) target = $region60
      $region59: #{tpu_custom_call.1} parent=5 // pred_region
        %s4806 = ssub.s32 %s19, 2
        // Predicated region
        $region61: #{tpu_custom_call.1} parent=59 // pred_check
          %p4807 = pneg %p179
        $region62: #{tpu_custom_call.1} parent=59 // pred_check_branch
          %4809 = sbr.rel (%p4807) target = $region64
        $region63: #{tpu_custom_call.1} parent=59 // pred_region
          %s4810 = sand.u32 %s164, 1
          %s4811 = scalar_lea.sflag [#allocation4], %s4810
          %s4812 = sand.u32 %s164, 1
          %s4813 = smul.addr %s4812, 256
          %s4814 = scalar_lea.vmem [#allocation7], %s4813
          %4815 = dma.done %s4811, 4096
        $region64: #{tpu_custom_call.1} parent=59 // pred_fallthru
          _
      $region60: #{tpu_custom_call.1} parent=5 // pred_fallthru
        _
    $region6: #{tpu_custom_call.1} parent=1 // loop_footer
      %s23 = sadd.s32 1, %s19
    $region7: #{tpu_custom_call.1} parent=1 // loop_footer_branch
      %18 = sbr.rel target = $region3
    $region8: #{tpu_custom_call.1} parent=1 // loop_exit
      _
    %4816 = vsyncpa [#allocation3], 1
    %s4817 = scalar_lea.sflag [#allocation3], 1
    %4818 = vsyncpa %s4817, 1
    %4819 = vsyncpa [#allocation6], 1
    %s4820 = scalar_lea.sflag [#allocation6], 1
    %4821 = vsyncpa %s4820, 1
    %4822 = vsyncpa [#allocation4], 1
    %s4823 = scalar_lea.sflag [#allocation4], 1
    %4824 = vsyncpa %s4823, 1

</llo_original>
